<compile_context>
chip_gen: v6e
topology: v6e:2x2x1
jax: 0.10.0
libtpu: 0.0.40
codegen_flags: <defaults>
</compile_context>

<pallas_src>
import numpy as np

import jax
import jax.numpy as jnp
from jax.experimental import pallas as pl
from jax.experimental.pallas import tpu as pltpu

K_TAPS = 3  # causal conv kernel size


# --------------------------- host-side shift matrices -----------------------

def _shift_mats(l_in, l_out, stride):
    """(K, l_in, l_out) 0/1 matrices; G[j, t, i] = 1 iff t == stride*i - (K-1) + j.

    x @ G[j] picks, for every output position i, the causal-conv input sample for tap j
    (positions < 0 naturally contribute nothing == left zero-padding)."""
    t = np.arange(l_in).reshape(l_in, 1)
    i = np.arange(l_out).reshape(1, l_out)
    mats = [(t == stride * i - (K_TAPS - 1) + j).astype(np.float32) for j in range(K_TAPS)]
    return jnp.asarray(np.stack(mats))


# ----------------------------- Pallas kernel --------------------------------

def _sparknet_kernel(x_ref, xe_ref,
                     g_r1, g_s1, g_r2, g_s2,
                     w_r1, b_r1, w_s1, b_s1, w_r2, b_r2,
                     w_s2a, w_s2b, b_s2, w_m1, b_m1, w_m2, b_m2,
                     o_ref):
    c_t, l_t = o_ref.shape

    x = x_ref[...]      # (C_in, L_in)
    xe = xe_ref[...]    # (C_exo, L_exo)

    def causal_conv(xv, g_ref, w_ref):
        """xv: (C_in, L_in); g_ref: (K, L_in, L_out); w_ref: (K, C_out, C_in)."""
        acc = None
        for j in range(K_TAPS):
            xg = jnp.dot(xv, g_ref[j], preferred_element_type=jnp.float32)       # (C_in, L_out)
            contrib = jnp.dot(w_ref[j], xg, preferred_element_type=jnp.float32)  # (C_out, L_out)
            acc = contrib if acc is None else acc + contrib
        return acc

    # conv1dres_1: relu(causal_conv(x) + x)
    out1 = jnp.maximum(causal_conv(x, g_r1, w_r1) + b_r1[...] + x, 0.0)

    # conv1dsample_1: relu(strided causal conv), L_in -> L_t, C_in -> C_t
    out2 = jnp.maximum(causal_conv(out1, g_s1, w_s1) + b_s1[...], 0.0)

    # conv1dres_2: relu(causal_conv(xe) + xe)
    out3 = jnp.maximum(causal_conv(xe, g_r2, w_r2) + b_r2[...] + xe, 0.0)

    # conv1dsample_2 on channel-concat([out2, out3]); concat folded into the split weights.
    acc = None
    for j in range(K_TAPS):
        g = g_s2[j]
        contrib = (
            jnp.dot(w_s2a[j], jnp.dot(out2, g, preferred_element_type=jnp.float32),
                    preferred_element_type=jnp.float32)
            + jnp.dot(w_s2b[j], jnp.dot(out3, g, preferred_element_type=jnp.float32),
                      preferred_element_type=jnp.float32))
        acc = contrib if acc is None else acc + contrib
    out5 = jnp.maximum(acc + b_s2[...], 0.0)                               # (C_t, L_t)

    # MLP layer 1: h = relu(flat @ W1 + b1); channel-major flatten of out5 == row-major flatten
    # of this (C_t, L_t) layout -> folded into per-channel row matmuls (no in-kernel reshape).
    h = b_m1[...]                                                          # (1, H)
    for c in range(c_t):
        h = h + jnp.dot(out5[c:c + 1, :], w_m1[c], preferred_element_type=jnp.float32)
    h = jnp.maximum(h, 0.0)

    # MLP layer 2 + unflatten: out[c, :] = h @ W2[c] + b2[c, :]
    b2 = b_m2[...]                                                         # (C_t, L_t)
    for c in range(c_t):
        row = jnp.dot(h, w_m2[c], preferred_element_type=jnp.float32) + b2[c:c + 1, :]
        o_ref[pl.ds(c, 1), :] = row.astype(o_ref.dtype)


# ------------------------------- wrapper -------------------------------------

def sparknet_forward(p, inputs, inputs_exo):
    """inputs: (B, C_in, L_in) NCL; inputs_exo: (B, C_exo, L_exo) NCL -> (B, C_t, L_t)."""
    B, C_in, L_in = inputs.shape
    _, C_exo, L_exo = inputs_exo.shape
    C_t, L_t = p["C_t"], p["L_t"]
    H = p["mlp_b1"].shape[-1]
    stride1 = L_in // L_t

    # Host-baked shift/stride gather matrices (tiny, VMEM-resident constants).
    g_r1 = _shift_mats(L_in, L_in, 1)
    g_s1 = _shift_mats(L_in, L_t, stride1)
    g_r2 = _shift_mats(L_exo, L_exo, 1)
    g_s2 = _shift_mats(L_t, L_t, 1)

    args = (
        inputs.astype(jnp.float32), inputs_exo.astype(jnp.float32),
        g_r1, g_s1, g_r2, g_s2,
        p["res1_w"], p["res1_b"], p["samp1_w"], p["samp1_b"],
        p["res2_w"], p["res2_b"],
        p["samp2_w"][:, :, :C_t], p["samp2_w"][:, :, C_t:], p["samp2_b"],
        p["mlp_w1"], p["mlp_b1"], p["mlp_w2"], p["mlp_b2"],
    )

    def batch_spec(a):   # one batch element per grid step; batch dim squeezed away
        return pl.BlockSpec((None,) + a.shape[1:], lambda b: (b,) + (0,) * (a.ndim - 1))

    def resident_spec(a):  # whole (tiny) array resident in VMEM, same block every step
        return pl.BlockSpec(a.shape, lambda b, _r=a.ndim: (0,) * _r)

    in_specs = [batch_spec(args[0]), batch_spec(args[1])] + [resident_spec(a) for a in args[2:]]
    out_specs = pl.BlockSpec((None, C_t, L_t), lambda b: (b, 0, 0))

    # Rough advisory cost (helps XLA place the surrounding tiny HLOs).
    conv_flops = (
        3 * (2 * C_in * L_in * L_in + 2 * C_in * C_in * L_in)                   # res1
        + 3 * (2 * C_in * L_in * L_t + 2 * C_t * C_in * L_t)                    # samp1
        + 3 * (2 * C_exo * L_exo * L_exo + 2 * C_exo * C_exo * L_exo)           # res2
        + 3 * (2 * (C_t + C_exo) * L_t * L_t + 2 * C_t * (C_t + C_exo) * L_t))  # samp2
    mlp_flops = 2 * C_t * L_t * H + 2 * H * C_t * L_t
    flops = int(B * (conv_flops + mlp_flops))
    bytes_accessed = int(sum(int(a.size) * 4 for a in args) + B * C_t * L_t * 4)

    return pl.pallas_call(
        _sparknet_kernel,
        out_shape=jax.ShapeDtypeStruct((B, C_t, L_t), jnp.float32),
        grid=(B,),
        in_specs=in_specs,
        out_specs=out_specs,
        compiler_params=pltpu.CompilerParams(dimension_semantics=("parallel",)),
        cost_estimate=pl.CostEstimate(flops=flops, transcendentals=0,
                                      bytes_accessed=bytes_accessed),
    )(*args)


# ---------------------------- params & reference -----------------------------

def init_params(inputs_shape, inputs_exo_shape, targets_shape, key, hidden=100):
    _, C_in, L_in = inputs_shape
    _, C_exo, L_exo = inputs_exo_shape
    _, C_t, L_t = targets_shape

    def norm(k, shape, scale=0.1):
        return scale * jax.random.normal(jax.random.fold_in(key, k), shape, jnp.float32)

    return {
        "C_t": C_t, "L_t": L_t,
        "res1_w": norm(0, (K_TAPS, C_in, C_in)),        "res1_b": norm(1, (C_in, 1)),
        "samp1_w": norm(2, (K_TAPS, C_t, C_in)),        "samp1_b": norm(3, (C_t, 1)),
        "res2_w": norm(4, (K_TAPS, C_exo, C_exo)),      "res2_b": norm(5, (C_exo, 1)),
        "samp2_w": norm(6, (K_TAPS, C_t, C_t + C_exo)), "samp2_b": norm(7, (C_t, 1)),
        "mlp_w1": norm(8, (C_t, L_t, hidden)),          "mlp_b1": norm(9, (1, hidden)),
        "mlp_w2": norm(10, (C_t, hidden, L_t)),         "mlp_b2": norm(11, (C_t, L_t)),
    }


def sparknet_reference(p, inputs, inputs_exo):
    """Pure-JAX reference with identical assumed semantics (for correctness check)."""
    B, C_in, L_in = inputs.shape
    _, C_exo, L_exo = inputs_exo.shape
    C_t, L_t = p["C_t"], p["L_t"]

    def relu(v):
        return jnp.maximum(v, 0.0)

    def causal_conv(x, w, b, stride, l_out):
        xp = jnp.pad(x, ((0, 0), (0, 0), (K_TAPS - 1, 0)))
        y = b[None, :, :]
        for j in range(K_TAPS):
            tap = xp[:, :, j: j + stride * (l_out - 1) + 1: stride]
            y = y + jnp.einsum("oc,bcl->bol", w[j], tap, preferred_element_type=jnp.float32)
        return y

    out1 = relu(causal_conv(inputs, p["res1_w"], p["res1_b"], 1, L_in) + inputs)
    out2 = relu(causal_conv(out1, p["samp1_w"], p["samp1_b"], L_in // L_t, L_t))
    out3 = relu(causal_conv(inputs_exo, p["res2_w"], p["res2_b"], 1, L_exo) + inputs_exo)
    out4 = jnp.concatenate([out2, out3], axis=1)
    out5 = relu(causal_conv(out4, p["samp2_w"], p["samp2_b"], 1, L_t))

    flat = out5.reshape(B, C_t * L_t)
    hid = p["mlp_b1"].shape[-1]
    h = relu(flat @ p["mlp_w1"].reshape(C_t * L_t, hid) + p["mlp_b1"])
    w2 = jnp.transpose(p["mlp_w2"], (1, 0, 2)).reshape(hid, C_t * L_t)
    y = h @ w2 + p["mlp_b2"].reshape(1, C_t * L_t)
    return y.reshape(B, C_t, L_t)


# --------------------------------- main ---------------------------------------

if __name__ == "__main__":
    B = 2
    inputs_shape = (B, 8, 16)      # (B, C_in, L_in)
    targets_shape = (B, 4, 8)      # (B, C_t, L_t)
    inputs_exo_shape = (B, 4, 8)   # (B, C_exo, L_exo); C_t + C_exo == C_in, L_exo == L_t

    key = jax.random.PRNGKey(0)
    k_in, k_exo, k_par = jax.random.split(key, 3)

    inputs = jax.random.normal(k_in, inputs_shape, jnp.float32)
    inputs_exo = jax.random.normal(k_exo, inputs_exo_shape, jnp.float32)
    params = init_params(inputs_shape, inputs_exo_shape, targets_shape, k_par)

    fwd = jax.jit(lambda a, b: sparknet_forward(params, a, b))
    out = jax.block_until_ready(fwd(inputs, inputs_exo))

    assert out.shape == targets_shape, out.shape
    assert bool(jnp.all(jnp.isfinite(out)))

    ref = sparknet_reference(params, inputs, inputs_exo)
    max_err = float(jnp.max(jnp.abs(out - ref)))
    assert jnp.allclose(out, ref, atol=1e-2, rtol=1e-2), max_err

    print("KERNEL_OK")
</pallas_src>

<mosaic_0001>
module attributes {stable_mosaic.version = 11 : i64} {
  func.func @_sparknet_kernel(%arg0: i32, %arg1: memref<1x8x16xf32, #tpu.memory_space<vmem>>, %arg2: memref<1x4x8xf32, #tpu.memory_space<vmem>>, %arg3: memref<3x16x16xf32, #tpu.memory_space<vmem>>, %arg4: memref<3x16x8xf32, #tpu.memory_space<vmem>>, %arg5: memref<3x8x8xf32, #tpu.memory_space<vmem>>, %arg6: memref<3x8x8xf32, #tpu.memory_space<vmem>>, %arg7: memref<3x8x8xf32, #tpu.memory_space<vmem>>, %arg8: memref<8x1xf32, #tpu.memory_space<vmem>>, %arg9: memref<3x4x8xf32, #tpu.memory_space<vmem>>, %arg10: memref<4x1xf32, #tpu.memory_space<vmem>>, %arg11: memref<3x4x4xf32, #tpu.memory_space<vmem>>, %arg12: memref<4x1xf32, #tpu.memory_space<vmem>>, %arg13: memref<3x4x4xf32, #tpu.memory_space<vmem>>, %arg14: memref<3x4x4xf32, #tpu.memory_space<vmem>>, %arg15: memref<4x1xf32, #tpu.memory_space<vmem>>, %arg16: memref<4x8x100xf32, #tpu.memory_space<vmem>>, %arg17: memref<1x100xf32, #tpu.memory_space<vmem>>, %arg18: memref<4x100x8xf32, #tpu.memory_space<vmem>>, %arg19: memref<4x8xf32, #tpu.memory_space<vmem>>, %arg20: memref<1x4x8xf32, #tpu.memory_space<vmem>>) attributes {dimension_semantics = [#tpu.dimension_semantics<parallel>], iteration_bounds = array<i64: 2>, scalar_prefetch = 0 : i64, scratch_operands = 0 : i64, tpu.core_type = #tpu.core_type<tc>, window_params = [{transform_indices = @transform_0, window_bounds = array<i64: 1, 8, 16>}, {transform_indices = @transform_1, window_bounds = array<i64: 1, 4, 8>}, {pipeline_mode = #tpu.pipeline_mode<synchronous>, transform_indices = @transform_2, window_bounds = array<i64: 3, 16, 16>}, {pipeline_mode = #tpu.pipeline_mode<synchronous>, transform_indices = @transform_3, window_bounds = array<i64: 3, 16, 8>}, {pipeline_mode = #tpu.pipeline_mode<synchronous>, transform_indices = @transform_4, window_bounds = array<i64: 3, 8, 8>}, {pipeline_mode = #tpu.pipeline_mode<synchronous>, transform_indices = @transform_5, window_bounds = array<i64: 3, 8, 8>}, {pipeline_mode = #tpu.pipeline_mode<synchronous>, transform_indices = @transform_6, window_bounds = array<i64: 3, 8, 8>}, {pipeline_mode = #tpu.pipeline_mode<synchronous>, transform_indices = @transform_7, window_bounds = array<i64: 8, 1>}, {pipeline_mode = #tpu.pipeline_mode<synchronous>, transform_indices = @transform_8, window_bounds = array<i64: 3, 4, 8>}, {pipeline_mode = #tpu.pipeline_mode<synchronous>, transform_indices = @transform_9, window_bounds = array<i64: 4, 1>}, {pipeline_mode = #tpu.pipeline_mode<synchronous>, transform_indices = @transform_10, window_bounds = array<i64: 3, 4, 4>}, {pipeline_mode = #tpu.pipeline_mode<synchronous>, transform_indices = @transform_11, window_bounds = array<i64: 4, 1>}, {pipeline_mode = #tpu.pipeline_mode<synchronous>, transform_indices = @transform_12, window_bounds = array<i64: 3, 4, 4>}, {pipeline_mode = #tpu.pipeline_mode<synchronous>, transform_indices = @transform_13, window_bounds = array<i64: 3, 4, 4>}, {pipeline_mode = #tpu.pipeline_mode<synchronous>, transform_indices = @transform_14, window_bounds = array<i64: 4, 1>}, {pipeline_mode = #tpu.pipeline_mode<synchronous>, transform_indices = @transform_15, window_bounds = array<i64: 4, 8, 100>}, {pipeline_mode = #tpu.pipeline_mode<synchronous>, transform_indices = @transform_16, window_bounds = array<i64: 1, 100>}, {pipeline_mode = #tpu.pipeline_mode<synchronous>, transform_indices = @transform_17, window_bounds = array<i64: 4, 100, 8>}, {pipeline_mode = #tpu.pipeline_mode<synchronous>, transform_indices = @transform_18, window_bounds = array<i64: 4, 8>}, {transform_indices = @transform_19, window_bounds = array<i64: 1, 4, 8>}]} {
    %c0 = arith.constant 0 : index
    %c0_0 = arith.constant 0 : index
    %c0_1 = arith.constant 0 : index
    %0 = vector.load %arg1[%c0, %c0_0, %c0_1] : memref<1x8x16xf32, #tpu.memory_space<vmem>>, vector<1x8x16xf32>
    %1 = vector.shape_cast %0 : vector<1x8x16xf32> to vector<8x16xf32>
    %c0_2 = arith.constant 0 : index
    %c0_3 = arith.constant 0 : index
    %c0_4 = arith.constant 0 : index
    %2 = vector.load %arg2[%c0_2, %c0_3, %c0_4] : memref<1x4x8xf32, #tpu.memory_space<vmem>>, vector<1x4x8xf32>
    %3 = vector.shape_cast %2 : vector<1x4x8xf32> to vector<4x8xf32>
    %c0_5 = arith.constant 0 : index
    %c0_6 = arith.constant 0 : index
    %c0_7 = arith.constant 0 : index
    %4 = vector.load %arg3[%c0_5, %c0_6, %c0_7] : memref<3x16x16xf32, #tpu.memory_space<vmem>>, vector<1x16x16xf32>
    %5 = vector.shape_cast %4 : vector<1x16x16xf32> to vector<16x16xf32>
    %cst = arith.constant dense<0.000000e+00> : vector<8x16xf32>
    %6 = tpu.matmul %1, %5, %cst {dimension_numbers = #tpu.dot_dimension_numbers<[1], [0], [0], [1], [0, 0, 1, 1], [], []>} : vector<8x16xf32>, vector<16x16xf32>, vector<8x16xf32> -> vector<8x16xf32>
    %c0_8 = arith.constant 0 : index
    %c0_9 = arith.constant 0 : index
    %c0_10 = arith.constant 0 : index
    %7 = vector.load %arg7[%c0_8, %c0_9, %c0_10] : memref<3x8x8xf32, #tpu.memory_space<vmem>>, vector<1x8x8xf32>
    %8 = vector.shape_cast %7 : vector<1x8x8xf32> to vector<8x8xf32>
    %cst_11 = arith.constant dense<0.000000e+00> : vector<8x16xf32>
    %9 = tpu.matmul %8, %6, %cst_11 {dimension_numbers = #tpu.dot_dimension_numbers<[1], [0], [0], [1], [0, 0, 1, 1], [], []>} : vector<8x8xf32>, vector<8x16xf32>, vector<8x16xf32> -> vector<8x16xf32>
    %c1 = arith.constant 1 : index
    %c0_12 = arith.constant 0 : index
    %c0_13 = arith.constant 0 : index
    %10 = vector.load %arg3[%c1, %c0_12, %c0_13] : memref<3x16x16xf32, #tpu.memory_space<vmem>>, vector<1x16x16xf32>
    %11 = vector.shape_cast %10 : vector<1x16x16xf32> to vector<16x16xf32>
    %cst_14 = arith.constant dense<0.000000e+00> : vector<8x16xf32>
    %12 = tpu.matmul %1, %11, %cst_14 {dimension_numbers = #tpu.dot_dimension_numbers<[1], [0], [0], [1], [0, 0, 1, 1], [], []>} : vector<8x16xf32>, vector<16x16xf32>, vector<8x16xf32> -> vector<8x16xf32>
    %c1_15 = arith.constant 1 : index
    %c0_16 = arith.constant 0 : index
    %c0_17 = arith.constant 0 : index
    %13 = vector.load %arg7[%c1_15, %c0_16, %c0_17] : memref<3x8x8xf32, #tpu.memory_space<vmem>>, vector<1x8x8xf32>
    %14 = vector.shape_cast %13 : vector<1x8x8xf32> to vector<8x8xf32>
    %cst_18 = arith.constant dense<0.000000e+00> : vector<8x16xf32>
    %15 = tpu.matmul %14, %12, %cst_18 {dimension_numbers = #tpu.dot_dimension_numbers<[1], [0], [0], [1], [0, 0, 1, 1], [], []>} : vector<8x8xf32>, vector<8x16xf32>, vector<8x16xf32> -> vector<8x16xf32>
    %16 = arith.addf %9, %15 : vector<8x16xf32>
    %c2 = arith.constant 2 : index
    %c0_19 = arith.constant 0 : index
    %c0_20 = arith.constant 0 : index
    %17 = vector.load %arg3[%c2, %c0_19, %c0_20] : memref<3x16x16xf32, #tpu.memory_space<vmem>>, vector<1x16x16xf32>
    %18 = vector.shape_cast %17 : vector<1x16x16xf32> to vector<16x16xf32>
    %cst_21 = arith.constant dense<0.000000e+00> : vector<8x16xf32>
    %19 = tpu.matmul %1, %18, %cst_21 {dimension_numbers = #tpu.dot_dimension_numbers<[1], [0], [0], [1], [0, 0, 1, 1], [], []>} : vector<8x16xf32>, vector<16x16xf32>, vector<8x16xf32> -> vector<8x16xf32>
    %c2_22 = arith.constant 2 : index
    %c0_23 = arith.constant 0 : index
    %c0_24 = arith.constant 0 : index
    %20 = vector.load %arg7[%c2_22, %c0_23, %c0_24] : memref<3x8x8xf32, #tpu.memory_space<vmem>>, vector<1x8x8xf32>
    %21 = vector.shape_cast %20 : vector<1x8x8xf32> to vector<8x8xf32>
    %cst_25 = arith.constant dense<0.000000e+00> : vector<8x16xf32>
    %22 = tpu.matmul %21, %19, %cst_25 {dimension_numbers = #tpu.dot_dimension_numbers<[1], [0], [0], [1], [0, 0, 1, 1], [], []>} : vector<8x8xf32>, vector<8x16xf32>, vector<8x16xf32> -> vector<8x16xf32>
    %23 = arith.addf %16, %22 : vector<8x16xf32>
    %c0_26 = arith.constant 0 : index
    %c0_27 = arith.constant 0 : index
    %24 = vector.load %arg8[%c0_26, %c0_27] : memref<8x1xf32, #tpu.memory_space<vmem>>, vector<8x1xf32>
    %25 = vector.broadcast %24 : vector<8x1xf32> to vector<8x16xf32>
    %26 = arith.addf %23, %25 : vector<8x16xf32>
    %27 = arith.addf %26, %1 : vector<8x16xf32>
    %cst_28 = arith.constant 0.000000e+00 : f32
    %28 = vector.broadcast %cst_28 : f32 to vector<8x16xf32>
    %29 = arith.maximumf %27, %28 : vector<8x16xf32>
    %c0_29 = arith.constant 0 : index
    %c0_30 = arith.constant 0 : index
    %c0_31 = arith.constant 0 : index
    %30 = vector.load %arg4[%c0_29, %c0_30, %c0_31] : memref<3x16x8xf32, #tpu.memory_space<vmem>>, vector<1x16x8xf32>
    %31 = vector.shape_cast %30 : vector<1x16x8xf32> to vector<16x8xf32>
    %cst_32 = arith.constant dense<0.000000e+00> : vector<8x8xf32>
    %32 = tpu.matmul %29, %31, %cst_32 {dimension_numbers = #tpu.dot_dimension_numbers<[1], [0], [0], [1], [0, 0, 1, 1], [], []>} : vector<8x16xf32>, vector<16x8xf32>, vector<8x8xf32> -> vector<8x8xf32>
    %c0_33 = arith.constant 0 : index
    %c0_34 = arith.constant 0 : index
    %c0_35 = arith.constant 0 : index
    %33 = vector.load %arg9[%c0_33, %c0_34, %c0_35] : memref<3x4x8xf32, #tpu.memory_space<vmem>>, vector<1x4x8xf32>
    %34 = vector.shape_cast %33 : vector<1x4x8xf32> to vector<4x8xf32>
    %cst_36 = arith.constant dense<0.000000e+00> : vector<4x8xf32>
    %35 = tpu.matmul %34, %32, %cst_36 {dimension_numbers = #tpu.dot_dimension_numbers<[1], [0], [0], [1], [0, 0, 1, 1], [], []>} : vector<4x8xf32>, vector<8x8xf32>, vector<4x8xf32> -> vector<4x8xf32>
    %c1_37 = arith.constant 1 : index
    %c0_38 = arith.constant 0 : index
    %c0_39 = arith.constant 0 : index
    %36 = vector.load %arg4[%c1_37, %c0_38, %c0_39] : memref<3x16x8xf32, #tpu.memory_space<vmem>>, vector<1x16x8xf32>
    %37 = vector.shape_cast %36 : vector<1x16x8xf32> to vector<16x8xf32>
    %cst_40 = arith.constant dense<0.000000e+00> : vector<8x8xf32>
    %38 = tpu.matmul %29, %37, %cst_40 {dimension_numbers = #tpu.dot_dimension_numbers<[1], [0], [0], [1], [0, 0, 1, 1], [], []>} : vector<8x16xf32>, vector<16x8xf32>, vector<8x8xf32> -> vector<8x8xf32>
    %c1_41 = arith.constant 1 : index
    %c0_42 = arith.constant 0 : index
    %c0_43 = arith.constant 0 : index
    %39 = vector.load %arg9[%c1_41, %c0_42, %c0_43] : memref<3x4x8xf32, #tpu.memory_space<vmem>>, vector<1x4x8xf32>
    %40 = vector.shape_cast %39 : vector<1x4x8xf32> to vector<4x8xf32>
    %cst_44 = arith.constant dense<0.000000e+00> : vector<4x8xf32>
    %41 = tpu.matmul %40, %38, %cst_44 {dimension_numbers = #tpu.dot_dimension_numbers<[1], [0], [0], [1], [0, 0, 1, 1], [], []>} : vector<4x8xf32>, vector<8x8xf32>, vector<4x8xf32> -> vector<4x8xf32>
    %42 = arith.addf %35, %41 : vector<4x8xf32>
    %c2_45 = arith.constant 2 : index
    %c0_46 = arith.constant 0 : index
    %c0_47 = arith.constant 0 : index
    %43 = vector.load %arg4[%c2_45, %c0_46, %c0_47] : memref<3x16x8xf32, #tpu.memory_space<vmem>>, vector<1x16x8xf32>
    %44 = vector.shape_cast %43 : vector<1x16x8xf32> to vector<16x8xf32>
    %cst_48 = arith.constant dense<0.000000e+00> : vector<8x8xf32>
    %45 = tpu.matmul %29, %44, %cst_48 {dimension_numbers = #tpu.dot_dimension_numbers<[1], [0], [0], [1], [0, 0, 1, 1], [], []>} : vector<8x16xf32>, vector<16x8xf32>, vector<8x8xf32> -> vector<8x8xf32>
    %c2_49 = arith.constant 2 : index
    %c0_50 = arith.constant 0 : index
    %c0_51 = arith.constant 0 : index
    %46 = vector.load %arg9[%c2_49, %c0_50, %c0_51] : memref<3x4x8xf32, #tpu.memory_space<vmem>>, vector<1x4x8xf32>
    %47 = vector.shape_cast %46 : vector<1x4x8xf32> to vector<4x8xf32>
    %cst_52 = arith.constant dense<0.000000e+00> : vector<4x8xf32>
    %48 = tpu.matmul %47, %45, %cst_52 {dimension_numbers = #tpu.dot_dimension_numbers<[1], [0], [0], [1], [0, 0, 1, 1], [], []>} : vector<4x8xf32>, vector<8x8xf32>, vector<4x8xf32> -> vector<4x8xf32>
    %49 = arith.addf %42, %48 : vector<4x8xf32>
    %c0_53 = arith.constant 0 : index
    %c0_54 = arith.constant 0 : index
    %50 = vector.load %arg10[%c0_53, %c0_54] : memref<4x1xf32, #tpu.memory_space<vmem>>, vector<4x1xf32>
    %51 = vector.broadcast %50 : vector<4x1xf32> to vector<4x8xf32>
    %52 = arith.addf %49, %51 : vector<4x8xf32>
    %cst_55 = arith.constant 0.000000e+00 : f32
    %53 = vector.broadcast %cst_55 : f32 to vector<4x8xf32>
    %54 = arith.maximumf %52, %53 : vector<4x8xf32>
    %c0_56 = arith.constant 0 : index
    %c0_57 = arith.constant 0 : index
    %c0_58 = arith.constant 0 : index
    %55 = vector.load %arg5[%c0_56, %c0_57, %c0_58] : memref<3x8x8xf32, #tpu.memory_space<vmem>>, vector<1x8x8xf32>
    %56 = vector.shape_cast %55 : vector<1x8x8xf32> to vector<8x8xf32>
    %cst_59 = arith.constant dense<0.000000e+00> : vector<4x8xf32>
    %57 = tpu.matmul %3, %56, %cst_59 {dimension_numbers = #tpu.dot_dimension_numbers<[1], [0], [0], [1], [0, 0, 1, 1], [], []>} : vector<4x8xf32>, vector<8x8xf32>, vector<4x8xf32> -> vector<4x8xf32>
    %c0_60 = arith.constant 0 : index
    %c0_61 = arith.constant 0 : index
    %c0_62 = arith.constant 0 : index
    %58 = vector.load %arg11[%c0_60, %c0_61, %c0_62] : memref<3x4x4xf32, #tpu.memory_space<vmem>>, vector<1x4x4xf32>
    %59 = vector.shape_cast %58 : vector<1x4x4xf32> to vector<4x4xf32>
    %cst_63 = arith.constant dense<0.000000e+00> : vector<4x8xf32>
    %60 = tpu.matmul %59, %57, %cst_63 {dimension_numbers = #tpu.dot_dimension_numbers<[1], [0], [0], [1], [0, 0, 1, 1], [], []>} : vector<4x4xf32>, vector<4x8xf32>, vector<4x8xf32> -> vector<4x8xf32>
    %c1_64 = arith.constant 1 : index
    %c0_65 = arith.constant 0 : index
    %c0_66 = arith.constant 0 : index
    %61 = vector.load %arg5[%c1_64, %c0_65, %c0_66] : memref<3x8x8xf32, #tpu.memory_space<vmem>>, vector<1x8x8xf32>
    %62 = vector.shape_cast %61 : vector<1x8x8xf32> to vector<8x8xf32>
    %cst_67 = arith.constant dense<0.000000e+00> : vector<4x8xf32>
    %63 = tpu.matmul %3, %62, %cst_67 {dimension_numbers = #tpu.dot_dimension_numbers<[1], [0], [0], [1], [0, 0, 1, 1], [], []>} : vector<4x8xf32>, vector<8x8xf32>, vector<4x8xf32> -> vector<4x8xf32>
    %c1_68 = arith.constant 1 : index
    %c0_69 = arith.constant 0 : index
    %c0_70 = arith.constant 0 : index
    %64 = vector.load %arg11[%c1_68, %c0_69, %c0_70] : memref<3x4x4xf32, #tpu.memory_space<vmem>>, vector<1x4x4xf32>
    %65 = vector.shape_cast %64 : vector<1x4x4xf32> to vector<4x4xf32>
    %cst_71 = arith.constant dense<0.000000e+00> : vector<4x8xf32>
    %66 = tpu.matmul %65, %63, %cst_71 {dimension_numbers = #tpu.dot_dimension_numbers<[1], [0], [0], [1], [0, 0, 1, 1], [], []>} : vector<4x4xf32>, vector<4x8xf32>, vector<4x8xf32> -> vector<4x8xf32>
    %67 = arith.addf %60, %66 : vector<4x8xf32>
    %c2_72 = arith.constant 2 : index
    %c0_73 = arith.constant 0 : index
    %c0_74 = arith.constant 0 : index
    %68 = vector.load %arg5[%c2_72, %c0_73, %c0_74] : memref<3x8x8xf32, #tpu.memory_space<vmem>>, vector<1x8x8xf32>
    %69 = vector.shape_cast %68 : vector<1x8x8xf32> to vector<8x8xf32>
    %cst_75 = arith.constant dense<0.000000e+00> : vector<4x8xf32>
    %70 = tpu.matmul %3, %69, %cst_75 {dimension_numbers = #tpu.dot_dimension_numbers<[1], [0], [0], [1], [0, 0, 1, 1], [], []>} : vector<4x8xf32>, vector<8x8xf32>, vector<4x8xf32> -> vector<4x8xf32>
    %c2_76 = arith.constant 2 : index
    %c0_77 = arith.constant 0 : index
    %c0_78 = arith.constant 0 : index
    %71 = vector.load %arg11[%c2_76, %c0_77, %c0_78] : memref<3x4x4xf32, #tpu.memory_space<vmem>>, vector<1x4x4xf32>
    %72 = vector.shape_cast %71 : vector<1x4x4xf32> to vector<4x4xf32>
    %cst_79 = arith.constant dense<0.000000e+00> : vector<4x8xf32>
    %73 = tpu.matmul %72, %70, %cst_79 {dimension_numbers = #tpu.dot_dimension_numbers<[1], [0], [0], [1], [0, 0, 1, 1], [], []>} : vector<4x4xf32>, vector<4x8xf32>, vector<4x8xf32> -> vector<4x8xf32>
    %74 = arith.addf %67, %73 : vector<4x8xf32>
    %c0_80 = arith.constant 0 : index
    %c0_81 = arith.constant 0 : index
    %75 = vector.load %arg12[%c0_80, %c0_81] : memref<4x1xf32, #tpu.memory_space<vmem>>, vector<4x1xf32>
    %76 = vector.broadcast %75 : vector<4x1xf32> to vector<4x8xf32>
    %77 = arith.addf %74, %76 : vector<4x8xf32>
    %78 = arith.addf %77, %3 : vector<4x8xf32>
    %cst_82 = arith.constant 0.000000e+00 : f32
    %79 = vector.broadcast %cst_82 : f32 to vector<4x8xf32>
    %80 = arith.maximumf %78, %79 : vector<4x8xf32>
    %c0_83 = arith.constant 0 : index
    %c0_84 = arith.constant 0 : index
    %c0_85 = arith.constant 0 : index
    %81 = vector.load %arg6[%c0_83, %c0_84, %c0_85] : memref<3x8x8xf32, #tpu.memory_space<vmem>>, vector<1x8x8xf32>
    %82 = vector.shape_cast %81 : vector<1x8x8xf32> to vector<8x8xf32>
    %c0_86 = arith.constant 0 : index
    %c0_87 = arith.constant 0 : index
    %c0_88 = arith.constant 0 : index
    %83 = vector.load %arg13[%c0_86, %c0_87, %c0_88] : memref<3x4x4xf32, #tpu.memory_space<vmem>>, vector<1x4x4xf32>
    %84 = vector.shape_cast %83 : vector<1x4x4xf32> to vector<4x4xf32>
    %cst_89 = arith.constant dense<0.000000e+00> : vector<4x8xf32>
    %85 = tpu.matmul %54, %82, %cst_89 {dimension_numbers = #tpu.dot_dimension_numbers<[1], [0], [0], [1], [0, 0, 1, 1], [], []>} : vector<4x8xf32>, vector<8x8xf32>, vector<4x8xf32> -> vector<4x8xf32>
    %cst_90 = arith.constant dense<0.000000e+00> : vector<4x8xf32>
    %86 = tpu.matmul %84, %85, %cst_90 {dimension_numbers = #tpu.dot_dimension_numbers<[1], [0], [0], [1], [0, 0, 1, 1], [], []>} : vector<4x4xf32>, vector<4x8xf32>, vector<4x8xf32> -> vector<4x8xf32>
    %c0_91 = arith.constant 0 : index
    %c0_92 = arith.constant 0 : index
    %c0_93 = arith.constant 0 : index
    %87 = vector.load %arg14[%c0_91, %c0_92, %c0_93] : memref<3x4x4xf32, #tpu.memory_space<vmem>>, vector<1x4x4xf32>
    %88 = vector.shape_cast %87 : vector<1x4x4xf32> to vector<4x4xf32>
    %cst_94 = arith.constant dense<0.000000e+00> : vector<4x8xf32>
    %89 = tpu.matmul %80, %82, %cst_94 {dimension_numbers = #tpu.dot_dimension_numbers<[1], [0], [0], [1], [0, 0, 1, 1], [], []>} : vector<4x8xf32>, vector<8x8xf32>, vector<4x8xf32> -> vector<4x8xf32>
    %cst_95 = arith.constant dense<0.000000e+00> : vector<4x8xf32>
    %90 = tpu.matmul %88, %89, %cst_95 {dimension_numbers = #tpu.dot_dimension_numbers<[1], [0], [0], [1], [0, 0, 1, 1], [], []>} : vector<4x4xf32>, vector<4x8xf32>, vector<4x8xf32> -> vector<4x8xf32>
    %91 = arith.addf %86, %90 : vector<4x8xf32>
    %c1_96 = arith.constant 1 : index
    %c0_97 = arith.constant 0 : index
    %c0_98 = arith.constant 0 : index
    %92 = vector.load %arg6[%c1_96, %c0_97, %c0_98] : memref<3x8x8xf32, #tpu.memory_space<vmem>>, vector<1x8x8xf32>
    %93 = vector.shape_cast %92 : vector<1x8x8xf32> to vector<8x8xf32>
    %c1_99 = arith.constant 1 : index
    %c0_100 = arith.constant 0 : index
    %c0_101 = arith.constant 0 : index
    %94 = vector.load %arg13[%c1_99, %c0_100, %c0_101] : memref<3x4x4xf32, #tpu.memory_space<vmem>>, vector<1x4x4xf32>
    %95 = vector.shape_cast %94 : vector<1x4x4xf32> to vector<4x4xf32>
    %cst_102 = arith.constant dense<0.000000e+00> : vector<4x8xf32>
    %96 = tpu.matmul %54, %93, %cst_102 {dimension_numbers = #tpu.dot_dimension_numbers<[1], [0], [0], [1], [0, 0, 1, 1], [], []>} : vector<4x8xf32>, vector<8x8xf32>, vector<4x8xf32> -> vector<4x8xf32>
    %cst_103 = arith.constant dense<0.000000e+00> : vector<4x8xf32>
    %97 = tpu.matmul %95, %96, %cst_103 {dimension_numbers = #tpu.dot_dimension_numbers<[1], [0], [0], [1], [0, 0, 1, 1], [], []>} : vector<4x4xf32>, vector<4x8xf32>, vector<4x8xf32> -> vector<4x8xf32>
    %c1_104 = arith.constant 1 : index
    %c0_105 = arith.constant 0 : index
    %c0_106 = arith.constant 0 : index
    %98 = vector.load %arg14[%c1_104, %c0_105, %c0_106] : memref<3x4x4xf32, #tpu.memory_space<vmem>>, vector<1x4x4xf32>
    %99 = vector.shape_cast %98 : vector<1x4x4xf32> to vector<4x4xf32>
    %cst_107 = arith.constant dense<0.000000e+00> : vector<4x8xf32>
    %100 = tpu.matmul %80, %93, %cst_107 {dimension_numbers = #tpu.dot_dimension_numbers<[1], [0], [0], [1], [0, 0, 1, 1], [], []>} : vector<4x8xf32>, vector<8x8xf32>, vector<4x8xf32> -> vector<4x8xf32>
    %cst_108 = arith.constant dense<0.000000e+00> : vector<4x8xf32>
    %101 = tpu.matmul %99, %100, %cst_108 {dimension_numbers = #tpu.dot_dimension_numbers<[1], [0], [0], [1], [0, 0, 1, 1], [], []>} : vector<4x4xf32>, vector<4x8xf32>, vector<4x8xf32> -> vector<4x8xf32>
    %102 = arith.addf %97, %101 : vector<4x8xf32>
    %103 = arith.addf %91, %102 : vector<4x8xf32>
    %c2_109 = arith.constant 2 : index
    %c0_110 = arith.constant 0 : index
    %c0_111 = arith.constant 0 : index
    %104 = vector.load %arg6[%c2_109, %c0_110, %c0_111] : memref<3x8x8xf32, #tpu.memory_space<vmem>>, vector<1x8x8xf32>
    %105 = vector.shape_cast %104 : vector<1x8x8xf32> to vector<8x8xf32>
    %c2_112 = arith.constant 2 : index
    %c0_113 = arith.constant 0 : index
    %c0_114 = arith.constant 0 : index
    %106 = vector.load %arg13[%c2_112, %c0_113, %c0_114] : memref<3x4x4xf32, #tpu.memory_space<vmem>>, vector<1x4x4xf32>
    %107 = vector.shape_cast %106 : vector<1x4x4xf32> to vector<4x4xf32>
    %cst_115 = arith.constant dense<0.000000e+00> : vector<4x8xf32>
    %108 = tpu.matmul %54, %105, %cst_115 {dimension_numbers = #tpu.dot_dimension_numbers<[1], [0], [0], [1], [0, 0, 1, 1], [], []>} : vector<4x8xf32>, vector<8x8xf32>, vector<4x8xf32> -> vector<4x8xf32>
    %cst_116 = arith.constant dense<0.000000e+00> : vector<4x8xf32>
    %109 = tpu.matmul %107, %108, %cst_116 {dimension_numbers = #tpu.dot_dimension_numbers<[1], [0], [0], [1], [0, 0, 1, 1], [], []>} : vector<4x4xf32>, vector<4x8xf32>, vector<4x8xf32> -> vector<4x8xf32>
    %c2_117 = arith.constant 2 : index
    %c0_118 = arith.constant 0 : index
    %c0_119 = arith.constant 0 : index
    %110 = vector.load %arg14[%c2_117, %c0_118, %c0_119] : memref<3x4x4xf32, #tpu.memory_space<vmem>>, vector<1x4x4xf32>
    %111 = vector.shape_cast %110 : vector<1x4x4xf32> to vector<4x4xf32>
    %cst_120 = arith.constant dense<0.000000e+00> : vector<4x8xf32>
    %112 = tpu.matmul %80, %105, %cst_120 {dimension_numbers = #tpu.dot_dimension_numbers<[1], [0], [0], [1], [0, 0, 1, 1], [], []>} : vector<4x8xf32>, vector<8x8xf32>, vector<4x8xf32> -> vector<4x8xf32>
    %cst_121 = arith.constant dense<0.000000e+00> : vector<4x8xf32>
    %113 = tpu.matmul %111, %112, %cst_121 {dimension_numbers = #tpu.dot_dimension_numbers<[1], [0], [0], [1], [0, 0, 1, 1], [], []>} : vector<4x4xf32>, vector<4x8xf32>, vector<4x8xf32> -> vector<4x8xf32>
    %114 = arith.addf %109, %113 : vector<4x8xf32>
    %115 = arith.addf %103, %114 : vector<4x8xf32>
    %c0_122 = arith.constant 0 : index
    %c0_123 = arith.constant 0 : index
    %116 = vector.load %arg15[%c0_122, %c0_123] : memref<4x1xf32, #tpu.memory_space<vmem>>, vector<4x1xf32>
    %117 = vector.broadcast %116 : vector<4x1xf32> to vector<4x8xf32>
    %118 = arith.addf %115, %117 : vector<4x8xf32>
    %cst_124 = arith.constant 0.000000e+00 : f32
    %119 = vector.broadcast %cst_124 : f32 to vector<4x8xf32>
    %120 = arith.maximumf %118, %119 : vector<4x8xf32>
    %c0_125 = arith.constant 0 : index
    %c0_126 = arith.constant 0 : index
    %121 = vector.load %arg17[%c0_125, %c0_126] : memref<1x100xf32, #tpu.memory_space<vmem>>, vector<1x100xf32>
    %122 = vector.extract_strided_slice %120 {offsets = [0, 0], sizes = [1, 8], strides = [1, 1]} : vector<4x8xf32> to vector<1x8xf32>
    %c0_127 = arith.constant 0 : index
    %c0_128 = arith.constant 0 : index
    %c0_129 = arith.constant 0 : index
    %123 = vector.load %arg16[%c0_127, %c0_128, %c0_129] : memref<4x8x100xf32, #tpu.memory_space<vmem>>, vector<1x8x100xf32>
    %124 = vector.shape_cast %123 : vector<1x8x100xf32> to vector<8x100xf32>
    %cst_130 = arith.constant dense<0.000000e+00> : vector<1x100xf32>
    %125 = tpu.matmul %122, %124, %cst_130 {dimension_numbers = #tpu.dot_dimension_numbers<[1], [0], [0], [1], [0, 0, 1, 1], [], []>} : vector<1x8xf32>, vector<8x100xf32>, vector<1x100xf32> -> vector<1x100xf32>
    %126 = arith.addf %121, %125 : vector<1x100xf32>
    %127 = vector.extract_strided_slice %120 {offsets = [1, 0], sizes = [1, 8], strides = [1, 1]} : vector<4x8xf32> to vector<1x8xf32>
    %c1_131 = arith.constant 1 : index
    %c0_132 = arith.constant 0 : index
    %c0_133 = arith.constant 0 : index
    %128 = vector.load %arg16[%c1_131, %c0_132, %c0_133] : memref<4x8x100xf32, #tpu.memory_space<vmem>>, vector<1x8x100xf32>
    %129 = vector.shape_cast %128 : vector<1x8x100xf32> to vector<8x100xf32>
    %cst_134 = arith.constant dense<0.000000e+00> : vector<1x100xf32>
    %130 = tpu.matmul %127, %129, %cst_134 {dimension_numbers = #tpu.dot_dimension_numbers<[1], [0], [0], [1], [0, 0, 1, 1], [], []>} : vector<1x8xf32>, vector<8x100xf32>, vector<1x100xf32> -> vector<1x100xf32>
    %131 = arith.addf %126, %130 : vector<1x100xf32>
    %132 = vector.extract_strided_slice %120 {offsets = [2, 0], sizes = [1, 8], strides = [1, 1]} : vector<4x8xf32> to vector<1x8xf32>
    %c2_135 = arith.constant 2 : index
    %c0_136 = arith.constant 0 : index
    %c0_137 = arith.constant 0 : index
    %133 = vector.load %arg16[%c2_135, %c0_136, %c0_137] : memref<4x8x100xf32, #tpu.memory_space<vmem>>, vector<1x8x100xf32>
    %134 = vector.shape_cast %133 : vector<1x8x100xf32> to vector<8x100xf32>
    %cst_138 = arith.constant dense<0.000000e+00> : vector<1x100xf32>
    %135 = tpu.matmul %132, %134, %cst_138 {dimension_numbers = #tpu.dot_dimension_numbers<[1], [0], [0], [1], [0, 0, 1, 1], [], []>} : vector<1x8xf32>, vector<8x100xf32>, vector<1x100xf32> -> vector<1x100xf32>
    %136 = arith.addf %131, %135 : vector<1x100xf32>
    %137 = vector.extract_strided_slice %120 {offsets = [3, 0], sizes = [1, 8], strides = [1, 1]} : vector<4x8xf32> to vector<1x8xf32>
    %c3 = arith.constant 3 : index
    %c0_139 = arith.constant 0 : index
    %c0_140 = arith.constant 0 : index
    %138 = vector.load %arg16[%c3, %c0_139, %c0_140] : memref<4x8x100xf32, #tpu.memory_space<vmem>>, vector<1x8x100xf32>
    %139 = vector.shape_cast %138 : vector<1x8x100xf32> to vector<8x100xf32>
    %cst_141 = arith.constant dense<0.000000e+00> : vector<1x100xf32>
    %140 = tpu.matmul %137, %139, %cst_141 {dimension_numbers = #tpu.dot_dimension_numbers<[1], [0], [0], [1], [0, 0, 1, 1], [], []>} : vector<1x8xf32>, vector<8x100xf32>, vector<1x100xf32> -> vector<1x100xf32>
    %141 = arith.addf %136, %140 : vector<1x100xf32>
    %cst_142 = arith.constant 0.000000e+00 : f32
    %142 = vector.broadcast %cst_142 : f32 to vector<1x100xf32>
    %143 = arith.maximumf %141, %142 : vector<1x100xf32>
    %c0_143 = arith.constant 0 : index
    %c0_144 = arith.constant 0 : index
    %144 = vector.load %arg19[%c0_143, %c0_144] : memref<4x8xf32, #tpu.memory_space<vmem>>, vector<4x8xf32>
    %c0_145 = arith.constant 0 : index
    %c0_146 = arith.constant 0 : index
    %c0_147 = arith.constant 0 : index
    %145 = vector.load %arg18[%c0_145, %c0_146, %c0_147] : memref<4x100x8xf32, #tpu.memory_space<vmem>>, vector<1x100x8xf32>
    %146 = vector.shape_cast %145 : vector<1x100x8xf32> to vector<100x8xf32>
    %cst_148 = arith.constant dense<0.000000e+00> : vector<1x8xf32>
    %147 = tpu.matmul %143, %146, %cst_148 {dimension_numbers = #tpu.dot_dimension_numbers<[1], [0], [0], [1], [0, 0, 1, 1], [], []>} : vector<1x100xf32>, vector<100x8xf32>, vector<1x8xf32> -> vector<1x8xf32>
    %148 = vector.extract_strided_slice %144 {offsets = [0, 0], sizes = [1, 8], strides = [1, 1]} : vector<4x8xf32> to vector<1x8xf32>
    %149 = arith.addf %147, %148 : vector<1x8xf32>
    %c0_149 = arith.constant 0 : index
    %c0_150 = arith.constant 0 : index
    %c0_151 = arith.constant 0 : index
    %150 = vector.load %arg20[%c0_149, %c0_150, %c0_151] : memref<1x4x8xf32, #tpu.memory_space<vmem>>, vector<1x1x8xf32>
    %151 = vector.shape_cast %150 : vector<1x1x8xf32> to vector<1x8xf32>
    %152 = vector.shape_cast %149 : vector<1x8xf32> to vector<1x1x8xf32>
    tpu.vector_store %arg20[%c0_149, %c0_150, %c0_151], %152 {strides = array<i32>} : memref<1x4x8xf32, #tpu.memory_space<vmem>>, vector<1x1x8xf32>,
    %c1_152 = arith.constant 1 : index
    %c0_153 = arith.constant 0 : index
    %c0_154 = arith.constant 0 : index
    %153 = vector.load %arg18[%c1_152, %c0_153, %c0_154] : memref<4x100x8xf32, #tpu.memory_space<vmem>>, vector<1x100x8xf32>
    %154 = vector.shape_cast %153 : vector<1x100x8xf32> to vector<100x8xf32>
    %cst_155 = arith.constant dense<0.000000e+00> : vector<1x8xf32>
    %155 = tpu.matmul %143, %154, %cst_155 {dimension_numbers = #tpu.dot_dimension_numbers<[1], [0], [0], [1], [0, 0, 1, 1], [], []>} : vector<1x100xf32>, vector<100x8xf32>, vector<1x8xf32> -> vector<1x8xf32>
    %156 = vector.extract_strided_slice %144 {offsets = [1, 0], sizes = [1, 8], strides = [1, 1]} : vector<4x8xf32> to vector<1x8xf32>
    %157 = arith.addf %155, %156 : vector<1x8xf32>
    %c0_156 = arith.constant 0 : index
    %c1_157 = arith.constant 1 : index
    %c0_158 = arith.constant 0 : index
    %158 = vector.load %arg20[%c0_156, %c1_157, %c0_158] : memref<1x4x8xf32, #tpu.memory_space<vmem>>, vector<1x1x8xf32>
    %159 = vector.shape_cast %158 : vector<1x1x8xf32> to vector<1x8xf32>
    %160 = vector.shape_cast %157 : vector<1x8xf32> to vector<1x1x8xf32>
    tpu.vector_store %arg20[%c0_156, %c1_157, %c0_158], %160 {strides = array<i32>} : memref<1x4x8xf32, #tpu.memory_space<vmem>>, vector<1x1x8xf32>,
    %c2_159 = arith.constant 2 : index
    %c0_160 = arith.constant 0 : index
    %c0_161 = arith.constant 0 : index
    %161 = vector.load %arg18[%c2_159, %c0_160, %c0_161] : memref<4x100x8xf32, #tpu.memory_space<vmem>>, vector<1x100x8xf32>
    %162 = vector.shape_cast %161 : vector<1x100x8xf32> to vector<100x8xf32>
    %cst_162 = arith.constant dense<0.000000e+00> : vector<1x8xf32>
    %163 = tpu.matmul %143, %162, %cst_162 {dimension_numbers = #tpu.dot_dimension_numbers<[1], [0], [0], [1], [0, 0, 1, 1], [], []>} : vector<1x100xf32>, vector<100x8xf32>, vector<1x8xf32> -> vector<1x8xf32>
    %164 = vector.extract_strided_slice %144 {offsets = [2, 0], sizes = [1, 8], strides = [1, 1]} : vector<4x8xf32> to vector<1x8xf32>
    %165 = arith.addf %163, %164 : vector<1x8xf32>
    %c0_163 = arith.constant 0 : index
    %c2_164 = arith.constant 2 : index
    %c0_165 = arith.constant 0 : index
    %166 = vector.load %arg20[%c0_163, %c2_164, %c0_165] : memref<1x4x8xf32, #tpu.memory_space<vmem>>, vector<1x1x8xf32>
    %167 = vector.shape_cast %166 : vector<1x1x8xf32> to vector<1x8xf32>
    %168 = vector.shape_cast %165 : vector<1x8xf32> to vector<1x1x8xf32>
    tpu.vector_store %arg20[%c0_163, %c2_164, %c0_165], %168 {strides = array<i32>} : memref<1x4x8xf32, #tpu.memory_space<vmem>>, vector<1x1x8xf32>,
    %c3_166 = arith.constant 3 : index
    %c0_167 = arith.constant 0 : index
    %c0_168 = arith.constant 0 : index
    %169 = vector.load %arg18[%c3_166, %c0_167, %c0_168] : memref<4x100x8xf32, #tpu.memory_space<vmem>>, vector<1x100x8xf32>
    %170 = vector.shape_cast %169 : vector<1x100x8xf32> to vector<100x8xf32>
    %cst_169 = arith.constant dense<0.000000e+00> : vector<1x8xf32>
    %171 = tpu.matmul %143, %170, %cst_169 {dimension_numbers = #tpu.dot_dimension_numbers<[1], [0], [0], [1], [0, 0, 1, 1], [], []>} : vector<1x100xf32>, vector<100x8xf32>, vector<1x8xf32> -> vector<1x8xf32>
    %172 = vector.extract_strided_slice %144 {offsets = [3, 0], sizes = [1, 8], strides = [1, 1]} : vector<4x8xf32> to vector<1x8xf32>
    %173 = arith.addf %171, %172 : vector<1x8xf32>
    %c0_170 = arith.constant 0 : index
    %c3_171 = arith.constant 3 : index
    %c0_172 = arith.constant 0 : index
    %174 = vector.load %arg20[%c0_170, %c3_171, %c0_172] : memref<1x4x8xf32, #tpu.memory_space<vmem>>, vector<1x1x8xf32>
    %175 = vector.shape_cast %174 : vector<1x1x8xf32> to vector<1x8xf32>
    %176 = vector.shape_cast %173 : vector<1x8xf32> to vector<1x1x8xf32>
    tpu.vector_store %arg20[%c0_170, %c3_171, %c0_172], %176 {strides = array<i32>} : memref<1x4x8xf32, #tpu.memory_space<vmem>>, vector<1x1x8xf32>,
    return
  }
  func.func @transform_0(%arg0: i32) -> (i32, i32, i32) {
    %c0_i32 = arith.constant 0 : i32
    %c0_i32_0 = arith.constant 0 : i32
    %c0_i32_1 = arith.constant 0 : i32
    return %arg0, %c0_i32, %c0_i32_0 : i32, i32, i32
  }
  func.func @transform_1(%arg0: i32) -> (i32, i32, i32) {
    %c0_i32 = arith.constant 0 : i32
    %c0_i32_0 = arith.constant 0 : i32
    %c0_i32_1 = arith.constant 0 : i32
    return %arg0, %c0_i32, %c0_i32_0 : i32, i32, i32
  }
  func.func @transform_2(%arg0: i32) -> (i32, i32, i32) {
    %c0_i32 = arith.constant 0 : i32
    %c0_i32_0 = arith.constant 0 : i32
    %c0_i32_1 = arith.constant 0 : i32
    %c0_i32_2 = arith.constant 0 : i32
    return %c0_i32, %c0_i32_0, %c0_i32_1 : i32, i32, i32
  }
  func.func @transform_3(%arg0: i32) -> (i32, i32, i32) {
    %c0_i32 = arith.constant 0 : i32
    %c0_i32_0 = arith.constant 0 : i32
    %c0_i32_1 = arith.constant 0 : i32
    %c0_i32_2 = arith.constant 0 : i32
    return %c0_i32, %c0_i32_0, %c0_i32_1 : i32, i32, i32
  }
  func.func @transform_4(%arg0: i32) -> (i32, i32, i32) {
    %c0_i32 = arith.constant 0 : i32
    %c0_i32_0 = arith.constant 0 : i32
    %c0_i32_1 = arith.constant 0 : i32
    %c0_i32_2 = arith.constant 0 : i32
    return %c0_i32, %c0_i32_0, %c0_i32_1 : i32, i32, i32
  }
  func.func @transform_5(%arg0: i32) -> (i32, i32, i32) {
    %c0_i32 = arith.constant 0 : i32
    %c0_i32_0 = arith.constant 0 : i32
    %c0_i32_1 = arith.constant 0 : i32
    %c0_i32_2 = arith.constant 0 : i32
    return %c0_i32, %c0_i32_0, %c0_i32_1 : i32, i32, i32
  }
  func.func @transform_6(%arg0: i32) -> (i32, i32, i32) {
    %c0_i32 = arith.constant 0 : i32
    %c0_i32_0 = arith.constant 0 : i32
    %c0_i32_1 = arith.constant 0 : i32
    %c0_i32_2 = arith.constant 0 : i32
    return %c0_i32, %c0_i32_0, %c0_i32_1 : i32, i32, i32
  }
  func.func @transform_7(%arg0: i32) -> (i32, i32) {
    %c0_i32 = arith.constant 0 : i32
    %c0_i32_0 = arith.constant 0 : i32
    %c0_i32_1 = arith.constant 0 : i32
    return %c0_i32, %c0_i32_0 : i32, i32
  }
  func.func @transform_8(%arg0: i32) -> (i32, i32, i32) {
    %c0_i32 = arith.constant 0 : i32
    %c0_i32_0 = arith.constant 0 : i32
    %c0_i32_1 = arith.constant 0 : i32
    %c0_i32_2 = arith.constant 0 : i32
    return %c0_i32, %c0_i32_0, %c0_i32_1 : i32, i32, i32
  }
  func.func @transform_9(%arg0: i32) -> (i32, i32) {
    %c0_i32 = arith.constant 0 : i32
    %c0_i32_0 = arith.constant 0 : i32
    %c0_i32_1 = arith.constant 0 : i32
    return %c0_i32, %c0_i32_0 : i32, i32
  }
  func.func @transform_10(%arg0: i32) -> (i32, i32, i32) {
    %c0_i32 = arith.constant 0 : i32
    %c0_i32_0 = arith.constant 0 : i32
    %c0_i32_1 = arith.constant 0 : i32
    %c0_i32_2 = arith.constant 0 : i32
    return %c0_i32, %c0_i32_0, %c0_i32_1 : i32, i32, i32
  }
  func.func @transform_11(%arg0: i32) -> (i32, i32) {
    %c0_i32 = arith.constant 0 : i32
    %c0_i32_0 = arith.constant 0 : i32
    %c0_i32_1 = arith.constant 0 : i32
    return %c0_i32, %c0_i32_0 : i32, i32
  }
  func.func @transform_12(%arg0: i32) -> (i32, i32, i32) {
    %c0_i32 = arith.constant 0 : i32
    %c0_i32_0 = arith.constant 0 : i32
    %c0_i32_1 = arith.constant 0 : i32
    %c0_i32_2 = arith.constant 0 : i32
    return %c0_i32, %c0_i32_0, %c0_i32_1 : i32, i32, i32
  }
  func.func @transform_13(%arg0: i32) -> (i32, i32, i32) {
    %c0_i32 = arith.constant 0 : i32
    %c0_i32_0 = arith.constant 0 : i32
    %c0_i32_1 = arith.constant 0 : i32
    %c0_i32_2 = arith.constant 0 : i32
    return %c0_i32, %c0_i32_0, %c0_i32_1 : i32, i32, i32
  }
  func.func @transform_14(%arg0: i32) -> (i32, i32) {
    %c0_i32 = arith.constant 0 : i32
    %c0_i32_0 = arith.constant 0 : i32
    %c0_i32_1 = arith.constant 0 : i32
    return %c0_i32, %c0_i32_0 : i32, i32
  }
  func.func @transform_15(%arg0: i32) -> (i32, i32, i32) {
    %c0_i32 = arith.constant 0 : i32
    %c0_i32_0 = arith.constant 0 : i32
    %c0_i32_1 = arith.constant 0 : i32
    %c0_i32_2 = arith.constant 0 : i32
    return %c0_i32, %c0_i32_0, %c0_i32_1 : i32, i32, i32
  }
  func.func @transform_16(%arg0: i32) -> (i32, i32) {
    %c0_i32 = arith.constant 0 : i32
    %c0_i32_0 = arith.constant 0 : i32
    %c0_i32_1 = arith.constant 0 : i32
    return %c0_i32, %c0_i32_0 : i32, i32
  }
  func.func @transform_17(%arg0: i32) -> (i32, i32, i32) {
    %c0_i32 = arith.constant 0 : i32
    %c0_i32_0 = arith.constant 0 : i32
    %c0_i32_1 = arith.constant 0 : i32
    %c0_i32_2 = arith.constant 0 : i32
    return %c0_i32, %c0_i32_0, %c0_i32_1 : i32, i32, i32
  }
  func.func @transform_18(%arg0: i32) -> (i32, i32) {
    %c0_i32 = arith.constant 0 : i32
    %c0_i32_0 = arith.constant 0 : i32
    %c0_i32_1 = arith.constant 0 : i32
    return %c0_i32, %c0_i32_0 : i32, i32
  }
  func.func @transform_19(%arg0: i32) -> (i32, i32, i32) {
    %c0_i32 = arith.constant 0 : i32
    %c0_i32_0 = arith.constant 0 : i32
    %c0_i32_1 = arith.constant 0 : i32
    return %arg0, %c0_i32, %c0_i32_0 : i32, i32, i32
  }
}

</mosaic_0001>

<llo_original>
// kernel: _lambda_.1
$region0: #{_lambda_.1}
  #allocation0 [shape = 'u32[]', space=smem, size = 0x4, offset = 0x4, fixed_abs, tag = 'smem constant byte address 0x4 - core index']
  #allocation1 [shape = 'u32[144,128]{1,0:T(1,128)}', space=vmem, size = 0x12000, scoped, tag = 'internal scratch']
  %s0 = inlined_call_operand.hbm [shape: f32[2,8,16], index: 0, kind: input, shape index: {}]
  %s1 = inlined_call_operand.hbm [shape: f32[2,4,8], index: 1, kind: input, shape index: {}]
  %s2 = inlined_call_operand.hbm [shape: f32[3,16,16], index: 2, kind: input, shape index: {}]
  %s3 = inlined_call_operand.hbm [shape: f32[3,16,8], index: 3, kind: input, shape index: {}]
  %s4 = inlined_call_operand.hbm [shape: f32[3,8,8], index: 4, kind: input, shape index: {}, may-alias: {4,5}]
  %s5 = inlined_call_operand.hbm [shape: f32[3,8,8], index: 5, kind: input, shape index: {}, may-alias: {4,5}]
  %s6 = inlined_call_operand.hbm [shape: f32[3,8,8], index: 6, kind: input, shape index: {}]
  %s7 = inlined_call_operand.hbm [shape: f32[8,1], index: 7, kind: input, shape index: {}]
  %s8 = inlined_call_operand.hbm [shape: f32[3,4,8], index: 8, kind: input, shape index: {}]
  %s9 = inlined_call_operand.hbm [shape: f32[4,1], index: 9, kind: input, shape index: {}]
  %s10 = inlined_call_operand.hbm [shape: f32[3,4,4], index: 10, kind: input, shape index: {}]
  %s11 = inlined_call_operand.hbm [shape: f32[4,1], index: 11, kind: input, shape index: {}]
  %s12 = inlined_call_operand.vmem [shape: f32[3,4,4], index: 12, kind: input, shape index: {}]
  %s13 = inlined_call_operand.vmem [shape: f32[3,4,4], index: 13, kind: input, shape index: {}]
  %s14 = inlined_call_operand.hbm [shape: f32[4,1], index: 14, kind: input, shape index: {}]
  %s15 = inlined_call_operand.hbm [shape: f32[4,8,100], index: 15, kind: input, shape index: {}]
  %s16 = inlined_call_operand.vmem [shape: f32[1,100], index: 16, kind: input, shape index: {}]
  %s17 = inlined_call_operand.hbm [shape: f32[4,100,8], index: 17, kind: input, shape index: {}]
  %s18 = inlined_call_operand.hbm [shape: f32[4,8], index: 18, kind: input, shape index: {}]
  %s19 = inlined_call_operand.hbm [shape: f32[2,4,8], index: 19, kind: output, shape index: {}]
  %s20 = sld [smem:[#allocation0]]
  $region173: #{_lambda_.1} parent=0
    _
  %s22 = ssub.s32 1, %s20
  %s23 = scalar_select 0, %s22, %s20
  $region1: #{_lambda_.1} parent=0
    #allocation2 [shape = 'u8[8192]{0}', space=vmem, size = 0x2000, scoped, tag = 'input window, operand 0']
    #allocation3 [shape = 's32[2]{0}', space=sflag, size = 0x8, scoped, tag = 'scoped memory for _lambda_.1']
    #allocation4 [shape = 's32[2]{0}', space=sflag, size = 0x8, scoped, tag = 'scoped memory for _lambda_.1']
    #allocation5 [shape = 'u8[4096]{0}', space=vmem, size = 0x1000, scoped, tag = 'input window, operand 1']
    #allocation6 [shape = 's32[2]{0}', space=sflag, size = 0x8, scoped, tag = 'scoped memory for _lambda_.1']
    #allocation7 [shape = 'u8[24576]{0}', space=vmem, size = 0x6000, scoped, tag = 'input window, operand 2, single buffered']
    #allocation8 [shape = 'u8[24576]{0}', space=vmem, size = 0x6000, scoped, tag = 'input window, operand 3, single buffered']
    #allocation9 [shape = 's32[1]{0}', space=sflag, size = 0x4, scoped, tag = 'scoped memory for _lambda_.1']
    #allocation10 [shape = 'u8[12288]{0}', space=vmem, size = 0x3000, scoped, tag = 'input window, operand 4, single buffered']
    #allocation11 [shape = 'u8[12288]{0}', space=vmem, size = 0x3000, scoped, tag = 'input window, operand 5, single buffered']
    #allocation12 [shape = 's32[1]{0}', space=sflag, size = 0x4, scoped, tag = 'scoped memory for _lambda_.1']
    #allocation13 [shape = 'u8[12288]{0}', space=vmem, size = 0x3000, scoped, tag = 'input window, operand 6, single buffered']
    #allocation14 [shape = 'u8[4096]{0}', space=vmem, size = 0x1000, scoped, tag = 'input window, operand 7, single buffered']
    #allocation15 [shape = 's32[1]{0}', space=sflag, size = 0x4, scoped, tag = 'scoped memory for _lambda_.1']
    #allocation16 [shape = 'u8[6144]{0}', space=vmem, size = 0x1800, scoped, tag = 'input window, operand 8, single buffered']
    #allocation17 [shape = 'u8[2048]{0}', space=vmem, size = 0x800, scoped, tag = 'input window, operand 9, single buffered']
    #allocation18 [shape = 's32[1]{0}', space=sflag, size = 0x4, scoped, tag = 'scoped memory for _lambda_.1']
    #allocation19 [shape = 'u8[6144]{0}', space=vmem, size = 0x1800, scoped, tag = 'input window, operand 10, single buffered']
    #allocation20 [shape = 'u8[2048]{0}', space=vmem, size = 0x800, scoped, tag = 'input window, operand 11, single buffered']
    #allocation21 [shape = 's32[1]{0}', space=sflag, size = 0x4, scoped, tag = 'scoped memory for _lambda_.1']
    #allocation22 [shape = 'u8[2048]{0}', space=vmem, size = 0x800, scoped, tag = 'input window, operand 14, single buffered']
    #allocation23 [shape = 'u8[16384]{0}', space=vmem, size = 0x4000, scoped, tag = 'input window, operand 15, single buffered']
    #allocation24 [shape = 's32[1]{0}', space=sflag, size = 0x4, scoped, tag = 'scoped memory for _lambda_.1']
    #allocation25 [shape = 'u8[212992]{0}', space=vmem, size = 0x34000, scoped, tag = 'input window, operand 17, single buffered']
    #allocation26 [shape = 'u8[2048]{0}', space=vmem, size = 0x800, scoped, tag = 'input window, operand 18, single buffered']
    #allocation27 [shape = 's32[1]{0}', space=sflag, size = 0x4, scoped, tag = 'scoped memory for _lambda_.1']
    #allocation28 [shape = 'u8[4096]{0}', space=vmem, size = 0x1000, scoped, tag = 'output window, operand 0']
    %24 = vsyncpa [#allocation3], 0
    %s25 = scalar_lea.sflag [#allocation3], 1
    %26 = vsyncpa %s25, 0
    %27 = vsyncpa [#allocation6], 0
    %s28 = scalar_lea.sflag [#allocation6], 1
    %29 = vsyncpa %s28, 0
    %30 = vsyncpa [#allocation9], 0
    %31 = vsyncpa [#allocation12], 0
    %32 = vsyncpa [#allocation15], 0
    %33 = vsyncpa [#allocation18], 0
    %34 = vsyncpa [#allocation21], 0
    %35 = vsyncpa [#allocation24], 0
    %36 = vsyncpa [#allocation27], 0
    %37 = vsyncpa [#allocation4], 0
    %s38 = scalar_lea.sflag [#allocation4], 1
    %39 = vsyncpa %s38, 0
    loop: start=0, step=1, limit=4
    $region2: #{_lambda_.1} parent=1 // loop_pre_header
      _
    $region3: #{_lambda_.1} parent=1 // loop_header
      %s41 = sphi 0, %s45
      %p42 = scmp.ge.s32.totalorder %s41, 4
      %s51 = sphi 0, %s53
      %s54 = sphi 0, %s51
      %s55 = sphi 0, %s54
      %s71 = sphi 0, %s55
      %s77 = sphi 0, %s79
      %s80 = sphi 0, %s77
      %s81 = sphi 0, %s80
      %s97 = sphi 0, %s81
      %s101 = sphi 0, %s101
      %s103 = sphi 0, %s101
      %s104 = sphi 0, %s103
      %s118 = sphi 0, %s104
      %s122 = sphi 0, %s122
      %s124 = sphi 0, %s122
      %s125 = sphi 0, %s124
      %s139 = sphi 0, %s125
      %s143 = sphi 0, %s143
      %s145 = sphi 0, %s143
      %s146 = sphi 0, %s145
      %s160 = sphi 0, %s146
      %s164 = sphi 0, %s164
      %s166 = sphi 0, %s164
      %s167 = sphi 0, %s166
      %s181 = sphi 0, %s167
      %s185 = sphi 0, %s185
      %s187 = sphi 0, %s185
      %s188 = sphi 0, %s187
      %s202 = sphi 0, %s188
      %s206 = sphi 0, %s206
      %s208 = sphi 0, %s206
      %s209 = sphi 0, %s208
      %s223 = sphi 0, %s209
      %s227 = sphi 0, %s227
      %s229 = sphi 0, %s227
      %s230 = sphi 0, %s229
      %s244 = sphi 0, %s230
      %s248 = sphi 0, %s248
      %s250 = sphi 0, %s248
      %s251 = sphi 0, %s250
      %s265 = sphi 0, %s251
      %s269 = sphi 0, %s269
      %s271 = sphi 0, %s269
      %s272 = sphi 0, %s271
      %s286 = sphi 0, %s272
      %s290 = sphi 0, %s290
      %s292 = sphi 0, %s290
      %s293 = sphi 0, %s292
      %s307 = sphi 0, %s293
      %s311 = sphi 0, %s311
      %s313 = sphi 0, %s311
      %s314 = sphi 0, %s313
      %s328 = sphi 0, %s314
      %s332 = sphi 0, %s332
      %s334 = sphi 0, %s332
      %s335 = sphi 0, %s334
      %s349 = sphi 0, %s335
      %s353 = sphi 0, %s353
      %s355 = sphi 0, %s353
      %s356 = sphi 0, %s355
      %s370 = sphi 0, %s356
      %s374 = sphi 0, %s374
      %s376 = sphi 0, %s374
      %s377 = sphi 0, %s376
      %s391 = sphi 0, %s377
      %s395 = sphi 0, %s395
      %s397 = sphi 0, %s395
      %s398 = sphi 0, %s397
      %s412 = sphi 0, %s398
      %s416 = sphi 0, %s416
      %s418 = sphi 0, %s416
      %s419 = sphi 0, %s418
      %s433 = sphi 0, %s419
      %s437 = sphi 0, %s437
      %s439 = sphi 0, %s437
      %s440 = sphi 0, %s439
      %s454 = sphi 0, %s440
      %s460 = sphi 0, %s462
      %s463 = sphi 0, %s460
      %s464 = sphi 0, %s463
      %s480 = sphi 0, %s464
    $region4: #{_lambda_.1} parent=1 // loop_header_branch
      %44 = sbr.rel (%p42) target = $region8
    $region5: #{_lambda_.1} parent=1 // loop_body
      %s46 = ssub.s32 %s41, 1
      %s47 = ssub.s32 %s41, 2
      %s48 = sadd.s32 %s41, 1
      %s49 = ssub.s32 %s41, %s48
      %p50 = scmp.eq.s32.totalorder %s49, 0
      %s52 = sadd.s32 %s51, 1
      %s53 = scalar_select %p50, %s51, %s52
      %p56 = pneg %p50
      %p57 = scmp.eq.s32.totalorder %s41, 1
      %p58 = por %p56, %p57
      %p59 = scmp.ne.s32.totalorder %s51, %s54
      %p60 = scmp.eq.s32.totalorder %s41, 0
      %p61 = por %p59, %p60
      %p62 = scmp.ne.s32.totalorder %s51, %s54
      %p63 = scmp.eq.s32.totalorder %s46, 1
      %p64 = por %p62, %p63
      %p65 = scmp.ne.s32.totalorder %s54, %s55
      %p66 = scmp.eq.s32.totalorder %s46, 0
      %p67 = por %p65, %p66
      %p68 = scmp.ne.s32.totalorder %s54, %s55
      %p69 = scmp.eq.s32.totalorder %s47, 1
      %p70 = por %p68, %p69
      %p72 = scmp.ne.s32.totalorder %s55, %s71
      %p73 = scmp.eq.s32.totalorder %s47, 0
      %p74 = por %p72, %p73
      %s75 = ssub.s32 %s41, %s48
      %p76 = scmp.eq.s32.totalorder %s75, 0
      %s78 = sadd.s32 %s77, 1
      %s79 = scalar_select %p76, %s77, %s78
      %p82 = pneg %p76
      %p83 = scmp.eq.s32.totalorder %s41, 1
      %p84 = por %p82, %p83
      %p85 = scmp.ne.s32.totalorder %s77, %s80
      %p86 = scmp.eq.s32.totalorder %s41, 0
      %p87 = por %p85, %p86
      %p88 = scmp.ne.s32.totalorder %s77, %s80
      %p89 = scmp.eq.s32.totalorder %s46, 1
      %p90 = por %p88, %p89
      %p91 = scmp.ne.s32.totalorder %s80, %s81
      %p92 = scmp.eq.s32.totalorder %s46, 0
      %p93 = por %p91, %p92
      %p94 = scmp.ne.s32.totalorder %s80, %s81
      %p95 = scmp.eq.s32.totalorder %s47, 1
      %p96 = por %p94, %p95
      %p98 = scmp.ne.s32.totalorder %s81, %s97
      %p99 = scmp.eq.s32.totalorder %s47, 0
      %p100 = por %p98, %p99
      %s102 = sadd.s32 %s101, 1
      %p105 = scmp.eq.s32.totalorder %s41, 1
      %p106 = scmp.ne.s32.totalorder %s101, %s103
      %p107 = scmp.eq.s32.totalorder %s41, 0
      %p108 = por %p106, %p107
      %p109 = scmp.ne.s32.totalorder %s101, %s103
      %p110 = scmp.eq.s32.totalorder %s46, 1
      %p111 = por %p109, %p110
      %p112 = scmp.ne.s32.totalorder %s103, %s104
      %p113 = scmp.eq.s32.totalorder %s46, 0
      %p114 = por %p112, %p113
      %p115 = scmp.ne.s32.totalorder %s103, %s104
      %p116 = scmp.eq.s32.totalorder %s47, 1
      %p117 = por %p115, %p116
      %p119 = scmp.ne.s32.totalorder %s104, %s118
      %p120 = scmp.eq.s32.totalorder %s47, 0
      %p121 = por %p119, %p120
      %s123 = sadd.s32 %s122, 1
      %p126 = scmp.eq.s32.totalorder %s41, 1
      %p127 = scmp.ne.s32.totalorder %s122, %s124
      %p128 = scmp.eq.s32.totalorder %s41, 0
      %p129 = por %p127, %p128
      %p130 = scmp.ne.s32.totalorder %s122, %s124
      %p131 = scmp.eq.s32.totalorder %s46, 1
      %p132 = por %p130, %p131
      %p133 = scmp.ne.s32.totalorder %s124, %s125
      %p134 = scmp.eq.s32.totalorder %s46, 0
      %p135 = por %p133, %p134
      %p136 = scmp.ne.s32.totalorder %s124, %s125
      %p137 = scmp.eq.s32.totalorder %s47, 1
      %p138 = por %p136, %p137
      %p140 = scmp.ne.s32.totalorder %s125, %s139
      %p141 = scmp.eq.s32.totalorder %s47, 0
      %p142 = por %p140, %p141
      %s144 = sadd.s32 %s143, 1
      %p147 = scmp.eq.s32.totalorder %s41, 1
      %p148 = scmp.ne.s32.totalorder %s143, %s145
      %p149 = scmp.eq.s32.totalorder %s41, 0
      %p150 = por %p148, %p149
      %p151 = scmp.ne.s32.totalorder %s143, %s145
      %p152 = scmp.eq.s32.totalorder %s46, 1
      %p153 = por %p151, %p152
      %p154 = scmp.ne.s32.totalorder %s145, %s146
      %p155 = scmp.eq.s32.totalorder %s46, 0
      %p156 = por %p154, %p155
      %p157 = scmp.ne.s32.totalorder %s145, %s146
      %p158 = scmp.eq.s32.totalorder %s47, 1
      %p159 = por %p157, %p158
      %p161 = scmp.ne.s32.totalorder %s146, %s160
      %p162 = scmp.eq.s32.totalorder %s47, 0
      %p163 = por %p161, %p162
      %s165 = sadd.s32 %s164, 1
      %p168 = scmp.eq.s32.totalorder %s41, 1
      %p169 = scmp.ne.s32.totalorder %s164, %s166
      %p170 = scmp.eq.s32.totalorder %s41, 0
      %p171 = por %p169, %p170
      %p172 = scmp.ne.s32.totalorder %s164, %s166
      %p173 = scmp.eq.s32.totalorder %s46, 1
      %p174 = por %p172, %p173
      %p175 = scmp.ne.s32.totalorder %s166, %s167
      %p176 = scmp.eq.s32.totalorder %s46, 0
      %p177 = por %p175, %p176
      %p178 = scmp.ne.s32.totalorder %s166, %s167
      %p179 = scmp.eq.s32.totalorder %s47, 1
      %p180 = por %p178, %p179
      %p182 = scmp.ne.s32.totalorder %s167, %s181
      %p183 = scmp.eq.s32.totalorder %s47, 0
      %p184 = por %p182, %p183
      %s186 = sadd.s32 %s185, 1
      %p189 = scmp.eq.s32.totalorder %s41, 1
      %p190 = scmp.ne.s32.totalorder %s185, %s187
      %p191 = scmp.eq.s32.totalorder %s41, 0
      %p192 = por %p190, %p191
      %p193 = scmp.ne.s32.totalorder %s185, %s187
      %p194 = scmp.eq.s32.totalorder %s46, 1
      %p195 = por %p193, %p194
      %p196 = scmp.ne.s32.totalorder %s187, %s188
      %p197 = scmp.eq.s32.totalorder %s46, 0
      %p198 = por %p196, %p197
      %p199 = scmp.ne.s32.totalorder %s187, %s188
      %p200 = scmp.eq.s32.totalorder %s47, 1
      %p201 = por %p199, %p200
      %p203 = scmp.ne.s32.totalorder %s188, %s202
      %p204 = scmp.eq.s32.totalorder %s47, 0
      %p205 = por %p203, %p204
      %s207 = sadd.s32 %s206, 1
      %p210 = scmp.eq.s32.totalorder %s41, 1
      %p211 = scmp.ne.s32.totalorder %s206, %s208
      %p212 = scmp.eq.s32.totalorder %s41, 0
      %p213 = por %p211, %p212
      %p214 = scmp.ne.s32.totalorder %s206, %s208
      %p215 = scmp.eq.s32.totalorder %s46, 1
      %p216 = por %p214, %p215
      %p217 = scmp.ne.s32.totalorder %s208, %s209
      %p218 = scmp.eq.s32.totalorder %s46, 0
      %p219 = por %p217, %p218
      %p220 = scmp.ne.s32.totalorder %s208, %s209
      %p221 = scmp.eq.s32.totalorder %s47, 1
      %p222 = por %p220, %p221
      %p224 = scmp.ne.s32.totalorder %s209, %s223
      %p225 = scmp.eq.s32.totalorder %s47, 0
      %p226 = por %p224, %p225
      %s228 = sadd.s32 %s227, 1
      %p231 = scmp.eq.s32.totalorder %s41, 1
      %p232 = scmp.ne.s32.totalorder %s227, %s229
      %p233 = scmp.eq.s32.totalorder %s41, 0
      %p234 = por %p232, %p233
      %p235 = scmp.ne.s32.totalorder %s227, %s229
      %p236 = scmp.eq.s32.totalorder %s46, 1
      %p237 = por %p235, %p236
      %p238 = scmp.ne.s32.totalorder %s229, %s230
      %p239 = scmp.eq.s32.totalorder %s46, 0
      %p240 = por %p238, %p239
      %p241 = scmp.ne.s32.totalorder %s229, %s230
      %p242 = scmp.eq.s32.totalorder %s47, 1
      %p243 = por %p241, %p242
      %p245 = scmp.ne.s32.totalorder %s230, %s244
      %p246 = scmp.eq.s32.totalorder %s47, 0
      %p247 = por %p245, %p246
      %s249 = sadd.s32 %s248, 1
      %p252 = scmp.eq.s32.totalorder %s41, 1
      %p253 = scmp.ne.s32.totalorder %s248, %s250
      %p254 = scmp.eq.s32.totalorder %s41, 0
      %p255 = por %p253, %p254
      %p256 = scmp.ne.s32.totalorder %s248, %s250
      %p257 = scmp.eq.s32.totalorder %s46, 1
      %p258 = por %p256, %p257
      %p259 = scmp.ne.s32.totalorder %s250, %s251
      %p260 = scmp.eq.s32.totalorder %s46, 0
      %p261 = por %p259, %p260
      %p262 = scmp.ne.s32.totalorder %s250, %s251
      %p263 = scmp.eq.s32.totalorder %s47, 1
      %p264 = por %p262, %p263
      %p266 = scmp.ne.s32.totalorder %s251, %s265
      %p267 = scmp.eq.s32.totalorder %s47, 0
      %p268 = por %p266, %p267
      %s270 = sadd.s32 %s269, 1
      %p273 = scmp.eq.s32.totalorder %s41, 1
      %p274 = scmp.ne.s32.totalorder %s269, %s271
      %p275 = scmp.eq.s32.totalorder %s41, 0
      %p276 = por %p274, %p275
      %p277 = scmp.ne.s32.totalorder %s269, %s271
      %p278 = scmp.eq.s32.totalorder %s46, 1
      %p279 = por %p277, %p278
      %p280 = scmp.ne.s32.totalorder %s271, %s272
      %p281 = scmp.eq.s32.totalorder %s46, 0
      %p282 = por %p280, %p281
      %p283 = scmp.ne.s32.totalorder %s271, %s272
      %p284 = scmp.eq.s32.totalorder %s47, 1
      %p285 = por %p283, %p284
      %p287 = scmp.ne.s32.totalorder %s272, %s286
      %p288 = scmp.eq.s32.totalorder %s47, 0
      %p289 = por %p287, %p288
      %s291 = sadd.s32 %s290, 1
      %p294 = scmp.eq.s32.totalorder %s41, 1
      %p295 = scmp.ne.s32.totalorder %s290, %s292
      %p296 = scmp.eq.s32.totalorder %s41, 0
      %p297 = por %p295, %p296
      %p298 = scmp.ne.s32.totalorder %s290, %s292
      %p299 = scmp.eq.s32.totalorder %s46, 1
      %p300 = por %p298, %p299
      %p301 = scmp.ne.s32.totalorder %s292, %s293
      %p302 = scmp.eq.s32.totalorder %s46, 0
      %p303 = por %p301, %p302
      %p304 = scmp.ne.s32.totalorder %s292, %s293
      %p305 = scmp.eq.s32.totalorder %s47, 1
      %p306 = por %p304, %p305
      %p308 = scmp.ne.s32.totalorder %s293, %s307
      %p309 = scmp.eq.s32.totalorder %s47, 0
      %p310 = por %p308, %p309
      %s312 = sadd.s32 %s311, 1
      %p315 = scmp.eq.s32.totalorder %s41, 1
      %p316 = scmp.ne.s32.totalorder %s311, %s313
      %p317 = scmp.eq.s32.totalorder %s41, 0
      %p318 = por %p316, %p317
      %p319 = scmp.ne.s32.totalorder %s311, %s313
      %p320 = scmp.eq.s32.totalorder %s46, 1
      %p321 = por %p319, %p320
      %p322 = scmp.ne.s32.totalorder %s313, %s314
      %p323 = scmp.eq.s32.totalorder %s46, 0
      %p324 = por %p322, %p323
      %p325 = scmp.ne.s32.totalorder %s313, %s314
      %p326 = scmp.eq.s32.totalorder %s47, 1
      %p327 = por %p325, %p326
      %p329 = scmp.ne.s32.totalorder %s314, %s328
      %p330 = scmp.eq.s32.totalorder %s47, 0
      %p331 = por %p329, %p330
      %s333 = sadd.s32 %s332, 1
      %p336 = scmp.eq.s32.totalorder %s41, 1
      %p337 = scmp.ne.s32.totalorder %s332, %s334
      %p338 = scmp.eq.s32.totalorder %s41, 0
      %p339 = por %p337, %p338
      %p340 = scmp.ne.s32.totalorder %s332, %s334
      %p341 = scmp.eq.s32.totalorder %s46, 1
      %p342 = por %p340, %p341
      %p343 = scmp.ne.s32.totalorder %s334, %s335
      %p344 = scmp.eq.s32.totalorder %s46, 0
      %p345 = por %p343, %p344
      %p346 = scmp.ne.s32.totalorder %s334, %s335
      %p347 = scmp.eq.s32.totalorder %s47, 1
      %p348 = por %p346, %p347
      %p350 = scmp.ne.s32.totalorder %s335, %s349
      %p351 = scmp.eq.s32.totalorder %s47, 0
      %p352 = por %p350, %p351
      %s354 = sadd.s32 %s353, 1
      %p357 = scmp.eq.s32.totalorder %s41, 1
      %p358 = scmp.ne.s32.totalorder %s353, %s355
      %p359 = scmp.eq.s32.totalorder %s41, 0
      %p360 = por %p358, %p359
      %p361 = scmp.ne.s32.totalorder %s353, %s355
      %p362 = scmp.eq.s32.totalorder %s46, 1
      %p363 = por %p361, %p362
      %p364 = scmp.ne.s32.totalorder %s355, %s356
      %p365 = scmp.eq.s32.totalorder %s46, 0
      %p366 = por %p364, %p365
      %p367 = scmp.ne.s32.totalorder %s355, %s356
      %p368 = scmp.eq.s32.totalorder %s47, 1
      %p369 = por %p367, %p368
      %p371 = scmp.ne.s32.totalorder %s356, %s370
      %p372 = scmp.eq.s32.totalorder %s47, 0
      %p373 = por %p371, %p372
      %s375 = sadd.s32 %s374, 1
      %p378 = scmp.eq.s32.totalorder %s41, 1
      %p379 = scmp.ne.s32.totalorder %s374, %s376
      %p380 = scmp.eq.s32.totalorder %s41, 0
      %p381 = por %p379, %p380
      %p382 = scmp.ne.s32.totalorder %s374, %s376
      %p383 = scmp.eq.s32.totalorder %s46, 1
      %p384 = por %p382, %p383
      %p385 = scmp.ne.s32.totalorder %s376, %s377
      %p386 = scmp.eq.s32.totalorder %s46, 0
      %p387 = por %p385, %p386
      %p388 = scmp.ne.s32.totalorder %s376, %s377
      %p389 = scmp.eq.s32.totalorder %s47, 1
      %p390 = por %p388, %p389
      %p392 = scmp.ne.s32.totalorder %s377, %s391
      %p393 = scmp.eq.s32.totalorder %s47, 0
      %p394 = por %p392, %p393
      %s396 = sadd.s32 %s395, 1
      %p399 = scmp.eq.s32.totalorder %s41, 1
      %p400 = scmp.ne.s32.totalorder %s395, %s397
      %p401 = scmp.eq.s32.totalorder %s41, 0
      %p402 = por %p400, %p401
      %p403 = scmp.ne.s32.totalorder %s395, %s397
      %p404 = scmp.eq.s32.totalorder %s46, 1
      %p405 = por %p403, %p404
      %p406 = scmp.ne.s32.totalorder %s397, %s398
      %p407 = scmp.eq.s32.totalorder %s46, 0
      %p408 = por %p406, %p407
      %p409 = scmp.ne.s32.totalorder %s397, %s398
      %p410 = scmp.eq.s32.totalorder %s47, 1
      %p411 = por %p409, %p410
      %p413 = scmp.ne.s32.totalorder %s398, %s412
      %p414 = scmp.eq.s32.totalorder %s47, 0
      %p415 = por %p413, %p414
      %s417 = sadd.s32 %s416, 1
      %p420 = scmp.eq.s32.totalorder %s41, 1
      %p421 = scmp.ne.s32.totalorder %s416, %s418
      %p422 = scmp.eq.s32.totalorder %s41, 0
      %p423 = por %p421, %p422
      %p424 = scmp.ne.s32.totalorder %s416, %s418
      %p425 = scmp.eq.s32.totalorder %s46, 1
      %p426 = por %p424, %p425
      %p427 = scmp.ne.s32.totalorder %s418, %s419
      %p428 = scmp.eq.s32.totalorder %s46, 0
      %p429 = por %p427, %p428
      %p430 = scmp.ne.s32.totalorder %s418, %s419
      %p431 = scmp.eq.s32.totalorder %s47, 1
      %p432 = por %p430, %p431
      %p434 = scmp.ne.s32.totalorder %s419, %s433
      %p435 = scmp.eq.s32.totalorder %s47, 0
      %p436 = por %p434, %p435
      %s438 = sadd.s32 %s437, 1
      %p441 = scmp.eq.s32.totalorder %s41, 1
      %p442 = scmp.ne.s32.totalorder %s437, %s439
      %p443 = scmp.eq.s32.totalorder %s41, 0
      %p444 = por %p442, %p443
      %p445 = scmp.ne.s32.totalorder %s437, %s439
      %p446 = scmp.eq.s32.totalorder %s46, 1
      %p447 = por %p445, %p446
      %p448 = scmp.ne.s32.totalorder %s439, %s440
      %p449 = scmp.eq.s32.totalorder %s46, 0
      %p450 = por %p448, %p449
      %p451 = scmp.ne.s32.totalorder %s439, %s440
      %p452 = scmp.eq.s32.totalorder %s47, 1
      %p453 = por %p451, %p452
      %p455 = scmp.ne.s32.totalorder %s440, %s454
      %p456 = scmp.eq.s32.totalorder %s47, 0
      %p457 = por %p455, %p456
      %s458 = ssub.s32 %s41, %s48
      %p459 = scmp.eq.s32.totalorder %s458, 0
      %s461 = sadd.s32 %s460, 1
      %s462 = scalar_select %p459, %s460, %s461
      %p465 = pneg %p459
      %p466 = scmp.eq.s32.totalorder %s41, 1
      %p467 = por %p465, %p466
      %p468 = scmp.ne.s32.totalorder %s460, %s463
      %p469 = scmp.eq.s32.totalorder %s41, 0
      %p470 = por %p468, %p469
      %p471 = scmp.ne.s32.totalorder %s460, %s463
      %p472 = scmp.eq.s32.totalorder %s46, 1
      %p473 = por %p471, %p472
      %p474 = scmp.ne.s32.totalorder %s463, %s464
      %p475 = scmp.eq.s32.totalorder %s46, 0
      %p476 = por %p474, %p475
      %p477 = scmp.ne.s32.totalorder %s463, %s464
      %p478 = scmp.eq.s32.totalorder %s47, 1
      %p479 = por %p477, %p478
      %p481 = scmp.ne.s32.totalorder %s464, %s480
      %p482 = scmp.eq.s32.totalorder %s47, 0
      %p483 = por %p481, %p482
      %p484 = scmp.le.s32.totalorder 1, %s41
      %p485 = scmp.lt.s32.totalorder %s41, 3
      %p486 = pnand %p484, %p485
      %p487 = pneg %p486
      // Predicated region
      $region9: #{_lambda_.1} parent=5 // pred_check
        _
      $region10: #{_lambda_.1} parent=5 // pred_check_branch
        %489 = sbr.rel (%p486) target = $region12
      $region11: #{_lambda_.1} parent=5 // pred_region
        %s490 = ssub.s32 %s41, 1
        // Predicated region
        $region13: #{_lambda_.1} parent=11 // pred_check
          %p491 = pneg %p114
        $region14: #{_lambda_.1} parent=11 // pred_check_branch
          %493 = sbr.rel (%p491) target = $region16
        $region15: #{_lambda_.1} parent=11 // pred_region
          %s495 = ssub.s32 768, 768
          %496 = vsyncadd [#allocation6], %s495
          %s497 = sshll.u32 [#allocation7], 4
          %s498 = int_to_ptr.vmem [resolvable:$true] %s497
          %503 = dma.hbm_to_vmem [thread:$0]  %s2, 768, %s498, [#allocation6], 128, 128, 8
        $region16: #{_lambda_.1} parent=11 // pred_fallthru
          _
        // Predicated region
        $region17: #{_lambda_.1} parent=11 // pred_check
          %p504 = pneg %p135
        $region18: #{_lambda_.1} parent=11 // pred_check_branch
          %506 = sbr.rel (%p504) target = $region20
        $region19: #{_lambda_.1} parent=11 // pred_region
          %s508 = ssub.s32 768, 768
          %509 = vsyncadd [#allocation9], %s508
          %s510 = sshll.u32 [#allocation8], 4
          %s511 = int_to_ptr.vmem [resolvable:$true] %s510
          %516 = dma.hbm_to_vmem [thread:$0]  %s3, 768, %s511, [#allocation9], 128, 128, 8
        $region20: #{_lambda_.1} parent=11 // pred_fallthru
          _
        // Predicated region
        $region21: #{_lambda_.1} parent=11 // pred_check
          %p517 = pneg %p156
        $region22: #{_lambda_.1} parent=11 // pred_check_branch
          %519 = sbr.rel (%p517) target = $region24
        $region23: #{_lambda_.1} parent=11 // pred_region
          %s521 = ssub.s32 384, 384
          %522 = vsyncadd [#allocation9], %s521
          %s523 = sshll.u32 [#allocation10], 4
          %s524 = int_to_ptr.vmem [resolvable:$true] %s523
          %529 = dma.hbm_to_vmem [thread:$0]  %s4, 384, %s524, [#allocation9], 128, 128, 8
        $region24: #{_lambda_.1} parent=11 // pred_fallthru
          _
        // Predicated region
        $region25: #{_lambda_.1} parent=11 // pred_check
          %p530 = pneg %p177
        $region26: #{_lambda_.1} parent=11 // pred_check_branch
          %532 = sbr.rel (%p530) target = $region28
        $region27: #{_lambda_.1} parent=11 // pred_region
          %s534 = ssub.s32 384, 384
          %535 = vsyncadd [#allocation12], %s534
          %s536 = sshll.u32 [#allocation11], 4
          %s537 = int_to_ptr.vmem [resolvable:$true] %s536
          %542 = dma.hbm_to_vmem [thread:$0]  %s5, 384, %s537, [#allocation12], 128, 128, 8
        $region28: #{_lambda_.1} parent=11 // pred_fallthru
          _
        // Predicated region
        $region29: #{_lambda_.1} parent=11 // pred_check
          %p543 = pneg %p198
        $region30: #{_lambda_.1} parent=11 // pred_check_branch
          %545 = sbr.rel (%p543) target = $region32
        $region31: #{_lambda_.1} parent=11 // pred_region
          %s547 = ssub.s32 384, 384
          %548 = vsyncadd [#allocation12], %s547
          %s549 = sshll.u32 [#allocation13], 4
          %s550 = int_to_ptr.vmem [resolvable:$true] %s549
          %555 = dma.hbm_to_vmem [thread:$0]  %s6, 384, %s550, [#allocation12], 128, 128, 8
        $region32: #{_lambda_.1} parent=11 // pred_fallthru
          _
        // Predicated region
        $region33: #{_lambda_.1} parent=11 // pred_check
          %p556 = pneg %p219
        $region34: #{_lambda_.1} parent=11 // pred_check_branch
          %558 = sbr.rel (%p556) target = $region36
        $region35: #{_lambda_.1} parent=11 // pred_region
          %s560 = ssub.s32 128, 128
          %561 = vsyncadd [#allocation15], %s560
          %s563 = sshll.u32 [#allocation14], 4
          %s564 = int_to_ptr.vmem [resolvable:$true] %s563
          %566 = dma.hbm_to_vmem [thread:$0]  %s7, 128, %s564, [#allocation15]
        $region36: #{_lambda_.1} parent=11 // pred_fallthru
          _
        // Predicated region
        $region37: #{_lambda_.1} parent=11 // pred_check
          %p567 = pneg %p240
        $region38: #{_lambda_.1} parent=11 // pred_check_branch
          %569 = sbr.rel (%p567) target = $region40
        $region39: #{_lambda_.1} parent=11 // pred_region
          %s571 = ssub.s32 192, 192
          %572 = vsyncadd [#allocation15], %s571
          %s573 = sshll.u32 [#allocation16], 4
          %s574 = int_to_ptr.vmem [resolvable:$true] %s573
          %579 = dma.hbm_to_vmem [thread:$0]  %s8, 192, %s574, [#allocation15], 64, 64, 4
        $region40: #{_lambda_.1} parent=11 // pred_fallthru
          _
        // Predicated region
        $region41: #{_lambda_.1} parent=11 // pred_check
          %p580 = pneg %p261
        $region42: #{_lambda_.1} parent=11 // pred_check_branch
          %582 = sbr.rel (%p580) target = $region44
        $region43: #{_lambda_.1} parent=11 // pred_region
          %s584 = ssub.s32 64, 64
          %585 = vsyncadd [#allocation18], %s584
          %s587 = sshll.u32 [#allocation17], 4
          %s588 = int_to_ptr.vmem [resolvable:$true] %s587
          %590 = dma.hbm_to_vmem [thread:$0]  %s9, 64, %s588, [#allocation18]
        $region44: #{_lambda_.1} parent=11 // pred_fallthru
          _
        // Predicated region
        $region45: #{_lambda_.1} parent=11 // pred_check
          %p591 = pneg %p282
        $region46: #{_lambda_.1} parent=11 // pred_check_branch
          %593 = sbr.rel (%p591) target = $region48
        $region47: #{_lambda_.1} parent=11 // pred_region
          %s595 = ssub.s32 192, 192
          %596 = vsyncadd [#allocation18], %s595
          %s597 = sshll.u32 [#allocation19], 4
          %s598 = int_to_ptr.vmem [resolvable:$true] %s597
          %603 = dma.hbm_to_vmem [thread:$0]  %s10, 192, %s598, [#allocation18], 64, 64, 4
        $region48: #{_lambda_.1} parent=11 // pred_fallthru
          _
        // Predicated region
        $region49: #{_lambda_.1} parent=11 // pred_check
          %p604 = pneg %p303
        $region50: #{_lambda_.1} parent=11 // pred_check_branch
          %606 = sbr.rel (%p604) target = $region52
        $region51: #{_lambda_.1} parent=11 // pred_region
          %s608 = ssub.s32 64, 64
          %609 = vsyncadd [#allocation21], %s608
          %s611 = sshll.u32 [#allocation20], 4
          %s612 = int_to_ptr.vmem [resolvable:$true] %s611
          %614 = dma.hbm_to_vmem [thread:$0]  %s11, 64, %s612, [#allocation21]
        $region52: #{_lambda_.1} parent=11 // pred_fallthru
          _
        // Predicated region
        $region53: #{_lambda_.1} parent=11 // pred_check
          %p615 = pneg %p324
        $region54: #{_lambda_.1} parent=11 // pred_check_branch
          %617 = sbr.rel (%p615) target = $region56
        $region55: #{_lambda_.1} parent=11 // pred_region
          _
        $region56: #{_lambda_.1} parent=11 // pred_fallthru
          _
        // Predicated region
        $region57: #{_lambda_.1} parent=11 // pred_check
          %p618 = pneg %p345
        $region58: #{_lambda_.1} parent=11 // pred_check_branch
          %620 = sbr.rel (%p618) target = $region60
        $region59: #{_lambda_.1} parent=11 // pred_region
          _
        $region60: #{_lambda_.1} parent=11 // pred_fallthru
          _
        // Predicated region
        $region61: #{_lambda_.1} parent=11 // pred_check
          %p621 = pneg %p366
        $region62: #{_lambda_.1} parent=11 // pred_check_branch
          %623 = sbr.rel (%p621) target = $region64
        $region63: #{_lambda_.1} parent=11 // pred_region
          %s625 = ssub.s32 64, 64
          %626 = vsyncadd [#allocation21], %s625
          %s628 = sshll.u32 [#allocation22], 4
          %s629 = int_to_ptr.vmem [resolvable:$true] %s628
          %631 = dma.hbm_to_vmem [thread:$0]  %s14, 64, %s629, [#allocation21]
        $region64: #{_lambda_.1} parent=11 // pred_fallthru
          _
        // Predicated region
        $region65: #{_lambda_.1} parent=11 // pred_check
          %p632 = pneg %p387
        $region66: #{_lambda_.1} parent=11 // pred_check_branch
          %634 = sbr.rel (%p632) target = $region68
        $region67: #{_lambda_.1} parent=11 // pred_region
          %s636 = ssub.s32 512, 512
          %637 = vsyncadd [#allocation24], %s636
          %s638 = sshll.u32 [#allocation23], 4
          %s639 = int_to_ptr.vmem [resolvable:$true] %s638
          %644 = dma.hbm_to_vmem [thread:$0]  %s15, 512, %s639, [#allocation24], 128, 128, 8
        $region68: #{_lambda_.1} parent=11 // pred_fallthru
          _
        // Predicated region
        $region69: #{_lambda_.1} parent=11 // pred_check
          %p645 = pneg %p408
        $region70: #{_lambda_.1} parent=11 // pred_check_branch
          %647 = sbr.rel (%p645) target = $region72
        $region71: #{_lambda_.1} parent=11 // pred_region
          _
        $region72: #{_lambda_.1} parent=11 // pred_fallthru
          _
        // Predicated region
        $region73: #{_lambda_.1} parent=11 // pred_check
          %p648 = pneg %p429
        $region74: #{_lambda_.1} parent=11 // pred_check_branch
          %650 = sbr.rel (%p648) target = $region76
        $region75: #{_lambda_.1} parent=11 // pred_region
          %s652 = ssub.s32 6656, 6656
          %653 = vsyncadd [#allocation24], %s652
          %s654 = sshll.u32 [#allocation25], 4
          %s655 = int_to_ptr.vmem [resolvable:$true] %s654
          %660 = dma.hbm_to_vmem [thread:$0]  %s17, 6656, %s655, [#allocation24], 128, 128, 8
        $region76: #{_lambda_.1} parent=11 // pred_fallthru
          _
        // Predicated region
        $region77: #{_lambda_.1} parent=11 // pred_check
          %p661 = pneg %p450
        $region78: #{_lambda_.1} parent=11 // pred_check_branch
          %663 = sbr.rel (%p661) target = $region80
        $region79: #{_lambda_.1} parent=11 // pred_region
          %s665 = ssub.s32 64, 64
          %666 = vsyncadd [#allocation27], %s665
          %s668 = sshll.u32 [#allocation26], 4
          %s669 = int_to_ptr.vmem [resolvable:$true] %s668
          %671 = dma.hbm_to_vmem [thread:$0]  %s18, 64, %s669, [#allocation27]
        $region80: #{_lambda_.1} parent=11 // pred_fallthru
          _
      $region12: #{_lambda_.1} parent=5 // pred_fallthru
        _
      %p672 = scmp.lt.s32.totalorder %s41, 2
      // Predicated region
      $region81: #{_lambda_.1} parent=5 // pred_check
        %p673 = pneg %p672
      $region82: #{_lambda_.1} parent=5 // pred_check_branch
        %675 = sbr.rel (%p673) target = $region84
      $region83: #{_lambda_.1} parent=5 // pred_region
        // Predicated region
        $region85: #{_lambda_.1} parent=83 // pred_check
          %p676 = pneg %p61
        $region86: #{_lambda_.1} parent=83 // pred_check_branch
          %678 = sbr.rel (%p676) target = $region88
        $region87: #{_lambda_.1} parent=83 // pred_region
          %s679 = sand.u32 %s51, 1
          %s680 = scalar_lea.sflag [#allocation3], %s679
          %s681 = sand.u32 %s51, 1
          %s682 = smul.addr %s681, 8
          %s683 = scalar_lea.vmem [#allocation2], %s682
          %s685 = ssub.s32 128, 128
          %686 = vsyncadd %s680, %s685
          %s687 = smul.addr %s41, 128
          %s688 = scalar_lea.hbm %s0, %s687
          %s690 = sshll.u32 %s683, 4
          %s691 = int_to_ptr.vmem [resolvable:$true] %s690
          %693 = dma.hbm_to_vmem [thread:$0]  %s688, 128, %s691, %s680
        $region88: #{_lambda_.1} parent=83 // pred_fallthru
          _
        // Predicated region
        $region89: #{_lambda_.1} parent=83 // pred_check
          %p694 = pneg %p87
        $region90: #{_lambda_.1} parent=83 // pred_check_branch
          %696 = sbr.rel (%p694) target = $region92
        $region91: #{_lambda_.1} parent=83 // pred_region
          %s697 = sand.u32 %s41, 1
          %s698 = scalar_lea.sflag [#allocation6], %s697
          %s699 = sand.u32 %s77, 1
          %s700 = smul.addr %s699, 4
          %s701 = scalar_lea.vmem [#allocation5], %s700
          %s703 = ssub.s32 64, 64
          %704 = vsyncadd %s698, %s703
          %s705 = smul.addr %s41, 64
          %s706 = scalar_lea.hbm %s1, %s705
          %s708 = sshll.u32 %s701, 4
          %s709 = int_to_ptr.vmem [resolvable:$true] %s708
          %711 = dma.hbm_to_vmem [thread:$0]  %s706, 64, %s709, %s698
        $region92: #{_lambda_.1} parent=83 // pred_fallthru
          _
      $region84: #{_lambda_.1} parent=5 // pred_fallthru
        _
      %p712 = scmp.le.s32.totalorder 1, %s41
      %p713 = scmp.lt.s32.totalorder %s41, 3
      %p714 = pnand %p712, %p713
      %p715 = pneg %p714
      // Predicated region
      $region93: #{_lambda_.1} parent=5 // pred_check
        _
      $region94: #{_lambda_.1} parent=5 // pred_check_branch
        %717 = sbr.rel (%p714) target = $region96
      $region95: #{_lambda_.1} parent=5 // pred_region
        %s718 = ssub.s32 %s41, 1
        %s719 = sand.u32 %s54, 1
        %s720 = scalar_lea.sflag [#allocation3], %s719
        %s721 = sand.u32 %s54, 1
        %s722 = smul.addr %s721, 8
        %s723 = scalar_lea.vmem [#allocation2], %s722
        // Predicated region
        $region97: #{_lambda_.1} parent=95 // pred_check
          %p724 = pneg %p67
        $region98: #{_lambda_.1} parent=95 // pred_check_branch
          %726 = sbr.rel (%p724) target = $region100
        $region99: #{_lambda_.1} parent=95 // pred_region
          %727 = dma.done %s720, 128
        $region100: #{_lambda_.1} parent=95 // pred_fallthru
          _
        %s728 = sand.u32 %s46, 1
        %s729 = scalar_lea.sflag [#allocation6], %s728
        %s730 = sand.u32 %s80, 1
        %s731 = smul.addr %s730, 4
        %s732 = scalar_lea.vmem [#allocation5], %s731
        // Predicated region
        $region101: #{_lambda_.1} parent=95 // pred_check
          %p733 = pneg %p93
        $region102: #{_lambda_.1} parent=95 // pred_check_branch
          %735 = sbr.rel (%p733) target = $region104
        $region103: #{_lambda_.1} parent=95 // pred_region
          %736 = dma.done %s729, 64
        $region104: #{_lambda_.1} parent=95 // pred_fallthru
          _
        // Predicated region
        $region105: #{_lambda_.1} parent=95 // pred_check
          %p737 = pneg %p114
        $region106: #{_lambda_.1} parent=95 // pred_check_branch
          %739 = sbr.rel (%p737) target = $region108
        $region107: #{_lambda_.1} parent=95 // pred_region
          %740 = dma.done [#allocation6], 768
        $region108: #{_lambda_.1} parent=95 // pred_fallthru
          _
        // Predicated region
        $region109: #{_lambda_.1} parent=95 // pred_check
          %p741 = pneg %p135
        $region110: #{_lambda_.1} parent=95 // pred_check_branch
          %743 = sbr.rel (%p741) target = $region112
        $region111: #{_lambda_.1} parent=95 // pred_region
          %744 = dma.done [#allocation9], 768
        $region112: #{_lambda_.1} parent=95 // pred_fallthru
          _
        // Predicated region
        $region113: #{_lambda_.1} parent=95 // pred_check
          %p745 = pneg %p156
        $region114: #{_lambda_.1} parent=95 // pred_check_branch
          %747 = sbr.rel (%p745) target = $region116
        $region115: #{_lambda_.1} parent=95 // pred_region
          %748 = dma.done [#allocation9], 384
        $region116: #{_lambda_.1} parent=95 // pred_fallthru
          _
        // Predicated region
        $region117: #{_lambda_.1} parent=95 // pred_check
          %p749 = pneg %p177
        $region118: #{_lambda_.1} parent=95 // pred_check_branch
          %751 = sbr.rel (%p749) target = $region120
        $region119: #{_lambda_.1} parent=95 // pred_region
          %752 = dma.done [#allocation12], 384
        $region120: #{_lambda_.1} parent=95 // pred_fallthru
          _
        // Predicated region
        $region121: #{_lambda_.1} parent=95 // pred_check
          %p753 = pneg %p198
        $region122: #{_lambda_.1} parent=95 // pred_check_branch
          %755 = sbr.rel (%p753) target = $region124
        $region123: #{_lambda_.1} parent=95 // pred_region
          %756 = dma.done [#allocation12], 384
        $region124: #{_lambda_.1} parent=95 // pred_fallthru
          _
        // Predicated region
        $region125: #{_lambda_.1} parent=95 // pred_check
          %p757 = pneg %p219
        $region126: #{_lambda_.1} parent=95 // pred_check_branch
          %759 = sbr.rel (%p757) target = $region128
        $region127: #{_lambda_.1} parent=95 // pred_region
          %760 = dma.done [#allocation15], 128
        $region128: #{_lambda_.1} parent=95 // pred_fallthru
          _
        // Predicated region
        $region129: #{_lambda_.1} parent=95 // pred_check
          %p761 = pneg %p240
        $region130: #{_lambda_.1} parent=95 // pred_check_branch
          %763 = sbr.rel (%p761) target = $region132
        $region131: #{_lambda_.1} parent=95 // pred_region
          %764 = dma.done [#allocation15], 192
        $region132: #{_lambda_.1} parent=95 // pred_fallthru
          _
        // Predicated region
        $region133: #{_lambda_.1} parent=95 // pred_check
          %p765 = pneg %p261
        $region134: #{_lambda_.1} parent=95 // pred_check_branch
          %767 = sbr.rel (%p765) target = $region136
        $region135: #{_lambda_.1} parent=95 // pred_region
          %768 = dma.done [#allocation18], 64
        $region136: #{_lambda_.1} parent=95 // pred_fallthru
          _
        // Predicated region
        $region137: #{_lambda_.1} parent=95 // pred_check
          %p769 = pneg %p282
        $region138: #{_lambda_.1} parent=95 // pred_check_branch
          %771 = sbr.rel (%p769) target = $region140
        $region139: #{_lambda_.1} parent=95 // pred_region
          %772 = dma.done [#allocation18], 192
        $region140: #{_lambda_.1} parent=95 // pred_fallthru
          _
        // Predicated region
        $region141: #{_lambda_.1} parent=95 // pred_check
          %p773 = pneg %p303
        $region142: #{_lambda_.1} parent=95 // pred_check_branch
          %775 = sbr.rel (%p773) target = $region144
        $region143: #{_lambda_.1} parent=95 // pred_region
          %776 = dma.done [#allocation21], 64
        $region144: #{_lambda_.1} parent=95 // pred_fallthru
          _
        // Predicated region
        $region145: #{_lambda_.1} parent=95 // pred_check
          %p777 = pneg %p366
        $region146: #{_lambda_.1} parent=95 // pred_check_branch
          %779 = sbr.rel (%p777) target = $region148
        $region147: #{_lambda_.1} parent=95 // pred_region
          %780 = dma.done [#allocation21], 64
        $region148: #{_lambda_.1} parent=95 // pred_fallthru
          _
        // Predicated region
        $region149: #{_lambda_.1} parent=95 // pred_check
          %p781 = pneg %p387
        $region150: #{_lambda_.1} parent=95 // pred_check_branch
          %783 = sbr.rel (%p781) target = $region152
        $region151: #{_lambda_.1} parent=95 // pred_region
          %784 = dma.done [#allocation24], 512
        $region152: #{_lambda_.1} parent=95 // pred_fallthru
          _
        // Predicated region
        $region153: #{_lambda_.1} parent=95 // pred_check
          %p785 = pneg %p429
        $region154: #{_lambda_.1} parent=95 // pred_check_branch
          %787 = sbr.rel (%p785) target = $region156
        $region155: #{_lambda_.1} parent=95 // pred_region
          %788 = dma.done [#allocation24], 6656
        $region156: #{_lambda_.1} parent=95 // pred_fallthru
          _
        // Predicated region
        $region157: #{_lambda_.1} parent=95 // pred_check
          %p789 = pneg %p450
        $region158: #{_lambda_.1} parent=95 // pred_check_branch
          %791 = sbr.rel (%p789) target = $region160
        $region159: #{_lambda_.1} parent=95 // pred_region
          %792 = dma.done [#allocation27], 64
        $region160: #{_lambda_.1} parent=95 // pred_fallthru
          _
        %s793 = sand.u32 %s54, 1
        %s794 = scalar_lea.sflag [#allocation3], %s793
        %s795 = sand.u32 %s54, 1
        %s796 = smul.addr %s795, 8
        %s797 = scalar_lea.vmem [#allocation2], %s796
        %p798 = pneg %p67
        %p799 = pneg %p64
        %s800 = sand.u32 %s46, 1
        %s801 = scalar_lea.sflag [#allocation6], %s800
        %s802 = sand.u32 %s80, 1
        %s803 = smul.addr %s802, 4
        %s804 = scalar_lea.vmem [#allocation5], %s803
        %p805 = pneg %p93
        %p806 = pneg %p90
        %p807 = pneg %p114
        %p808 = pneg %p111
        %p809 = pneg %p135
        %p810 = pneg %p132
        %p811 = pneg %p156
        %p812 = pneg %p153
        %p813 = pneg %p177
        %p814 = pneg %p174
        %p815 = pneg %p198
        %p816 = pneg %p195
        %p817 = pneg %p219
        %p818 = pneg %p216
        %p819 = pneg %p240
        %p820 = pneg %p237
        %p821 = pneg %p261
        %p822 = pneg %p258
        %p823 = pneg %p282
        %p824 = pneg %p279
        %p825 = pneg %p303
        %p826 = pneg %p300
        %p827 = pneg %p324
        %p828 = pneg %p321
        %p829 = pneg %p345
        %p830 = pneg %p342
        %p831 = pneg %p366
        %p832 = pneg %p363
        %p833 = pneg %p387
        %p834 = pneg %p384
        %p835 = pneg %p408
        %p836 = pneg %p405
        %p837 = pneg %p429
        %p838 = pneg %p426
        %p839 = pneg %p450
        %p840 = pneg %p447
        %p841 = pneg %p476
        %p842 = pneg %p473
        %s843 = sand.u32 %s463, 1
        %s844 = scalar_lea.sflag [#allocation4], %s843
        %s845 = sand.u32 %s463, 1
        %s846 = smul.addr %s845, 4
        %s847 = scalar_lea.vmem [#allocation28], %s846
        %v848 = vld [vmem:[%s723] sm:$0xff]
        %v849 = vld [vmem:[%s732] sm:$0xf]
        %v850 = vld [vmem:[#allocation7] sm:$0xff]
        %v851 = vld [vmem:[#allocation7 + $0x8] sm:$0xff]
        %vm852 = vcmask 130048
        %v854 = vsel %vm852, %v848, 0
        %856 = vmatprep.subr.mxu0 0.0
        %857 = vmatpush1.msra.mxu0 0.0
        %858 = vmatprep.subr.mxu0 0.0
        %859 = vmatpush1.msra.mxu0 0.0
        %860 = vmatprep.subr.mxu0 0.0
        %861 = vmatpush1.msra.mxu0 0.0
        %862 = vmatprep.subr.mxu0 0.0
        %863 = vmatpush1.msra.mxu0 0.0
        %864 = vmatprep.subr.mxu0 0.0
        %865 = vmatpush1.msra.mxu0 0.0
        %866 = vmatprep.subr.mxu0 0.0
        %867 = vmatpush1.msra.mxu0 0.0
        %868 = vmatprep.subr.mxu0 0.0
        %869 = vmatpush1.msra.mxu0 0.0
        %870 = vmatprep.subr.mxu0 0.0
        %871 = vmatpush1.msra.mxu0 0.0
        %872 = vmatprep.subr.mxu0 0.0
        %873 = vmatpush1.msra.mxu0 0.0
        %874 = vmatprep.subr.mxu0 0.0
        %875 = vmatpush1.msra.mxu0 0.0
        %876 = vmatprep.subr.mxu0 0.0
        %877 = vmatpush1.msra.mxu0 0.0
        %878 = vmatprep.subr.mxu0 0.0
        %879 = vmatpush1.msra.mxu0 0.0
        %880 = vmatprep.subr.mxu0 0.0
        %881 = vmatpush1.msra.mxu0 0.0
        %882 = vmatprep.subr.mxu0 0.0
        %883 = vmatpush1.msra.mxu0 0.0
        %884 = vmatprep.subr.mxu0 0.0
        %885 = vmatpush1.msra.mxu0 %v851
        %886 = vmatprep.subr.mxu0 0.0
        %887 = vmatpush1.msra.mxu0 %v850
        %888 = vmatprep.subr.mxu0 0.0
        %889 = vmatpush2.msra.mxu0 0.0
        %890 = vmatprep.subr.mxu0 0.0
        %891 = vmatpush2.msra.mxu0 0.0
        %892 = vmatprep.subr.mxu0 0.0
        %893 = vmatpush2.msra.mxu0 0.0
        %894 = vmatprep.subr.mxu0 0.0
        %895 = vmatpush2.msra.mxu0 0.0
        %896 = vmatprep.subr.mxu0 0.0
        %897 = vmatpush2.msra.mxu0 0.0
        %898 = vmatprep.subr.mxu0 0.0
        %899 = vmatpush2.msra.mxu0 0.0
        %900 = vmatprep.subr.mxu0 0.0
        %901 = vmatpush2.msra.mxu0 0.0
        %902 = vmatprep.subr.mxu0 0.0
        %903 = vmatpush2.msra.mxu0 0.0
        %904 = vmatprep.subr.mxu0 0.0
        %905 = vmatpush2.msra.mxu0 0.0
        %906 = vmatprep.subr.mxu0 0.0
        %907 = vmatpush2.msra.mxu0 0.0
        %908 = vmatprep.subr.mxu0 0.0
        %909 = vmatpush2.msra.mxu0 0.0
        %910 = vmatprep.subr.mxu0 0.0
        %911 = vmatpush2.msra.mxu0 0.0
        %912 = vmatprep.subr.mxu0 0.0
        %913 = vmatpush2.msra.mxu0 0.0
        %914 = vmatprep.subr.mxu0 0.0
        %915 = vmatpush2.msra.mxu0 0.0
        %916 = vmatprep.subr.mxu0 0.0
        %917 = vmatpush2.msra.mxu0 0.0
        %918 = vmatprep.subr.mxu0 0.0
        %919 = vmatpush2.msra.mxu0 0.0
        %920 = vmatprep.mubr.f32.mxu0 0.0
        %921 = vmatmul.mubr.f32.gmra.mxu0 %v854
        %v922 = vpop.f32.mrf.mxu0
        %v923 = vadd.f32 0.0, %v922
        %v924 = vpop.f32.mrf.mxu0
        %925 = vdwg.mxu0
        %v926 = vld [vmem:[#allocation13] sm:$0xff]
        %s927 = scalar_lea.vmem [#allocation7], 16
        %v928 = vld [vmem:[%s927] sm:$0xff]
        %v929 = vld [vmem:[%s927 + $0x8] sm:$0xff]
        %930 = vmatprep.subr.mxu0 0.0
        %931 = vmatpush1.msra.mxu0 0.0
        %932 = vmatprep.subr.mxu0 0.0
        %933 = vmatpush1.msra.mxu0 0.0
        %934 = vmatprep.subr.mxu0 0.0
        %935 = vmatpush1.msra.mxu0 0.0
        %936 = vmatprep.subr.mxu0 0.0
        %937 = vmatpush1.msra.mxu0 0.0
        %938 = vmatprep.subr.mxu0 0.0
        %939 = vmatpush1.msra.mxu0 0.0
        %940 = vmatprep.subr.mxu0 0.0
        %941 = vmatpush1.msra.mxu0 0.0
        %942 = vmatprep.subr.mxu0 0.0
        %943 = vmatpush1.msra.mxu0 0.0
        %944 = vmatprep.subr.mxu0 0.0
        %945 = vmatpush1.msra.mxu0 0.0
        %946 = vmatprep.subr.mxu0 0.0
        %947 = vmatpush1.msra.mxu0 0.0
        %948 = vmatprep.subr.mxu0 0.0
        %949 = vmatpush1.msra.mxu0 0.0
        %950 = vmatprep.subr.mxu0 0.0
        %951 = vmatpush1.msra.mxu0 0.0
        %952 = vmatprep.subr.mxu0 0.0
        %953 = vmatpush1.msra.mxu0 0.0
        %954 = vmatprep.subr.mxu0 0.0
        %955 = vmatpush1.msra.mxu0 0.0
        %956 = vmatprep.subr.mxu0 0.0
        %957 = vmatpush1.msra.mxu0 0.0
        %958 = vmatprep.subr.mxu0 0.0
        %959 = vmatpush1.msra.mxu0 %v929
        %960 = vmatprep.subr.mxu0 0.0
        %961 = vmatpush1.msra.mxu0 %v928
        %962 = vmatprep.subr.mxu0 0.0
        %963 = vmatpush2.msra.mxu0 0.0
        %964 = vmatprep.subr.mxu0 0.0
        %965 = vmatpush2.msra.mxu0 0.0
        %966 = vmatprep.subr.mxu0 0.0
        %967 = vmatpush2.msra.mxu0 0.0
        %968 = vmatprep.subr.mxu0 0.0
        %969 = vmatpush2.msra.mxu0 0.0
        %970 = vmatprep.subr.mxu0 0.0
        %971 = vmatpush2.msra.mxu0 0.0
        %972 = vmatprep.subr.mxu0 0.0
        %973 = vmatpush2.msra.mxu0 0.0
        %974 = vmatprep.subr.mxu0 0.0
        %975 = vmatpush2.msra.mxu0 0.0
        %976 = vmatprep.subr.mxu0 0.0
        %977 = vmatpush2.msra.mxu0 0.0
        %978 = vmatprep.subr.mxu0 0.0
        %979 = vmatpush2.msra.mxu0 0.0
        %980 = vmatprep.subr.mxu0 0.0
        %981 = vmatpush2.msra.mxu0 0.0
        %982 = vmatprep.subr.mxu0 0.0
        %983 = vmatpush2.msra.mxu0 0.0
        %984 = vmatprep.subr.mxu0 0.0
        %985 = vmatpush2.msra.mxu0 0.0
        %986 = vmatprep.subr.mxu0 0.0
        %987 = vmatpush2.msra.mxu0 0.0
        %988 = vmatprep.subr.mxu0 0.0
        %989 = vmatpush2.msra.mxu0 0.0
        %990 = vmatprep.subr.mxu0 0.0
        %991 = vmatpush2.msra.mxu0 0.0
        %992 = vmatprep.subr.mxu0 0.0
        %993 = vmatpush2.msra.mxu0 0.0
        %994 = vmatprep.mubr.f32.mxu0 0.0
        %995 = vmatmul.mubr.f32.gmra.mxu0 %v854
        %v996 = vpop.f32.mrf.mxu0
        %v997 = vadd.f32 0.0, %v996
        %v998 = vpop.f32.mrf.mxu0
        %999 = vdwg.mxu0
        %s1000 = scalar_lea.vmem [#allocation13], 8
        %v1001 = vld [vmem:[%s1000] sm:$0xff]
        %vm1002 = vcmask 64512
        %v1004 = vsel %vm1002, %v1001, 0
        %1006 = vmatprep.subr.mxu0 0.0
        %1007 = vmatpush1.msra.mxu0 0.0
        %1008 = vmatprep.subr.mxu0 0.0
        %1009 = vmatpush1.msra.mxu0 0.0
        %1010 = vmatprep.subr.mxu0 0.0
        %1011 = vmatpush1.msra.mxu0 0.0
        %1012 = vmatprep.subr.mxu0 0.0
        %1013 = vmatpush1.msra.mxu0 0.0
        %1014 = vmatprep.subr.mxu0 0.0
        %1015 = vmatpush1.msra.mxu0 0.0
        %1016 = vmatprep.subr.mxu0 0.0
        %1017 = vmatpush1.msra.mxu0 0.0
        %1018 = vmatprep.subr.mxu0 0.0
        %1019 = vmatpush1.msra.mxu0 0.0
        %1020 = vmatprep.subr.mxu0 0.0
        %1021 = vmatpush1.msra.mxu0 0.0
        %1022 = vmatprep.subr.mxu0 0.0
        %1023 = vmatpush1.msra.mxu0 0.0
        %1024 = vmatprep.subr.mxu0 0.0
        %1025 = vmatpush1.msra.mxu0 0.0
        %1026 = vmatprep.subr.mxu0 0.0
        %1027 = vmatpush1.msra.mxu0 0.0
        %1028 = vmatprep.subr.mxu0 0.0
        %1029 = vmatpush1.msra.mxu0 0.0
        %1030 = vmatprep.subr.mxu0 0.0
        %1031 = vmatpush1.msra.mxu0 0.0
        %1032 = vmatprep.subr.mxu0 0.0
        %1033 = vmatpush1.msra.mxu0 0.0
        %1034 = vmatprep.subr.mxu0 0.0
        %1035 = vmatpush1.msra.mxu0 0.0
        %1036 = vmatprep.subr.mxu0 0.0
        %1037 = vmatpush1.msra.mxu0 %v997
        %1038 = vmatprep.subr.mxu0 0.0
        %1039 = vmatpush2.msra.mxu0 0.0
        %1040 = vmatprep.subr.mxu0 0.0
        %1041 = vmatpush2.msra.mxu0 0.0
        %1042 = vmatprep.subr.mxu0 0.0
        %1043 = vmatpush2.msra.mxu0 0.0
        %1044 = vmatprep.subr.mxu0 0.0
        %1045 = vmatpush2.msra.mxu0 0.0
        %1046 = vmatprep.subr.mxu0 0.0
        %1047 = vmatpush2.msra.mxu0 0.0
        %1048 = vmatprep.subr.mxu0 0.0
        %1049 = vmatpush2.msra.mxu0 0.0
        %1050 = vmatprep.subr.mxu0 0.0
        %1051 = vmatpush2.msra.mxu0 0.0
        %1052 = vmatprep.subr.mxu0 0.0
        %1053 = vmatpush2.msra.mxu0 0.0
        %1054 = vmatprep.subr.mxu0 0.0
        %1055 = vmatpush2.msra.mxu0 0.0
        %1056 = vmatprep.subr.mxu0 0.0
        %1057 = vmatpush2.msra.mxu0 0.0
        %1058 = vmatprep.subr.mxu0 0.0
        %1059 = vmatpush2.msra.mxu0 0.0
        %1060 = vmatprep.subr.mxu0 0.0
        %1061 = vmatpush2.msra.mxu0 0.0
        %1062 = vmatprep.subr.mxu0 0.0
        %1063 = vmatpush2.msra.mxu0 0.0
        %1064 = vmatprep.subr.mxu0 0.0
        %1065 = vmatpush2.msra.mxu0 0.0
        %1066 = vmatprep.subr.mxu0 0.0
        %1067 = vmatpush2.msra.mxu0 0.0
        %1068 = vmatprep.subr.mxu0 0.0
        %1069 = vmatpush2.msra.mxu0 0.0
        %1070 = vmatprep.mubr.f32.mxu0 0.0
        %1071 = vmatmul.mubr.f32.gmra.mxu0 %v1004
        %v1072 = vpop.f32.mrf.mxu0
        %v1073 = vadd.f32 0.0, %v1072
        %v1074 = vpop.f32.mrf.mxu0
        %1075 = vdwg.mxu0
        %v1077 = vsel %vm1002, %v926, 0
        %1079 = vmatprep.subr.mxu0 0.0
        %1080 = vmatpush1.msra.mxu0 0.0
        %1081 = vmatprep.subr.mxu0 0.0
        %1082 = vmatpush1.msra.mxu0 0.0
        %1083 = vmatprep.subr.mxu0 0.0
        %1084 = vmatpush1.msra.mxu0 0.0
        %1085 = vmatprep.subr.mxu0 0.0
        %1086 = vmatpush1.msra.mxu0 0.0
        %1087 = vmatprep.subr.mxu0 0.0
        %1088 = vmatpush1.msra.mxu0 0.0
        %1089 = vmatprep.subr.mxu0 0.0
        %1090 = vmatpush1.msra.mxu0 0.0
        %1091 = vmatprep.subr.mxu0 0.0
        %1092 = vmatpush1.msra.mxu0 0.0
        %1093 = vmatprep.subr.mxu0 0.0
        %1094 = vmatpush1.msra.mxu0 0.0
        %1095 = vmatprep.subr.mxu0 0.0
        %1096 = vmatpush1.msra.mxu0 0.0
        %1097 = vmatprep.subr.mxu0 0.0
        %1098 = vmatpush1.msra.mxu0 0.0
        %1099 = vmatprep.subr.mxu0 0.0
        %1100 = vmatpush1.msra.mxu0 0.0
        %1101 = vmatprep.subr.mxu0 0.0
        %1102 = vmatpush1.msra.mxu0 0.0
        %1103 = vmatprep.subr.mxu0 0.0
        %1104 = vmatpush1.msra.mxu0 0.0
        %1105 = vmatprep.subr.mxu0 0.0
        %1106 = vmatpush1.msra.mxu0 0.0
        %1107 = vmatprep.subr.mxu0 0.0
        %1108 = vmatpush1.msra.mxu0 0.0
        %1109 = vmatprep.subr.mxu0 0.0
        %1110 = vmatpush1.msra.mxu0 %v923
        %1111 = vmatprep.subr.mxu0 0.0
        %1112 = vmatpush2.msra.mxu0 0.0
        %1113 = vmatprep.subr.mxu0 0.0
        %1114 = vmatpush2.msra.mxu0 0.0
        %1115 = vmatprep.subr.mxu0 0.0
        %1116 = vmatpush2.msra.mxu0 0.0
        %1117 = vmatprep.subr.mxu0 0.0
        %1118 = vmatpush2.msra.mxu0 0.0
        %1119 = vmatprep.subr.mxu0 0.0
        %1120 = vmatpush2.msra.mxu0 0.0
        %1121 = vmatprep.subr.mxu0 0.0
        %1122 = vmatpush2.msra.mxu0 0.0
        %1123 = vmatprep.subr.mxu0 0.0
        %1124 = vmatpush2.msra.mxu0 0.0
        %1125 = vmatprep.subr.mxu0 0.0
        %1126 = vmatpush2.msra.mxu0 0.0
        %1127 = vmatprep.subr.mxu0 0.0
        %1128 = vmatpush2.msra.mxu0 0.0
        %1129 = vmatprep.subr.mxu0 0.0
        %1130 = vmatpush2.msra.mxu0 0.0
        %1131 = vmatprep.subr.mxu0 0.0
        %1132 = vmatpush2.msra.mxu0 0.0
        %1133 = vmatprep.subr.mxu0 0.0
        %1134 = vmatpush2.msra.mxu0 0.0
        %1135 = vmatprep.subr.mxu0 0.0
        %1136 = vmatpush2.msra.mxu0 0.0
        %1137 = vmatprep.subr.mxu0 0.0
        %1138 = vmatpush2.msra.mxu0 0.0
        %1139 = vmatprep.subr.mxu0 0.0
        %1140 = vmatpush2.msra.mxu0 0.0
        %1141 = vmatprep.subr.mxu0 0.0
        %1142 = vmatpush2.msra.mxu0 0.0
        %1143 = vmatprep.mubr.f32.mxu0 0.0
        %1144 = vmatmul.mubr.f32.gmra.mxu0 %v1077
        %v1145 = vpop.f32.mrf.mxu0
        %v1146 = vadd.f32 %v1073, %v1145
        %v1147 = vpop.f32.mrf.mxu0
        %1148 = vdwg.mxu0
        %s1149 = scalar_lea.vmem [#allocation7], 32
        %v1150 = vld [vmem:[%s1149] sm:$0xff]
        %v1151 = vld [vmem:[%s1149 + $0x8] sm:$0xff]
        %1152 = vmatprep.subr.mxu0 0.0
        %1153 = vmatpush1.msra.mxu0 0.0
        %1154 = vmatprep.subr.mxu0 0.0
        %1155 = vmatpush1.msra.mxu0 0.0
        %1156 = vmatprep.subr.mxu0 0.0
        %1157 = vmatpush1.msra.mxu0 0.0
        %1158 = vmatprep.subr.mxu0 0.0
        %1159 = vmatpush1.msra.mxu0 0.0
        %1160 = vmatprep.subr.mxu0 0.0
        %1161 = vmatpush1.msra.mxu0 0.0
        %1162 = vmatprep.subr.mxu0 0.0
        %1163 = vmatpush1.msra.mxu0 0.0
        %1164 = vmatprep.subr.mxu0 0.0
        %1165 = vmatpush1.msra.mxu0 0.0
        %1166 = vmatprep.subr.mxu0 0.0
        %1167 = vmatpush1.msra.mxu0 0.0
        %1168 = vmatprep.subr.mxu0 0.0
        %1169 = vmatpush1.msra.mxu0 0.0
        %1170 = vmatprep.subr.mxu0 0.0
        %1171 = vmatpush1.msra.mxu0 0.0
        %1172 = vmatprep.subr.mxu0 0.0
        %1173 = vmatpush1.msra.mxu0 0.0
        %1174 = vmatprep.subr.mxu0 0.0
        %1175 = vmatpush1.msra.mxu0 0.0
        %1176 = vmatprep.subr.mxu0 0.0
        %1177 = vmatpush1.msra.mxu0 0.0
        %1178 = vmatprep.subr.mxu0 0.0
        %1179 = vmatpush1.msra.mxu0 0.0
        %1180 = vmatprep.subr.mxu0 0.0
        %1181 = vmatpush1.msra.mxu0 %v1151
        %1182 = vmatprep.subr.mxu0 0.0
        %1183 = vmatpush1.msra.mxu0 %v1150
        %1184 = vmatprep.subr.mxu0 0.0
        %1185 = vmatpush2.msra.mxu0 0.0
        %1186 = vmatprep.subr.mxu0 0.0
        %1187 = vmatpush2.msra.mxu0 0.0
        %1188 = vmatprep.subr.mxu0 0.0
        %1189 = vmatpush2.msra.mxu0 0.0
        %1190 = vmatprep.subr.mxu0 0.0
        %1191 = vmatpush2.msra.mxu0 0.0
        %1192 = vmatprep.subr.mxu0 0.0
        %1193 = vmatpush2.msra.mxu0 0.0
        %1194 = vmatprep.subr.mxu0 0.0
        %1195 = vmatpush2.msra.mxu0 0.0
        %1196 = vmatprep.subr.mxu0 0.0
        %1197 = vmatpush2.msra.mxu0 0.0
        %1198 = vmatprep.subr.mxu0 0.0
        %1199 = vmatpush2.msra.mxu0 0.0
        %1200 = vmatprep.subr.mxu0 0.0
        %1201 = vmatpush2.msra.mxu0 0.0
        %1202 = vmatprep.subr.mxu0 0.0
        %1203 = vmatpush2.msra.mxu0 0.0
        %1204 = vmatprep.subr.mxu0 0.0
        %1205 = vmatpush2.msra.mxu0 0.0
        %1206 = vmatprep.subr.mxu0 0.0
        %1207 = vmatpush2.msra.mxu0 0.0
        %1208 = vmatprep.subr.mxu0 0.0
        %1209 = vmatpush2.msra.mxu0 0.0
        %1210 = vmatprep.subr.mxu0 0.0
        %1211 = vmatpush2.msra.mxu0 0.0
        %1212 = vmatprep.subr.mxu0 0.0
        %1213 = vmatpush2.msra.mxu0 0.0
        %1214 = vmatprep.subr.mxu0 0.0
        %1215 = vmatpush2.msra.mxu0 0.0
        %1216 = vmatprep.mubr.f32.mxu0 0.0
        %1217 = vmatmul.mubr.f32.gmra.mxu0 %v854
        %v1218 = vpop.f32.mrf.mxu0
        %v1219 = vadd.f32 0.0, %v1218
        %v1220 = vpop.f32.mrf.mxu0
        %1221 = vdwg.mxu0
        %s1222 = scalar_lea.vmem [#allocation13], 16
        %v1223 = vld [vmem:[%s1222] sm:$0xff]
        %v1225 = vsel %vm1002, %v1223, 0
        %1227 = vmatprep.subr.mxu0 0.0
        %1228 = vmatpush1.msra.mxu0 0.0
        %1229 = vmatprep.subr.mxu0 0.0
        %1230 = vmatpush1.msra.mxu0 0.0
        %1231 = vmatprep.subr.mxu0 0.0
        %1232 = vmatpush1.msra.mxu0 0.0
        %1233 = vmatprep.subr.mxu0 0.0
        %1234 = vmatpush1.msra.mxu0 0.0
        %1235 = vmatprep.subr.mxu0 0.0
        %1236 = vmatpush1.msra.mxu0 0.0
        %1237 = vmatprep.subr.mxu0 0.0
        %1238 = vmatpush1.msra.mxu0 0.0
        %1239 = vmatprep.subr.mxu0 0.0
        %1240 = vmatpush1.msra.mxu0 0.0
        %1241 = vmatprep.subr.mxu0 0.0
        %1242 = vmatpush1.msra.mxu0 0.0
        %1243 = vmatprep.subr.mxu0 0.0
        %1244 = vmatpush1.msra.mxu0 0.0
        %1245 = vmatprep.subr.mxu0 0.0
        %1246 = vmatpush1.msra.mxu0 0.0
        %1247 = vmatprep.subr.mxu0 0.0
        %1248 = vmatpush1.msra.mxu0 0.0
        %1249 = vmatprep.subr.mxu0 0.0
        %1250 = vmatpush1.msra.mxu0 0.0
        %1251 = vmatprep.subr.mxu0 0.0
        %1252 = vmatpush1.msra.mxu0 0.0
        %1253 = vmatprep.subr.mxu0 0.0
        %1254 = vmatpush1.msra.mxu0 0.0
        %1255 = vmatprep.subr.mxu0 0.0
        %1256 = vmatpush1.msra.mxu0 0.0
        %1257 = vmatprep.subr.mxu0 0.0
        %1258 = vmatpush1.msra.mxu0 %v1219
        %1259 = vmatprep.subr.mxu0 0.0
        %1260 = vmatpush2.msra.mxu0 0.0
        %1261 = vmatprep.subr.mxu0 0.0
        %1262 = vmatpush2.msra.mxu0 0.0
        %1263 = vmatprep.subr.mxu0 0.0
        %1264 = vmatpush2.msra.mxu0 0.0
        %1265 = vmatprep.subr.mxu0 0.0
        %1266 = vmatpush2.msra.mxu0 0.0
        %1267 = vmatprep.subr.mxu0 0.0
        %1268 = vmatpush2.msra.mxu0 0.0
        %1269 = vmatprep.subr.mxu0 0.0
        %1270 = vmatpush2.msra.mxu0 0.0
        %1271 = vmatprep.subr.mxu0 0.0
        %1272 = vmatpush2.msra.mxu0 0.0
        %1273 = vmatprep.subr.mxu0 0.0
        %1274 = vmatpush2.msra.mxu0 0.0
        %1275 = vmatprep.subr.mxu0 0.0
        %1276 = vmatpush2.msra.mxu0 0.0
        %1277 = vmatprep.subr.mxu0 0.0
        %1278 = vmatpush2.msra.mxu0 0.0
        %1279 = vmatprep.subr.mxu0 0.0
        %1280 = vmatpush2.msra.mxu0 0.0
        %1281 = vmatprep.subr.mxu0 0.0
        %1282 = vmatpush2.msra.mxu0 0.0
        %1283 = vmatprep.subr.mxu0 0.0
        %1284 = vmatpush2.msra.mxu0 0.0
        %1285 = vmatprep.subr.mxu0 0.0
        %1286 = vmatpush2.msra.mxu0 0.0
        %1287 = vmatprep.subr.mxu0 0.0
        %1288 = vmatpush2.msra.mxu0 0.0
        %1289 = vmatprep.subr.mxu0 0.0
        %1290 = vmatpush2.msra.mxu0 0.0
        %1291 = vmatprep.mubr.f32.mxu0 0.0
        %1292 = vmatmul.mubr.f32.gmra.mxu0 %v1225
        %v1293 = vpop.f32.mrf.mxu0
        %v1294 = vadd.f32 0.0, %v1293
        %v1295 = vpop.f32.mrf.mxu0
        %1296 = vdwg.mxu0
        %v1297 = vadd.f32 %v1146, %v1294
        %v1298 = vld [vmem:[#allocation14] sm:$0xff]
        %1300 = vset.pattern.permute.xlu0 0
        %1301 = vperm.xlu0 %1300, %v1298
        %v1302 = vpop.permute.xlu0 %1301
        %v1304 = vadd.f32 %v1297, %v1302
        %v1305 = vadd.f32 %v1304, %v848
        %v1306 = vmax.f32 %v1305, 0.0
        %v1307 = vld [vmem:[#allocation8] sm:$0xff]
        %v1308 = vld [vmem:[#allocation8 + $0x8] sm:$0xff]
        %v1310 = vsel %vm852, %v1306, 0
        %1312 = vmatprep.subr.mxu0 0.0
        %1313 = vmatpush1.msra.mxu0 0.0
        %1314 = vmatprep.subr.mxu0 0.0
        %1315 = vmatpush1.msra.mxu0 0.0
        %1316 = vmatprep.subr.mxu0 0.0
        %1317 = vmatpush1.msra.mxu0 0.0
        %1318 = vmatprep.subr.mxu0 0.0
        %1319 = vmatpush1.msra.mxu0 0.0
        %1320 = vmatprep.subr.mxu0 0.0
        %1321 = vmatpush1.msra.mxu0 0.0
        %1322 = vmatprep.subr.mxu0 0.0
        %1323 = vmatpush1.msra.mxu0 0.0
        %1324 = vmatprep.subr.mxu0 0.0
        %1325 = vmatpush1.msra.mxu0 0.0
        %1326 = vmatprep.subr.mxu0 0.0
        %1327 = vmatpush1.msra.mxu0 0.0
        %1328 = vmatprep.subr.mxu0 0.0
        %1329 = vmatpush1.msra.mxu0 0.0
        %1330 = vmatprep.subr.mxu0 0.0
        %1331 = vmatpush1.msra.mxu0 0.0
        %1332 = vmatprep.subr.mxu0 0.0
        %1333 = vmatpush1.msra.mxu0 0.0
        %1334 = vmatprep.subr.mxu0 0.0
        %1335 = vmatpush1.msra.mxu0 0.0
        %1336 = vmatprep.subr.mxu0 0.0
        %1337 = vmatpush1.msra.mxu0 0.0
        %1338 = vmatprep.subr.mxu0 0.0
        %1339 = vmatpush1.msra.mxu0 0.0
        %1340 = vmatprep.subr.mxu0 0.0
        %1341 = vmatpush1.msra.mxu0 %v1308
        %1342 = vmatprep.subr.mxu0 0.0
        %1343 = vmatpush1.msra.mxu0 %v1307
        %1344 = vmatprep.subr.mxu0 0.0
        %1345 = vmatpush2.msra.mxu0 0.0
        %1346 = vmatprep.subr.mxu0 0.0
        %1347 = vmatpush2.msra.mxu0 0.0
        %1348 = vmatprep.subr.mxu0 0.0
        %1349 = vmatpush2.msra.mxu0 0.0
        %1350 = vmatprep.subr.mxu0 0.0
        %1351 = vmatpush2.msra.mxu0 0.0
        %1352 = vmatprep.subr.mxu0 0.0
        %1353 = vmatpush2.msra.mxu0 0.0
        %1354 = vmatprep.subr.mxu0 0.0
        %1355 = vmatpush2.msra.mxu0 0.0
        %1356 = vmatprep.subr.mxu0 0.0
        %1357 = vmatpush2.msra.mxu0 0.0
        %1358 = vmatprep.subr.mxu0 0.0
        %1359 = vmatpush2.msra.mxu0 0.0
        %1360 = vmatprep.subr.mxu0 0.0
        %1361 = vmatpush2.msra.mxu0 0.0
        %1362 = vmatprep.subr.mxu0 0.0
        %1363 = vmatpush2.msra.mxu0 0.0
        %1364 = vmatprep.subr.mxu0 0.0
        %1365 = vmatpush2.msra.mxu0 0.0
        %1366 = vmatprep.subr.mxu0 0.0
        %1367 = vmatpush2.msra.mxu0 0.0
        %1368 = vmatprep.subr.mxu0 0.0
        %1369 = vmatpush2.msra.mxu0 0.0
        %1370 = vmatprep.subr.mxu0 0.0
        %1371 = vmatpush2.msra.mxu0 0.0
        %1372 = vmatprep.subr.mxu0 0.0
        %1373 = vmatpush2.msra.mxu0 0.0
        %1374 = vmatprep.subr.mxu0 0.0
        %1375 = vmatpush2.msra.mxu0 0.0
        %1376 = vmatprep.mubr.f32.mxu0 0.0
        %1377 = vmatmul.mubr.f32.gmra.mxu0 %v1310
        %v1378 = vpop.f32.mrf.mxu0
        %v1379 = vadd.f32 0.0, %v1378
        %v1380 = vpop.f32.mrf.mxu0
        %1381 = vdwg.mxu0
        %v1382 = vld [vmem:[#allocation16] sm:$0xf]
        %s1383 = scalar_lea.vmem [#allocation8], 16
        %v1384 = vld [vmem:[%s1383] sm:$0xff]
        %v1385 = vld [vmem:[%s1383 + $0x8] sm:$0xff]
        %1386 = vmatprep.subr.mxu0 0.0
        %1387 = vmatpush1.msra.mxu0 0.0
        %1388 = vmatprep.subr.mxu0 0.0
        %1389 = vmatpush1.msra.mxu0 0.0
        %1390 = vmatprep.subr.mxu0 0.0
        %1391 = vmatpush1.msra.mxu0 0.0
        %1392 = vmatprep.subr.mxu0 0.0
        %1393 = vmatpush1.msra.mxu0 0.0
        %1394 = vmatprep.subr.mxu0 0.0
        %1395 = vmatpush1.msra.mxu0 0.0
        %1396 = vmatprep.subr.mxu0 0.0
        %1397 = vmatpush1.msra.mxu0 0.0
        %1398 = vmatprep.subr.mxu0 0.0
        %1399 = vmatpush1.msra.mxu0 0.0
        %1400 = vmatprep.subr.mxu0 0.0
        %1401 = vmatpush1.msra.mxu0 0.0
        %1402 = vmatprep.subr.mxu0 0.0
        %1403 = vmatpush1.msra.mxu0 0.0
        %1404 = vmatprep.subr.mxu0 0.0
        %1405 = vmatpush1.msra.mxu0 0.0
        %1406 = vmatprep.subr.mxu0 0.0
        %1407 = vmatpush1.msra.mxu0 0.0
        %1408 = vmatprep.subr.mxu0 0.0
        %1409 = vmatpush1.msra.mxu0 0.0
        %1410 = vmatprep.subr.mxu0 0.0
        %1411 = vmatpush1.msra.mxu0 0.0
        %1412 = vmatprep.subr.mxu0 0.0
        %1413 = vmatpush1.msra.mxu0 0.0
        %1414 = vmatprep.subr.mxu0 0.0
        %1415 = vmatpush1.msra.mxu0 %v1385
        %1416 = vmatprep.subr.mxu0 0.0
        %1417 = vmatpush1.msra.mxu0 %v1384
        %1418 = vmatprep.subr.mxu0 0.0
        %1419 = vmatpush2.msra.mxu0 0.0
        %1420 = vmatprep.subr.mxu0 0.0
        %1421 = vmatpush2.msra.mxu0 0.0
        %1422 = vmatprep.subr.mxu0 0.0
        %1423 = vmatpush2.msra.mxu0 0.0
        %1424 = vmatprep.subr.mxu0 0.0
        %1425 = vmatpush2.msra.mxu0 0.0
        %1426 = vmatprep.subr.mxu0 0.0
        %1427 = vmatpush2.msra.mxu0 0.0
        %1428 = vmatprep.subr.mxu0 0.0
        %1429 = vmatpush2.msra.mxu0 0.0
        %1430 = vmatprep.subr.mxu0 0.0
        %1431 = vmatpush2.msra.mxu0 0.0
        %1432 = vmatprep.subr.mxu0 0.0
        %1433 = vmatpush2.msra.mxu0 0.0
        %1434 = vmatprep.subr.mxu0 0.0
        %1435 = vmatpush2.msra.mxu0 0.0
        %1436 = vmatprep.subr.mxu0 0.0
        %1437 = vmatpush2.msra.mxu0 0.0
        %1438 = vmatprep.subr.mxu0 0.0
        %1439 = vmatpush2.msra.mxu0 0.0
        %1440 = vmatprep.subr.mxu0 0.0
        %1441 = vmatpush2.msra.mxu0 0.0
        %1442 = vmatprep.subr.mxu0 0.0
        %1443 = vmatpush2.msra.mxu0 0.0
        %1444 = vmatprep.subr.mxu0 0.0
        %1445 = vmatpush2.msra.mxu0 0.0
        %1446 = vmatprep.subr.mxu0 0.0
        %1447 = vmatpush2.msra.mxu0 0.0
        %1448 = vmatprep.subr.mxu0 0.0
        %1449 = vmatpush2.msra.mxu0 0.0
        %1450 = vmatprep.mubr.f32.mxu0 0.0
        %1451 = vmatmul.mubr.f32.gmra.mxu0 %v1310
        %v1452 = vpop.f32.mrf.mxu0
        %v1453 = vadd.f32 0.0, %v1452
        %v1454 = vpop.f32.mrf.mxu0
        %1455 = vdwg.mxu0
        %s1456 = scalar_lea.vmem [#allocation16], 4
        %v1457 = vld [vmem:[%s1456] sm:$0xf]
        %v1459 = vsel %vm1002, %v1457, 0
        %1461 = vmatprep.subr.mxu0 0.0
        %1462 = vmatpush1.msra.mxu0 0.0
        %1463 = vmatprep.subr.mxu0 0.0
        %1464 = vmatpush1.msra.mxu0 0.0
        %1465 = vmatprep.subr.mxu0 0.0
        %1466 = vmatpush1.msra.mxu0 0.0
        %1467 = vmatprep.subr.mxu0 0.0
        %1468 = vmatpush1.msra.mxu0 0.0
        %1469 = vmatprep.subr.mxu0 0.0
        %1470 = vmatpush1.msra.mxu0 0.0
        %1471 = vmatprep.subr.mxu0 0.0
        %1472 = vmatpush1.msra.mxu0 0.0
        %1473 = vmatprep.subr.mxu0 0.0
        %1474 = vmatpush1.msra.mxu0 0.0
        %1475 = vmatprep.subr.mxu0 0.0
        %1476 = vmatpush1.msra.mxu0 0.0
        %1477 = vmatprep.subr.mxu0 0.0
        %1478 = vmatpush1.msra.mxu0 0.0
        %1479 = vmatprep.subr.mxu0 0.0
        %1480 = vmatpush1.msra.mxu0 0.0
        %1481 = vmatprep.subr.mxu0 0.0
        %1482 = vmatpush1.msra.mxu0 0.0
        %1483 = vmatprep.subr.mxu0 0.0
        %1484 = vmatpush1.msra.mxu0 0.0
        %1485 = vmatprep.subr.mxu0 0.0
        %1486 = vmatpush1.msra.mxu0 0.0
        %1487 = vmatprep.subr.mxu0 0.0
        %1488 = vmatpush1.msra.mxu0 0.0
        %1489 = vmatprep.subr.mxu0 0.0
        %1490 = vmatpush1.msra.mxu0 0.0
        %1491 = vmatprep.subr.mxu0 0.0
        %1492 = vmatpush1.msra.mxu0 %v1453
        %1493 = vmatprep.subr.mxu0 0.0
        %1494 = vmatpush2.msra.mxu0 0.0
        %1495 = vmatprep.subr.mxu0 0.0
        %1496 = vmatpush2.msra.mxu0 0.0
        %1497 = vmatprep.subr.mxu0 0.0
        %1498 = vmatpush2.msra.mxu0 0.0
        %1499 = vmatprep.subr.mxu0 0.0
        %1500 = vmatpush2.msra.mxu0 0.0
        %1501 = vmatprep.subr.mxu0 0.0
        %1502 = vmatpush2.msra.mxu0 0.0
        %1503 = vmatprep.subr.mxu0 0.0
        %1504 = vmatpush2.msra.mxu0 0.0
        %1505 = vmatprep.subr.mxu0 0.0
        %1506 = vmatpush2.msra.mxu0 0.0
        %1507 = vmatprep.subr.mxu0 0.0
        %1508 = vmatpush2.msra.mxu0 0.0
        %1509 = vmatprep.subr.mxu0 0.0
        %1510 = vmatpush2.msra.mxu0 0.0
        %1511 = vmatprep.subr.mxu0 0.0
        %1512 = vmatpush2.msra.mxu0 0.0
        %1513 = vmatprep.subr.mxu0 0.0
        %1514 = vmatpush2.msra.mxu0 0.0
        %1515 = vmatprep.subr.mxu0 0.0
        %1516 = vmatpush2.msra.mxu0 0.0
        %1517 = vmatprep.subr.mxu0 0.0
        %1518 = vmatpush2.msra.mxu0 0.0
        %1519 = vmatprep.subr.mxu0 0.0
        %1520 = vmatpush2.msra.mxu0 0.0
        %1521 = vmatprep.subr.mxu0 0.0
        %1522 = vmatpush2.msra.mxu0 0.0
        %1523 = vmatprep.subr.mxu0 0.0
        %1524 = vmatpush2.msra.mxu0 0.0
        %1525 = vmatprep.mubr.f32.mxu0 0.0
        %1526 = vmatmul.mubr.f32.gmra.mxu0 %v1459
        %v1527 = vpop.f32.mrf.mxu0
        %v1528 = vadd.f32 0.0, %v1527
        %v1529 = vpop.f32.mrf.mxu0
        %1530 = vdwg.mxu0
        %v1532 = vsel %vm1002, %v1382, 0
        %1534 = vmatprep.subr.mxu0 0.0
        %1535 = vmatpush1.msra.mxu0 0.0
        %1536 = vmatprep.subr.mxu0 0.0
        %1537 = vmatpush1.msra.mxu0 0.0
        %1538 = vmatprep.subr.mxu0 0.0
        %1539 = vmatpush1.msra.mxu0 0.0
        %1540 = vmatprep.subr.mxu0 0.0
        %1541 = vmatpush1.msra.mxu0 0.0
        %1542 = vmatprep.subr.mxu0 0.0
        %1543 = vmatpush1.msra.mxu0 0.0
        %1544 = vmatprep.subr.mxu0 0.0
        %1545 = vmatpush1.msra.mxu0 0.0
        %1546 = vmatprep.subr.mxu0 0.0
        %1547 = vmatpush1.msra.mxu0 0.0
        %1548 = vmatprep.subr.mxu0 0.0
        %1549 = vmatpush1.msra.mxu0 0.0
        %1550 = vmatprep.subr.mxu0 0.0
        %1551 = vmatpush1.msra.mxu0 0.0
        %1552 = vmatprep.subr.mxu0 0.0
        %1553 = vmatpush1.msra.mxu0 0.0
        %1554 = vmatprep.subr.mxu0 0.0
        %1555 = vmatpush1.msra.mxu0 0.0
        %1556 = vmatprep.subr.mxu0 0.0
        %1557 = vmatpush1.msra.mxu0 0.0
        %1558 = vmatprep.subr.mxu0 0.0
        %1559 = vmatpush1.msra.mxu0 0.0
        %1560 = vmatprep.subr.mxu0 0.0
        %1561 = vmatpush1.msra.mxu0 0.0
        %1562 = vmatprep.subr.mxu0 0.0
        %1563 = vmatpush1.msra.mxu0 0.0
        %1564 = vmatprep.subr.mxu0 0.0
        %1565 = vmatpush1.msra.mxu0 %v1379
        %1566 = vmatprep.subr.mxu0 0.0
        %1567 = vmatpush2.msra.mxu0 0.0
        %1568 = vmatprep.subr.mxu0 0.0
        %1569 = vmatpush2.msra.mxu0 0.0
        %1570 = vmatprep.subr.mxu0 0.0
        %1571 = vmatpush2.msra.mxu0 0.0
        %1572 = vmatprep.subr.mxu0 0.0
        %1573 = vmatpush2.msra.mxu0 0.0
        %1574 = vmatprep.subr.mxu0 0.0
        %1575 = vmatpush2.msra.mxu0 0.0
        %1576 = vmatprep.subr.mxu0 0.0
        %1577 = vmatpush2.msra.mxu0 0.0
        %1578 = vmatprep.subr.mxu0 0.0
        %1579 = vmatpush2.msra.mxu0 0.0
        %1580 = vmatprep.subr.mxu0 0.0
        %1581 = vmatpush2.msra.mxu0 0.0
        %1582 = vmatprep.subr.mxu0 0.0
        %1583 = vmatpush2.msra.mxu0 0.0
        %1584 = vmatprep.subr.mxu0 0.0
        %1585 = vmatpush2.msra.mxu0 0.0
        %1586 = vmatprep.subr.mxu0 0.0
        %1587 = vmatpush2.msra.mxu0 0.0
        %1588 = vmatprep.subr.mxu0 0.0
        %1589 = vmatpush2.msra.mxu0 0.0
        %1590 = vmatprep.subr.mxu0 0.0
        %1591 = vmatpush2.msra.mxu0 0.0
        %1592 = vmatprep.subr.mxu0 0.0
        %1593 = vmatpush2.msra.mxu0 0.0
        %1594 = vmatprep.subr.mxu0 0.0
        %1595 = vmatpush2.msra.mxu0 0.0
        %1596 = vmatprep.subr.mxu0 0.0
        %1597 = vmatpush2.msra.mxu0 0.0
        %1598 = vmatprep.mubr.f32.mxu0 0.0
        %1599 = vmatmul.mubr.f32.gmra.mxu0 %v1532
        %v1600 = vpop.f32.mrf.mxu0
        %v1601 = vadd.f32 %v1528, %v1600
        %v1602 = vpop.f32.mrf.mxu0
        %1603 = vdwg.mxu0
        %s1604 = scalar_lea.vmem [#allocation8], 32
        %v1605 = vld [vmem:[%s1604] sm:$0xff]
        %v1606 = vld [vmem:[%s1604 + $0x8] sm:$0xff]
        %1607 = vmatprep.subr.mxu0 0.0
        %1608 = vmatpush1.msra.mxu0 0.0
        %1609 = vmatprep.subr.mxu0 0.0
        %1610 = vmatpush1.msra.mxu0 0.0
        %1611 = vmatprep.subr.mxu0 0.0
        %1612 = vmatpush1.msra.mxu0 0.0
        %1613 = vmatprep.subr.mxu0 0.0
        %1614 = vmatpush1.msra.mxu0 0.0
        %1615 = vmatprep.subr.mxu0 0.0
        %1616 = vmatpush1.msra.mxu0 0.0
        %1617 = vmatprep.subr.mxu0 0.0
        %1618 = vmatpush1.msra.mxu0 0.0
        %1619 = vmatprep.subr.mxu0 0.0
        %1620 = vmatpush1.msra.mxu0 0.0
        %1621 = vmatprep.subr.mxu0 0.0
        %1622 = vmatpush1.msra.mxu0 0.0
        %1623 = vmatprep.subr.mxu0 0.0
        %1624 = vmatpush1.msra.mxu0 0.0
        %1625 = vmatprep.subr.mxu0 0.0
        %1626 = vmatpush1.msra.mxu0 0.0
        %1627 = vmatprep.subr.mxu0 0.0
        %1628 = vmatpush1.msra.mxu0 0.0
        %1629 = vmatprep.subr.mxu0 0.0
        %1630 = vmatpush1.msra.mxu0 0.0
        %1631 = vmatprep.subr.mxu0 0.0
        %1632 = vmatpush1.msra.mxu0 0.0
        %1633 = vmatprep.subr.mxu0 0.0
        %1634 = vmatpush1.msra.mxu0 0.0
        %1635 = vmatprep.subr.mxu0 0.0
        %1636 = vmatpush1.msra.mxu0 %v1606
        %1637 = vmatprep.subr.mxu0 0.0
        %1638 = vmatpush1.msra.mxu0 %v1605
        %1639 = vmatprep.subr.mxu0 0.0
        %1640 = vmatpush2.msra.mxu0 0.0
        %1641 = vmatprep.subr.mxu0 0.0
        %1642 = vmatpush2.msra.mxu0 0.0
        %1643 = vmatprep.subr.mxu0 0.0
        %1644 = vmatpush2.msra.mxu0 0.0
        %1645 = vmatprep.subr.mxu0 0.0
        %1646 = vmatpush2.msra.mxu0 0.0
        %1647 = vmatprep.subr.mxu0 0.0
        %1648 = vmatpush2.msra.mxu0 0.0
        %1649 = vmatprep.subr.mxu0 0.0
        %1650 = vmatpush2.msra.mxu0 0.0
        %1651 = vmatprep.subr.mxu0 0.0
        %1652 = vmatpush2.msra.mxu0 0.0
        %1653 = vmatprep.subr.mxu0 0.0
        %1654 = vmatpush2.msra.mxu0 0.0
        %1655 = vmatprep.subr.mxu0 0.0
        %1656 = vmatpush2.msra.mxu0 0.0
        %1657 = vmatprep.subr.mxu0 0.0
        %1658 = vmatpush2.msra.mxu0 0.0
        %1659 = vmatprep.subr.mxu0 0.0
        %1660 = vmatpush2.msra.mxu0 0.0
        %1661 = vmatprep.subr.mxu0 0.0
        %1662 = vmatpush2.msra.mxu0 0.0
        %1663 = vmatprep.subr.mxu0 0.0
        %1664 = vmatpush2.msra.mxu0 0.0
        %1665 = vmatprep.subr.mxu0 0.0
        %1666 = vmatpush2.msra.mxu0 0.0
        %1667 = vmatprep.subr.mxu0 0.0
        %1668 = vmatpush2.msra.mxu0 0.0
        %1669 = vmatprep.subr.mxu0 0.0
        %1670 = vmatpush2.msra.mxu0 0.0
        %1671 = vmatprep.mubr.f32.mxu0 0.0
        %1672 = vmatmul.mubr.f32.gmra.mxu0 %v1310
        %v1673 = vpop.f32.mrf.mxu0
        %v1674 = vadd.f32 0.0, %v1673
        %v1675 = vpop.f32.mrf.mxu0
        %1676 = vdwg.mxu0
        %s1677 = scalar_lea.vmem [#allocation16], 8
        %v1678 = vld [vmem:[%s1677] sm:$0xf]
        %v1680 = vsel %vm1002, %v1678, 0
        %1682 = vmatprep.subr.mxu0 0.0
        %1683 = vmatpush1.msra.mxu0 0.0
        %1684 = vmatprep.subr.mxu0 0.0
        %1685 = vmatpush1.msra.mxu0 0.0
        %1686 = vmatprep.subr.mxu0 0.0
        %1687 = vmatpush1.msra.mxu0 0.0
        %1688 = vmatprep.subr.mxu0 0.0
        %1689 = vmatpush1.msra.mxu0 0.0
        %1690 = vmatprep.subr.mxu0 0.0
        %1691 = vmatpush1.msra.mxu0 0.0
        %1692 = vmatprep.subr.mxu0 0.0
        %1693 = vmatpush1.msra.mxu0 0.0
        %1694 = vmatprep.subr.mxu0 0.0
        %1695 = vmatpush1.msra.mxu0 0.0
        %1696 = vmatprep.subr.mxu0 0.0
        %1697 = vmatpush1.msra.mxu0 0.0
        %1698 = vmatprep.subr.mxu0 0.0
        %1699 = vmatpush1.msra.mxu0 0.0
        %1700 = vmatprep.subr.mxu0 0.0
        %1701 = vmatpush1.msra.mxu0 0.0
        %1702 = vmatprep.subr.mxu0 0.0
        %1703 = vmatpush1.msra.mxu0 0.0
        %1704 = vmatprep.subr.mxu0 0.0
        %1705 = vmatpush1.msra.mxu0 0.0
        %1706 = vmatprep.subr.mxu0 0.0
        %1707 = vmatpush1.msra.mxu0 0.0
        %1708 = vmatprep.subr.mxu0 0.0
        %1709 = vmatpush1.msra.mxu0 0.0
        %1710 = vmatprep.subr.mxu0 0.0
        %1711 = vmatpush1.msra.mxu0 0.0
        %1712 = vmatprep.subr.mxu0 0.0
        %1713 = vmatpush1.msra.mxu0 %v1674
        %1714 = vmatprep.subr.mxu0 0.0
        %1715 = vmatpush2.msra.mxu0 0.0
        %1716 = vmatprep.subr.mxu0 0.0
        %1717 = vmatpush2.msra.mxu0 0.0
        %1718 = vmatprep.subr.mxu0 0.0
        %1719 = vmatpush2.msra.mxu0 0.0
        %1720 = vmatprep.subr.mxu0 0.0
        %1721 = vmatpush2.msra.mxu0 0.0
        %1722 = vmatprep.subr.mxu0 0.0
        %1723 = vmatpush2.msra.mxu0 0.0
        %1724 = vmatprep.subr.mxu0 0.0
        %1725 = vmatpush2.msra.mxu0 0.0
        %1726 = vmatprep.subr.mxu0 0.0
        %1727 = vmatpush2.msra.mxu0 0.0
        %1728 = vmatprep.subr.mxu0 0.0
        %1729 = vmatpush2.msra.mxu0 0.0
        %1730 = vmatprep.subr.mxu0 0.0
        %1731 = vmatpush2.msra.mxu0 0.0
        %1732 = vmatprep.subr.mxu0 0.0
        %1733 = vmatpush2.msra.mxu0 0.0
        %1734 = vmatprep.subr.mxu0 0.0
        %1735 = vmatpush2.msra.mxu0 0.0
        %1736 = vmatprep.subr.mxu0 0.0
        %1737 = vmatpush2.msra.mxu0 0.0
        %1738 = vmatprep.subr.mxu0 0.0
        %1739 = vmatpush2.msra.mxu0 0.0
        %1740 = vmatprep.subr.mxu0 0.0
        %1741 = vmatpush2.msra.mxu0 0.0
        %1742 = vmatprep.subr.mxu0 0.0
        %1743 = vmatpush2.msra.mxu0 0.0
        %1744 = vmatprep.subr.mxu0 0.0
        %1745 = vmatpush2.msra.mxu0 0.0
        %1746 = vmatprep.mubr.f32.mxu0 0.0
        %1747 = vmatmul.mubr.f32.gmra.mxu0 %v1680
        %v1748 = vpop.f32.mrf.mxu0
        %v1749 = vadd.f32 0.0, %v1748
        %v1750 = vpop.f32.mrf.mxu0
        %1751 = vdwg.mxu0
        %v1752 = vadd.f32 %v1601, %v1749
        %v1753 = vld [vmem:[#allocation17] sm:$0xf]
        %1755 = vset.pattern.permute.xlu0 0
        %1756 = vperm.xlu0 %1755, %v1753
        %v1757 = vpop.permute.xlu0 %1756
        %v1759 = vadd.f32 %v1752, %v1757
        %v1760 = vmax.f32 %v1759, 0.0
        %v1761 = vld [vmem:[#allocation10] sm:$0xff]
        %v1763 = vsel %vm1002, %v849, 0
        %1765 = vmatprep.subr.mxu0 0.0
        %1766 = vmatpush1.msra.mxu0 0.0
        %1767 = vmatprep.subr.mxu0 0.0
        %1768 = vmatpush1.msra.mxu0 0.0
        %1769 = vmatprep.subr.mxu0 0.0
        %1770 = vmatpush1.msra.mxu0 0.0
        %1771 = vmatprep.subr.mxu0 0.0
        %1772 = vmatpush1.msra.mxu0 0.0
        %1773 = vmatprep.subr.mxu0 0.0
        %1774 = vmatpush1.msra.mxu0 0.0
        %1775 = vmatprep.subr.mxu0 0.0
        %1776 = vmatpush1.msra.mxu0 0.0
        %1777 = vmatprep.subr.mxu0 0.0
        %1778 = vmatpush1.msra.mxu0 0.0
        %1779 = vmatprep.subr.mxu0 0.0
        %1780 = vmatpush1.msra.mxu0 0.0
        %1781 = vmatprep.subr.mxu0 0.0
        %1782 = vmatpush1.msra.mxu0 0.0
        %1783 = vmatprep.subr.mxu0 0.0
        %1784 = vmatpush1.msra.mxu0 0.0
        %1785 = vmatprep.subr.mxu0 0.0
        %1786 = vmatpush1.msra.mxu0 0.0
        %1787 = vmatprep.subr.mxu0 0.0
        %1788 = vmatpush1.msra.mxu0 0.0
        %1789 = vmatprep.subr.mxu0 0.0
        %1790 = vmatpush1.msra.mxu0 0.0
        %1791 = vmatprep.subr.mxu0 0.0
        %1792 = vmatpush1.msra.mxu0 0.0
        %1793 = vmatprep.subr.mxu0 0.0
        %1794 = vmatpush1.msra.mxu0 0.0
        %1795 = vmatprep.subr.mxu0 0.0
        %1796 = vmatpush1.msra.mxu0 %v1761
        %1797 = vmatprep.subr.mxu0 0.0
        %1798 = vmatpush2.msra.mxu0 0.0
        %1799 = vmatprep.subr.mxu0 0.0
        %1800 = vmatpush2.msra.mxu0 0.0
        %1801 = vmatprep.subr.mxu0 0.0
        %1802 = vmatpush2.msra.mxu0 0.0
        %1803 = vmatprep.subr.mxu0 0.0
        %1804 = vmatpush2.msra.mxu0 0.0
        %1805 = vmatprep.subr.mxu0 0.0
        %1806 = vmatpush2.msra.mxu0 0.0
        %1807 = vmatprep.subr.mxu0 0.0
        %1808 = vmatpush2.msra.mxu0 0.0
        %1809 = vmatprep.subr.mxu0 0.0
        %1810 = vmatpush2.msra.mxu0 0.0
        %1811 = vmatprep.subr.mxu0 0.0
        %1812 = vmatpush2.msra.mxu0 0.0
        %1813 = vmatprep.subr.mxu0 0.0
        %1814 = vmatpush2.msra.mxu0 0.0
        %1815 = vmatprep.subr.mxu0 0.0
        %1816 = vmatpush2.msra.mxu0 0.0
        %1817 = vmatprep.subr.mxu0 0.0
        %1818 = vmatpush2.msra.mxu0 0.0
        %1819 = vmatprep.subr.mxu0 0.0
        %1820 = vmatpush2.msra.mxu0 0.0
        %1821 = vmatprep.subr.mxu0 0.0
        %1822 = vmatpush2.msra.mxu0 0.0
        %1823 = vmatprep.subr.mxu0 0.0
        %1824 = vmatpush2.msra.mxu0 0.0
        %1825 = vmatprep.subr.mxu0 0.0
        %1826 = vmatpush2.msra.mxu0 0.0
        %1827 = vmatprep.subr.mxu0 0.0
        %1828 = vmatpush2.msra.mxu0 0.0
        %1829 = vmatprep.mubr.f32.mxu0 0.0
        %1830 = vmatmul.mubr.f32.gmra.mxu0 %v1763
        %v1831 = vpop.f32.mrf.mxu0
        %v1832 = vadd.f32 0.0, %v1831
        %v1833 = vpop.f32.mrf.mxu0
        %1834 = vdwg.mxu0
        %v1835 = vld [vmem:[#allocation19] sm:$0xf]
        %s1836 = scalar_lea.vmem [#allocation10], 8
        %v1837 = vld [vmem:[%s1836] sm:$0xff]
        %1838 = vmatprep.subr.mxu0 0.0
        %1839 = vmatpush1.msra.mxu0 0.0
        %1840 = vmatprep.subr.mxu0 0.0
        %1841 = vmatpush1.msra.mxu0 0.0
        %1842 = vmatprep.subr.mxu0 0.0
        %1843 = vmatpush1.msra.mxu0 0.0
        %1844 = vmatprep.subr.mxu0 0.0
        %1845 = vmatpush1.msra.mxu0 0.0
        %1846 = vmatprep.subr.mxu0 0.0
        %1847 = vmatpush1.msra.mxu0 0.0
        %1848 = vmatprep.subr.mxu0 0.0
        %1849 = vmatpush1.msra.mxu0 0.0
        %1850 = vmatprep.subr.mxu0 0.0
        %1851 = vmatpush1.msra.mxu0 0.0
        %1852 = vmatprep.subr.mxu0 0.0
        %1853 = vmatpush1.msra.mxu0 0.0
        %1854 = vmatprep.subr.mxu0 0.0
        %1855 = vmatpush1.msra.mxu0 0.0
        %1856 = vmatprep.subr.mxu0 0.0
        %1857 = vmatpush1.msra.mxu0 0.0
        %1858 = vmatprep.subr.mxu0 0.0
        %1859 = vmatpush1.msra.mxu0 0.0
        %1860 = vmatprep.subr.mxu0 0.0
        %1861 = vmatpush1.msra.mxu0 0.0
        %1862 = vmatprep.subr.mxu0 0.0
        %1863 = vmatpush1.msra.mxu0 0.0
        %1864 = vmatprep.subr.mxu0 0.0
        %1865 = vmatpush1.msra.mxu0 0.0
        %1866 = vmatprep.subr.mxu0 0.0
        %1867 = vmatpush1.msra.mxu0 0.0
        %1868 = vmatprep.subr.mxu0 0.0
        %1869 = vmatpush1.msra.mxu0 %v1837
        %1870 = vmatprep.subr.mxu0 0.0
        %1871 = vmatpush2.msra.mxu0 0.0
        %1872 = vmatprep.subr.mxu0 0.0
        %1873 = vmatpush2.msra.mxu0 0.0
        %1874 = vmatprep.subr.mxu0 0.0
        %1875 = vmatpush2.msra.mxu0 0.0
        %1876 = vmatprep.subr.mxu0 0.0
        %1877 = vmatpush2.msra.mxu0 0.0
        %1878 = vmatprep.subr.mxu0 0.0
        %1879 = vmatpush2.msra.mxu0 0.0
        %1880 = vmatprep.subr.mxu0 0.0
        %1881 = vmatpush2.msra.mxu0 0.0
        %1882 = vmatprep.subr.mxu0 0.0
        %1883 = vmatpush2.msra.mxu0 0.0
        %1884 = vmatprep.subr.mxu0 0.0
        %1885 = vmatpush2.msra.mxu0 0.0
        %1886 = vmatprep.subr.mxu0 0.0
        %1887 = vmatpush2.msra.mxu0 0.0
        %1888 = vmatprep.subr.mxu0 0.0
        %1889 = vmatpush2.msra.mxu0 0.0
        %1890 = vmatprep.subr.mxu0 0.0
        %1891 = vmatpush2.msra.mxu0 0.0
        %1892 = vmatprep.subr.mxu0 0.0
        %1893 = vmatpush2.msra.mxu0 0.0
        %1894 = vmatprep.subr.mxu0 0.0
        %1895 = vmatpush2.msra.mxu0 0.0
        %1896 = vmatprep.subr.mxu0 0.0
        %1897 = vmatpush2.msra.mxu0 0.0
        %1898 = vmatprep.subr.mxu0 0.0
        %1899 = vmatpush2.msra.mxu0 0.0
        %1900 = vmatprep.subr.mxu0 0.0
        %1901 = vmatpush2.msra.mxu0 0.0
        %1902 = vmatprep.mubr.f32.mxu0 0.0
        %1903 = vmatmul.mubr.f32.gmra.mxu0 %v1763
        %v1904 = vpop.f32.mrf.mxu0
        %v1905 = vadd.f32 0.0, %v1904
        %v1906 = vpop.f32.mrf.mxu0
        %1907 = vdwg.mxu0
        %s1908 = scalar_lea.vmem [#allocation19], 4
        %v1909 = vld [vmem:[%s1908] sm:$0xf]
        %vm1910 = vcmask 31744
        %v1912 = vsel %vm1910, %v1909, 0
        %vm1914 = vcmask 1043456
        %v1916 = vsel %vm1914, %v1905, 0
        %1918 = vmatprep.subr.mxu0 0.0
        %1919 = vmatpush1.msra.mxu0 0.0
        %1920 = vmatprep.subr.mxu0 0.0
        %1921 = vmatpush1.msra.mxu0 0.0
        %1922 = vmatprep.subr.mxu0 0.0
        %1923 = vmatpush1.msra.mxu0 0.0
        %1924 = vmatprep.subr.mxu0 0.0
        %1925 = vmatpush1.msra.mxu0 0.0
        %1926 = vmatprep.subr.mxu0 0.0
        %1927 = vmatpush1.msra.mxu0 0.0
        %1928 = vmatprep.subr.mxu0 0.0
        %1929 = vmatpush1.msra.mxu0 0.0
        %1930 = vmatprep.subr.mxu0 0.0
        %1931 = vmatpush1.msra.mxu0 0.0
        %1932 = vmatprep.subr.mxu0 0.0
        %1933 = vmatpush1.msra.mxu0 0.0
        %1934 = vmatprep.subr.mxu0 0.0
        %1935 = vmatpush1.msra.mxu0 0.0
        %1936 = vmatprep.subr.mxu0 0.0
        %1937 = vmatpush1.msra.mxu0 0.0
        %1938 = vmatprep.subr.mxu0 0.0
        %1939 = vmatpush1.msra.mxu0 0.0
        %1940 = vmatprep.subr.mxu0 0.0
        %1941 = vmatpush1.msra.mxu0 0.0
        %1942 = vmatprep.subr.mxu0 0.0
        %1943 = vmatpush1.msra.mxu0 0.0
        %1944 = vmatprep.subr.mxu0 0.0
        %1945 = vmatpush1.msra.mxu0 0.0
        %1946 = vmatprep.subr.mxu0 0.0
        %1947 = vmatpush1.msra.mxu0 0.0
        %1948 = vmatprep.subr.mxu0 0.0
        %1949 = vmatpush1.msra.mxu0 %v1916
        %1950 = vmatprep.subr.mxu0 0.0
        %1951 = vmatpush2.msra.mxu0 0.0
        %1952 = vmatprep.subr.mxu0 0.0
        %1953 = vmatpush2.msra.mxu0 0.0
        %1954 = vmatprep.subr.mxu0 0.0
        %1955 = vmatpush2.msra.mxu0 0.0
        %1956 = vmatprep.subr.mxu0 0.0
        %1957 = vmatpush2.msra.mxu0 0.0
        %1958 = vmatprep.subr.mxu0 0.0
        %1959 = vmatpush2.msra.mxu0 0.0
        %1960 = vmatprep.subr.mxu0 0.0
        %1961 = vmatpush2.msra.mxu0 0.0
        %1962 = vmatprep.subr.mxu0 0.0
        %1963 = vmatpush2.msra.mxu0 0.0
        %1964 = vmatprep.subr.mxu0 0.0
        %1965 = vmatpush2.msra.mxu0 0.0
        %1966 = vmatprep.subr.mxu0 0.0
        %1967 = vmatpush2.msra.mxu0 0.0
        %1968 = vmatprep.subr.mxu0 0.0
        %1969 = vmatpush2.msra.mxu0 0.0
        %1970 = vmatprep.subr.mxu0 0.0
        %1971 = vmatpush2.msra.mxu0 0.0
        %1972 = vmatprep.subr.mxu0 0.0
        %1973 = vmatpush2.msra.mxu0 0.0
        %1974 = vmatprep.subr.mxu0 0.0
        %1975 = vmatpush2.msra.mxu0 0.0
        %1976 = vmatprep.subr.mxu0 0.0
        %1977 = vmatpush2.msra.mxu0 0.0
        %1978 = vmatprep.subr.mxu0 0.0
        %1979 = vmatpush2.msra.mxu0 0.0
        %1980 = vmatprep.subr.mxu0 0.0
        %1981 = vmatpush2.msra.mxu0 0.0
        %1982 = vmatprep.mubr.f32.mxu0 0.0
        %1983 = vmatmul.mubr.f32.gmra.mxu0 %v1912
        %v1984 = vpop.f32.mrf.mxu0
        %v1985 = vadd.f32 0.0, %v1984
        %v1986 = vpop.f32.mrf.mxu0
        %1987 = vdwg.mxu0
        %v1989 = vsel %vm1910, %v1835, 0
        %v1992 = vsel %vm1914, %v1832, 0
        %1994 = vmatprep.subr.mxu0 0.0
        %1995 = vmatpush1.msra.mxu0 0.0
        %1996 = vmatprep.subr.mxu0 0.0
        %1997 = vmatpush1.msra.mxu0 0.0
        %1998 = vmatprep.subr.mxu0 0.0
        %1999 = vmatpush1.msra.mxu0 0.0
        %2000 = vmatprep.subr.mxu0 0.0
        %2001 = vmatpush1.msra.mxu0 0.0
        %2002 = vmatprep.subr.mxu0 0.0
        %2003 = vmatpush1.msra.mxu0 0.0
        %2004 = vmatprep.subr.mxu0 0.0
        %2005 = vmatpush1.msra.mxu0 0.0
        %2006 = vmatprep.subr.mxu0 0.0
        %2007 = vmatpush1.msra.mxu0 0.0
        %2008 = vmatprep.subr.mxu0 0.0
        %2009 = vmatpush1.msra.mxu0 0.0
        %2010 = vmatprep.subr.mxu0 0.0
        %2011 = vmatpush1.msra.mxu0 0.0
        %2012 = vmatprep.subr.mxu0 0.0
        %2013 = vmatpush1.msra.mxu0 0.0
        %2014 = vmatprep.subr.mxu0 0.0
        %2015 = vmatpush1.msra.mxu0 0.0
        %2016 = vmatprep.subr.mxu0 0.0
        %2017 = vmatpush1.msra.mxu0 0.0
        %2018 = vmatprep.subr.mxu0 0.0
        %2019 = vmatpush1.msra.mxu0 0.0
        %2020 = vmatprep.subr.mxu0 0.0
        %2021 = vmatpush1.msra.mxu0 0.0
        %2022 = vmatprep.subr.mxu0 0.0
        %2023 = vmatpush1.msra.mxu0 0.0
        %2024 = vmatprep.subr.mxu0 0.0
        %2025 = vmatpush1.msra.mxu0 %v1992
        %2026 = vmatprep.subr.mxu0 0.0
        %2027 = vmatpush2.msra.mxu0 0.0
        %2028 = vmatprep.subr.mxu0 0.0
        %2029 = vmatpush2.msra.mxu0 0.0
        %2030 = vmatprep.subr.mxu0 0.0
        %2031 = vmatpush2.msra.mxu0 0.0
        %2032 = vmatprep.subr.mxu0 0.0
        %2033 = vmatpush2.msra.mxu0 0.0
        %2034 = vmatprep.subr.mxu0 0.0
        %2035 = vmatpush2.msra.mxu0 0.0
        %2036 = vmatprep.subr.mxu0 0.0
        %2037 = vmatpush2.msra.mxu0 0.0
        %2038 = vmatprep.subr.mxu0 0.0
        %2039 = vmatpush2.msra.mxu0 0.0
        %2040 = vmatprep.subr.mxu0 0.0
        %2041 = vmatpush2.msra.mxu0 0.0
        %2042 = vmatprep.subr.mxu0 0.0
        %2043 = vmatpush2.msra.mxu0 0.0
        %2044 = vmatprep.subr.mxu0 0.0
        %2045 = vmatpush2.msra.mxu0 0.0
        %2046 = vmatprep.subr.mxu0 0.0
        %2047 = vmatpush2.msra.mxu0 0.0
        %2048 = vmatprep.subr.mxu0 0.0
        %2049 = vmatpush2.msra.mxu0 0.0
        %2050 = vmatprep.subr.mxu0 0.0
        %2051 = vmatpush2.msra.mxu0 0.0
        %2052 = vmatprep.subr.mxu0 0.0
        %2053 = vmatpush2.msra.mxu0 0.0
        %2054 = vmatprep.subr.mxu0 0.0
        %2055 = vmatpush2.msra.mxu0 0.0
        %2056 = vmatprep.subr.mxu0 0.0
        %2057 = vmatpush2.msra.mxu0 0.0
        %2058 = vmatprep.mubr.f32.mxu0 0.0
        %2059 = vmatmul.mubr.f32.gmra.mxu0 %v1989
        %v2060 = vpop.f32.mrf.mxu0
        %v2061 = vadd.f32 %v1985, %v2060
        %v2062 = vpop.f32.mrf.mxu0
        %2063 = vdwg.mxu0
        %s2064 = scalar_lea.vmem [#allocation10], 16
        %v2065 = vld [vmem:[%s2064] sm:$0xff]
        %2066 = vmatprep.subr.mxu0 0.0
        %2067 = vmatpush1.msra.mxu0 0.0
        %2068 = vmatprep.subr.mxu0 0.0
        %2069 = vmatpush1.msra.mxu0 0.0
        %2070 = vmatprep.subr.mxu0 0.0
        %2071 = vmatpush1.msra.mxu0 0.0
        %2072 = vmatprep.subr.mxu0 0.0
        %2073 = vmatpush1.msra.mxu0 0.0
        %2074 = vmatprep.subr.mxu0 0.0
        %2075 = vmatpush1.msra.mxu0 0.0
        %2076 = vmatprep.subr.mxu0 0.0
        %2077 = vmatpush1.msra.mxu0 0.0
        %2078 = vmatprep.subr.mxu0 0.0
        %2079 = vmatpush1.msra.mxu0 0.0
        %2080 = vmatprep.subr.mxu0 0.0
        %2081 = vmatpush1.msra.mxu0 0.0
        %2082 = vmatprep.subr.mxu0 0.0
        %2083 = vmatpush1.msra.mxu0 0.0
        %2084 = vmatprep.subr.mxu0 0.0
        %2085 = vmatpush1.msra.mxu0 0.0
        %2086 = vmatprep.subr.mxu0 0.0
        %2087 = vmatpush1.msra.mxu0 0.0
        %2088 = vmatprep.subr.mxu0 0.0
        %2089 = vmatpush1.msra.mxu0 0.0
        %2090 = vmatprep.subr.mxu0 0.0
        %2091 = vmatpush1.msra.mxu0 0.0
        %2092 = vmatprep.subr.mxu0 0.0
        %2093 = vmatpush1.msra.mxu0 0.0
        %2094 = vmatprep.subr.mxu0 0.0
        %2095 = vmatpush1.msra.mxu0 0.0
        %2096 = vmatprep.subr.mxu0 0.0
        %2097 = vmatpush1.msra.mxu0 %v2065
        %2098 = vmatprep.subr.mxu0 0.0
        %2099 = vmatpush2.msra.mxu0 0.0
        %2100 = vmatprep.subr.mxu0 0.0
        %2101 = vmatpush2.msra.mxu0 0.0
        %2102 = vmatprep.subr.mxu0 0.0
        %2103 = vmatpush2.msra.mxu0 0.0
        %2104 = vmatprep.subr.mxu0 0.0
        %2105 = vmatpush2.msra.mxu0 0.0
        %2106 = vmatprep.subr.mxu0 0.0
        %2107 = vmatpush2.msra.mxu0 0.0
        %2108 = vmatprep.subr.mxu0 0.0
        %2109 = vmatpush2.msra.mxu0 0.0
        %2110 = vmatprep.subr.mxu0 0.0
        %2111 = vmatpush2.msra.mxu0 0.0
        %2112 = vmatprep.subr.mxu0 0.0
        %2113 = vmatpush2.msra.mxu0 0.0
        %2114 = vmatprep.subr.mxu0 0.0
        %2115 = vmatpush2.msra.mxu0 0.0
        %2116 = vmatprep.subr.mxu0 0.0
        %2117 = vmatpush2.msra.mxu0 0.0
        %2118 = vmatprep.subr.mxu0 0.0
        %2119 = vmatpush2.msra.mxu0 0.0
        %2120 = vmatprep.subr.mxu0 0.0
        %2121 = vmatpush2.msra.mxu0 0.0
        %2122 = vmatprep.subr.mxu0 0.0
        %2123 = vmatpush2.msra.mxu0 0.0
        %2124 = vmatprep.subr.mxu0 0.0
        %2125 = vmatpush2.msra.mxu0 0.0
        %2126 = vmatprep.subr.mxu0 0.0
        %2127 = vmatpush2.msra.mxu0 0.0
        %2128 = vmatprep.subr.mxu0 0.0
        %2129 = vmatpush2.msra.mxu0 0.0
        %2130 = vmatprep.mubr.f32.mxu0 0.0
        %2131 = vmatmul.mubr.f32.gmra.mxu0 %v1763
        %v2132 = vpop.f32.mrf.mxu0
        %v2133 = vadd.f32 0.0, %v2132
        %v2134 = vpop.f32.mrf.mxu0
        %2135 = vdwg.mxu0
        %s2136 = scalar_lea.vmem [#allocation19], 8
        %v2137 = vld [vmem:[%s2136] sm:$0xf]
        %v2139 = vsel %vm1910, %v2137, 0
        %v2142 = vsel %vm1914, %v2133, 0
        %2144 = vmatprep.subr.mxu0 0.0
        %2145 = vmatpush1.msra.mxu0 0.0
        %2146 = vmatprep.subr.mxu0 0.0
        %2147 = vmatpush1.msra.mxu0 0.0
        %2148 = vmatprep.subr.mxu0 0.0
        %2149 = vmatpush1.msra.mxu0 0.0
        %2150 = vmatprep.subr.mxu0 0.0
        %2151 = vmatpush1.msra.mxu0 0.0
        %2152 = vmatprep.subr.mxu0 0.0
        %2153 = vmatpush1.msra.mxu0 0.0
        %2154 = vmatprep.subr.mxu0 0.0
        %2155 = vmatpush1.msra.mxu0 0.0
        %2156 = vmatprep.subr.mxu0 0.0
        %2157 = vmatpush1.msra.mxu0 0.0
        %2158 = vmatprep.subr.mxu0 0.0
        %2159 = vmatpush1.msra.mxu0 0.0
        %2160 = vmatprep.subr.mxu0 0.0
        %2161 = vmatpush1.msra.mxu0 0.0
        %2162 = vmatprep.subr.mxu0 0.0
        %2163 = vmatpush1.msra.mxu0 0.0
        %2164 = vmatprep.subr.mxu0 0.0
        %2165 = vmatpush1.msra.mxu0 0.0
        %2166 = vmatprep.subr.mxu0 0.0
        %2167 = vmatpush1.msra.mxu0 0.0
        %2168 = vmatprep.subr.mxu0 0.0
        %2169 = vmatpush1.msra.mxu0 0.0
        %2170 = vmatprep.subr.mxu0 0.0
        %2171 = vmatpush1.msra.mxu0 0.0
        %2172 = vmatprep.subr.mxu0 0.0
        %2173 = vmatpush1.msra.mxu0 0.0
        %2174 = vmatprep.subr.mxu0 0.0
        %2175 = vmatpush1.msra.mxu0 %v2142
        %2176 = vmatprep.subr.mxu0 0.0
        %2177 = vmatpush2.msra.mxu0 0.0
        %2178 = vmatprep.subr.mxu0 0.0
        %2179 = vmatpush2.msra.mxu0 0.0
        %2180 = vmatprep.subr.mxu0 0.0
        %2181 = vmatpush2.msra.mxu0 0.0
        %2182 = vmatprep.subr.mxu0 0.0
        %2183 = vmatpush2.msra.mxu0 0.0
        %2184 = vmatprep.subr.mxu0 0.0
        %2185 = vmatpush2.msra.mxu0 0.0
        %2186 = vmatprep.subr.mxu0 0.0
        %2187 = vmatpush2.msra.mxu0 0.0
        %2188 = vmatprep.subr.mxu0 0.0
        %2189 = vmatpush2.msra.mxu0 0.0
        %2190 = vmatprep.subr.mxu0 0.0
        %2191 = vmatpush2.msra.mxu0 0.0
        %2192 = vmatprep.subr.mxu0 0.0
        %2193 = vmatpush2.msra.mxu0 0.0
        %2194 = vmatprep.subr.mxu0 0.0
        %2195 = vmatpush2.msra.mxu0 0.0
        %2196 = vmatprep.subr.mxu0 0.0
        %2197 = vmatpush2.msra.mxu0 0.0
        %2198 = vmatprep.subr.mxu0 0.0
        %2199 = vmatpush2.msra.mxu0 0.0
        %2200 = vmatprep.subr.mxu0 0.0
        %2201 = vmatpush2.msra.mxu0 0.0
        %2202 = vmatprep.subr.mxu0 0.0
        %2203 = vmatpush2.msra.mxu0 0.0
        %2204 = vmatprep.subr.mxu0 0.0
        %2205 = vmatpush2.msra.mxu0 0.0
        %2206 = vmatprep.subr.mxu0 0.0
        %2207 = vmatpush2.msra.mxu0 0.0
        %2208 = vmatprep.mubr.f32.mxu0 0.0
        %2209 = vmatmul.mubr.f32.gmra.mxu0 %v2139
        %v2210 = vpop.f32.mrf.mxu0
        %v2211 = vadd.f32 0.0, %v2210
        %v2212 = vpop.f32.mrf.mxu0
        %2213 = vdwg.mxu0
        %v2214 = vadd.f32 %v2061, %v2211
        %v2215 = vld [vmem:[#allocation20] sm:$0xf]
        %2217 = vset.pattern.permute.xlu0 0
        %2218 = vperm.xlu0 %2217, %v2215
        %v2219 = vpop.permute.xlu0 %2218
        %v2221 = vadd.f32 %v2214, %v2219
        %v2222 = vadd.f32 %v2221, %v849
        %v2223 = vmax.f32 %v2222, 0.0
        %v2224 = vld [vmem:[#allocation11] sm:$0xff]
        %v2225 = vld [vmem:[%s12] sm:$0xf]
        %v2227 = vsel %vm1002, %v1760, 0
        %2229 = vmatprep.subr.mxu0 0.0
        %2230 = vmatpush1.msra.mxu0 0.0
        %2231 = vmatprep.subr.mxu0 0.0
        %2232 = vmatpush1.msra.mxu0 0.0
        %2233 = vmatprep.subr.mxu0 0.0
        %2234 = vmatpush1.msra.mxu0 0.0
        %2235 = vmatprep.subr.mxu0 0.0
        %2236 = vmatpush1.msra.mxu0 0.0
        %2237 = vmatprep.subr.mxu0 0.0
        %2238 = vmatpush1.msra.mxu0 0.0
        %2239 = vmatprep.subr.mxu0 0.0
        %2240 = vmatpush1.msra.mxu0 0.0
        %2241 = vmatprep.subr.mxu0 0.0
        %2242 = vmatpush1.msra.mxu0 0.0
        %2243 = vmatprep.subr.mxu0 0.0
        %2244 = vmatpush1.msra.mxu0 0.0
        %2245 = vmatprep.subr.mxu0 0.0
        %2246 = vmatpush1.msra.mxu0 0.0
        %2247 = vmatprep.subr.mxu0 0.0
        %2248 = vmatpush1.msra.mxu0 0.0
        %2249 = vmatprep.subr.mxu0 0.0
        %2250 = vmatpush1.msra.mxu0 0.0
        %2251 = vmatprep.subr.mxu0 0.0
        %2252 = vmatpush1.msra.mxu0 0.0
        %2253 = vmatprep.subr.mxu0 0.0
        %2254 = vmatpush1.msra.mxu0 0.0
        %2255 = vmatprep.subr.mxu0 0.0
        %2256 = vmatpush1.msra.mxu0 0.0
        %2257 = vmatprep.subr.mxu0 0.0
        %2258 = vmatpush1.msra.mxu0 0.0
        %2259 = vmatprep.subr.mxu0 0.0
        %2260 = vmatpush1.msra.mxu0 %v2224
        %2261 = vmatprep.subr.mxu0 0.0
        %2262 = vmatpush2.msra.mxu0 0.0
        %2263 = vmatprep.subr.mxu0 0.0
        %2264 = vmatpush2.msra.mxu0 0.0
        %2265 = vmatprep.subr.mxu0 0.0
        %2266 = vmatpush2.msra.mxu0 0.0
        %2267 = vmatprep.subr.mxu0 0.0
        %2268 = vmatpush2.msra.mxu0 0.0
        %2269 = vmatprep.subr.mxu0 0.0
        %2270 = vmatpush2.msra.mxu0 0.0
        %2271 = vmatprep.subr.mxu0 0.0
        %2272 = vmatpush2.msra.mxu0 0.0
        %2273 = vmatprep.subr.mxu0 0.0
        %2274 = vmatpush2.msra.mxu0 0.0
        %2275 = vmatprep.subr.mxu0 0.0
        %2276 = vmatpush2.msra.mxu0 0.0
        %2277 = vmatprep.subr.mxu0 0.0
        %2278 = vmatpush2.msra.mxu0 0.0
        %2279 = vmatprep.subr.mxu0 0.0
        %2280 = vmatpush2.msra.mxu0 0.0
        %2281 = vmatprep.subr.mxu0 0.0
        %2282 = vmatpush2.msra.mxu0 0.0
        %2283 = vmatprep.subr.mxu0 0.0
        %2284 = vmatpush2.msra.mxu0 0.0
        %2285 = vmatprep.subr.mxu0 0.0
        %2286 = vmatpush2.msra.mxu0 0.0
        %2287 = vmatprep.subr.mxu0 0.0
        %2288 = vmatpush2.msra.mxu0 0.0
        %2289 = vmatprep.subr.mxu0 0.0
        %2290 = vmatpush2.msra.mxu0 0.0
        %2291 = vmatprep.subr.mxu0 0.0
        %2292 = vmatpush2.msra.mxu0 0.0
        %2293 = vmatprep.mubr.f32.mxu0 0.0
        %2294 = vmatmul.mubr.f32.gmra.mxu0 %v2227
        %v2295 = vpop.f32.mrf.mxu0
        %v2296 = vadd.f32 0.0, %v2295
        %v2297 = vpop.f32.mrf.mxu0
        %2298 = vdwg.mxu0
        %v2299 = vld [vmem:[%s13] sm:$0xf]
        %v2301 = vsel %vm1002, %v2223, 0
        %2303 = vmatprep.subr.mxu0 0.0
        %2304 = vmatpush1.msra.mxu0 0.0
        %2305 = vmatprep.subr.mxu0 0.0
        %2306 = vmatpush1.msra.mxu0 0.0
        %2307 = vmatprep.subr.mxu0 0.0
        %2308 = vmatpush1.msra.mxu0 0.0
        %2309 = vmatprep.subr.mxu0 0.0
        %2310 = vmatpush1.msra.mxu0 0.0
        %2311 = vmatprep.subr.mxu0 0.0
        %2312 = vmatpush1.msra.mxu0 0.0
        %2313 = vmatprep.subr.mxu0 0.0
        %2314 = vmatpush1.msra.mxu0 0.0
        %2315 = vmatprep.subr.mxu0 0.0
        %2316 = vmatpush1.msra.mxu0 0.0
        %2317 = vmatprep.subr.mxu0 0.0
        %2318 = vmatpush1.msra.mxu0 0.0
        %2319 = vmatprep.subr.mxu0 0.0
        %2320 = vmatpush1.msra.mxu0 0.0
        %2321 = vmatprep.subr.mxu0 0.0
        %2322 = vmatpush1.msra.mxu0 0.0
        %2323 = vmatprep.subr.mxu0 0.0
        %2324 = vmatpush1.msra.mxu0 0.0
        %2325 = vmatprep.subr.mxu0 0.0
        %2326 = vmatpush1.msra.mxu0 0.0
        %2327 = vmatprep.subr.mxu0 0.0
        %2328 = vmatpush1.msra.mxu0 0.0
        %2329 = vmatprep.subr.mxu0 0.0
        %2330 = vmatpush1.msra.mxu0 0.0
        %2331 = vmatprep.subr.mxu0 0.0
        %2332 = vmatpush1.msra.mxu0 0.0
        %2333 = vmatprep.subr.mxu0 0.0
        %2334 = vmatpush1.msra.mxu0 %v2224
        %2335 = vmatprep.subr.mxu0 0.0
        %2336 = vmatpush2.msra.mxu0 0.0
        %2337 = vmatprep.subr.mxu0 0.0
        %2338 = vmatpush2.msra.mxu0 0.0
        %2339 = vmatprep.subr.mxu0 0.0
        %2340 = vmatpush2.msra.mxu0 0.0
        %2341 = vmatprep.subr.mxu0 0.0
        %2342 = vmatpush2.msra.mxu0 0.0
        %2343 = vmatprep.subr.mxu0 0.0
        %2344 = vmatpush2.msra.mxu0 0.0
        %2345 = vmatprep.subr.mxu0 0.0
        %2346 = vmatpush2.msra.mxu0 0.0
        %2347 = vmatprep.subr.mxu0 0.0
        %2348 = vmatpush2.msra.mxu0 0.0
        %2349 = vmatprep.subr.mxu0 0.0
        %2350 = vmatpush2.msra.mxu0 0.0
        %2351 = vmatprep.subr.mxu0 0.0
        %2352 = vmatpush2.msra.mxu0 0.0
        %2353 = vmatprep.subr.mxu0 0.0
        %2354 = vmatpush2.msra.mxu0 0.0
        %2355 = vmatprep.subr.mxu0 0.0
        %2356 = vmatpush2.msra.mxu0 0.0
        %2357 = vmatprep.subr.mxu0 0.0
        %2358 = vmatpush2.msra.mxu0 0.0
        %2359 = vmatprep.subr.mxu0 0.0
        %2360 = vmatpush2.msra.mxu0 0.0
        %2361 = vmatprep.subr.mxu0 0.0
        %2362 = vmatpush2.msra.mxu0 0.0
        %2363 = vmatprep.subr.mxu0 0.0
        %2364 = vmatpush2.msra.mxu0 0.0
        %2365 = vmatprep.subr.mxu0 0.0
        %2366 = vmatpush2.msra.mxu0 0.0
        %2367 = vmatprep.mubr.f32.mxu0 0.0
        %2368 = vmatmul.mubr.f32.gmra.mxu0 %v2301
        %v2369 = vpop.f32.mrf.mxu0
        %v2370 = vadd.f32 0.0, %v2369
        %v2371 = vpop.f32.mrf.mxu0
        %2372 = vdwg.mxu0
        %v2374 = vsel %vm1910, %v2299, 0
        %v2377 = vsel %vm1914, %v2370, 0
        %2379 = vmatprep.subr.mxu0 0.0
        %2380 = vmatpush1.msra.mxu0 0.0
        %2381 = vmatprep.subr.mxu0 0.0
        %2382 = vmatpush1.msra.mxu0 0.0
        %2383 = vmatprep.subr.mxu0 0.0
        %2384 = vmatpush1.msra.mxu0 0.0
        %2385 = vmatprep.subr.mxu0 0.0
        %2386 = vmatpush1.msra.mxu0 0.0
        %2387 = vmatprep.subr.mxu0 0.0
        %2388 = vmatpush1.msra.mxu0 0.0
        %2389 = vmatprep.subr.mxu0 0.0
        %2390 = vmatpush1.msra.mxu0 0.0
        %2391 = vmatprep.subr.mxu0 0.0
        %2392 = vmatpush1.msra.mxu0 0.0
        %2393 = vmatprep.subr.mxu0 0.0
        %2394 = vmatpush1.msra.mxu0 0.0
        %2395 = vmatprep.subr.mxu0 0.0
        %2396 = vmatpush1.msra.mxu0 0.0
        %2397 = vmatprep.subr.mxu0 0.0
        %2398 = vmatpush1.msra.mxu0 0.0
        %2399 = vmatprep.subr.mxu0 0.0
        %2400 = vmatpush1.msra.mxu0 0.0
        %2401 = vmatprep.subr.mxu0 0.0
        %2402 = vmatpush1.msra.mxu0 0.0
        %2403 = vmatprep.subr.mxu0 0.0
        %2404 = vmatpush1.msra.mxu0 0.0
        %2405 = vmatprep.subr.mxu0 0.0
        %2406 = vmatpush1.msra.mxu0 0.0
        %2407 = vmatprep.subr.mxu0 0.0
        %2408 = vmatpush1.msra.mxu0 0.0
        %2409 = vmatprep.subr.mxu0 0.0
        %2410 = vmatpush1.msra.mxu0 %v2377
        %2411 = vmatprep.subr.mxu0 0.0
        %2412 = vmatpush2.msra.mxu0 0.0
        %2413 = vmatprep.subr.mxu0 0.0
        %2414 = vmatpush2.msra.mxu0 0.0
        %2415 = vmatprep.subr.mxu0 0.0
        %2416 = vmatpush2.msra.mxu0 0.0
        %2417 = vmatprep.subr.mxu0 0.0
        %2418 = vmatpush2.msra.mxu0 0.0
        %2419 = vmatprep.subr.mxu0 0.0
        %2420 = vmatpush2.msra.mxu0 0.0
        %2421 = vmatprep.subr.mxu0 0.0
        %2422 = vmatpush2.msra.mxu0 0.0
        %2423 = vmatprep.subr.mxu0 0.0
        %2424 = vmatpush2.msra.mxu0 0.0
        %2425 = vmatprep.subr.mxu0 0.0
        %2426 = vmatpush2.msra.mxu0 0.0
        %2427 = vmatprep.subr.mxu0 0.0
        %2428 = vmatpush2.msra.mxu0 0.0
        %2429 = vmatprep.subr.mxu0 0.0
        %2430 = vmatpush2.msra.mxu0 0.0
        %2431 = vmatprep.subr.mxu0 0.0
        %2432 = vmatpush2.msra.mxu0 0.0
        %2433 = vmatprep.subr.mxu0 0.0
        %2434 = vmatpush2.msra.mxu0 0.0
        %2435 = vmatprep.subr.mxu0 0.0
        %2436 = vmatpush2.msra.mxu0 0.0
        %2437 = vmatprep.subr.mxu0 0.0
        %2438 = vmatpush2.msra.mxu0 0.0
        %2439 = vmatprep.subr.mxu0 0.0
        %2440 = vmatpush2.msra.mxu0 0.0
        %2441 = vmatprep.subr.mxu0 0.0
        %2442 = vmatpush2.msra.mxu0 0.0
        %2443 = vmatprep.mubr.f32.mxu0 0.0
        %2444 = vmatmul.mubr.f32.gmra.mxu0 %v2374
        %v2445 = vpop.f32.mrf.mxu0
        %v2446 = vadd.f32 0.0, %v2445
        %v2447 = vpop.f32.mrf.mxu0
        %2448 = vdwg.mxu0
        %v2450 = vsel %vm1910, %v2225, 0
        %v2453 = vsel %vm1914, %v2296, 0
        %2455 = vmatprep.subr.mxu0 0.0
        %2456 = vmatpush1.msra.mxu0 0.0
        %2457 = vmatprep.subr.mxu0 0.0
        %2458 = vmatpush1.msra.mxu0 0.0
        %2459 = vmatprep.subr.mxu0 0.0
        %2460 = vmatpush1.msra.mxu0 0.0
        %2461 = vmatprep.subr.mxu0 0.0
        %2462 = vmatpush1.msra.mxu0 0.0
        %2463 = vmatprep.subr.mxu0 0.0
        %2464 = vmatpush1.msra.mxu0 0.0
        %2465 = vmatprep.subr.mxu0 0.0
        %2466 = vmatpush1.msra.mxu0 0.0
        %2467 = vmatprep.subr.mxu0 0.0
        %2468 = vmatpush1.msra.mxu0 0.0
        %2469 = vmatprep.subr.mxu0 0.0
        %2470 = vmatpush1.msra.mxu0 0.0
        %2471 = vmatprep.subr.mxu0 0.0
        %2472 = vmatpush1.msra.mxu0 0.0
        %2473 = vmatprep.subr.mxu0 0.0
        %2474 = vmatpush1.msra.mxu0 0.0
        %2475 = vmatprep.subr.mxu0 0.0
        %2476 = vmatpush1.msra.mxu0 0.0
        %2477 = vmatprep.subr.mxu0 0.0
        %2478 = vmatpush1.msra.mxu0 0.0
        %2479 = vmatprep.subr.mxu0 0.0
        %2480 = vmatpush1.msra.mxu0 0.0
        %2481 = vmatprep.subr.mxu0 0.0
        %2482 = vmatpush1.msra.mxu0 0.0
        %2483 = vmatprep.subr.mxu0 0.0
        %2484 = vmatpush1.msra.mxu0 0.0
        %2485 = vmatprep.subr.mxu0 0.0
        %2486 = vmatpush1.msra.mxu0 %v2453
        %2487 = vmatprep.subr.mxu0 0.0
        %2488 = vmatpush2.msra.mxu0 0.0
        %2489 = vmatprep.subr.mxu0 0.0
        %2490 = vmatpush2.msra.mxu0 0.0
        %2491 = vmatprep.subr.mxu0 0.0
        %2492 = vmatpush2.msra.mxu0 0.0
        %2493 = vmatprep.subr.mxu0 0.0
        %2494 = vmatpush2.msra.mxu0 0.0
        %2495 = vmatprep.subr.mxu0 0.0
        %2496 = vmatpush2.msra.mxu0 0.0
        %2497 = vmatprep.subr.mxu0 0.0
        %2498 = vmatpush2.msra.mxu0 0.0
        %2499 = vmatprep.subr.mxu0 0.0
        %2500 = vmatpush2.msra.mxu0 0.0
        %2501 = vmatprep.subr.mxu0 0.0
        %2502 = vmatpush2.msra.mxu0 0.0
        %2503 = vmatprep.subr.mxu0 0.0
        %2504 = vmatpush2.msra.mxu0 0.0
        %2505 = vmatprep.subr.mxu0 0.0
        %2506 = vmatpush2.msra.mxu0 0.0
        %2507 = vmatprep.subr.mxu0 0.0
        %2508 = vmatpush2.msra.mxu0 0.0
        %2509 = vmatprep.subr.mxu0 0.0
        %2510 = vmatpush2.msra.mxu0 0.0
        %2511 = vmatprep.subr.mxu0 0.0
        %2512 = vmatpush2.msra.mxu0 0.0
        %2513 = vmatprep.subr.mxu0 0.0
        %2514 = vmatpush2.msra.mxu0 0.0
        %2515 = vmatprep.subr.mxu0 0.0
        %2516 = vmatpush2.msra.mxu0 0.0
        %2517 = vmatprep.subr.mxu0 0.0
        %2518 = vmatpush2.msra.mxu0 0.0
        %2519 = vmatprep.mubr.f32.mxu0 0.0
        %2520 = vmatmul.mubr.f32.gmra.mxu0 %v2450
        %v2521 = vpop.f32.mrf.mxu0
        %v2522 = vadd.f32 %v2446, %v2521
        %v2523 = vpop.f32.mrf.mxu0
        %2524 = vdwg.mxu0
        %s2525 = scalar_lea.vmem [#allocation11], 8
        %v2526 = vld [vmem:[%s2525] sm:$0xff]
        %s2527 = scalar_lea.vmem %s12, 4
        %v2528 = vld [vmem:[%s2527] sm:$0xf]
        %2529 = vmatprep.subr.mxu0 0.0
        %2530 = vmatpush1.msra.mxu0 0.0
        %2531 = vmatprep.subr.mxu0 0.0
        %2532 = vmatpush1.msra.mxu0 0.0
        %2533 = vmatprep.subr.mxu0 0.0
        %2534 = vmatpush1.msra.mxu0 0.0
        %2535 = vmatprep.subr.mxu0 0.0
        %2536 = vmatpush1.msra.mxu0 0.0
        %2537 = vmatprep.subr.mxu0 0.0
        %2538 = vmatpush1.msra.mxu0 0.0
        %2539 = vmatprep.subr.mxu0 0.0
        %2540 = vmatpush1.msra.mxu0 0.0
        %2541 = vmatprep.subr.mxu0 0.0
        %2542 = vmatpush1.msra.mxu0 0.0
        %2543 = vmatprep.subr.mxu0 0.0
        %2544 = vmatpush1.msra.mxu0 0.0
        %2545 = vmatprep.subr.mxu0 0.0
        %2546 = vmatpush1.msra.mxu0 0.0
        %2547 = vmatprep.subr.mxu0 0.0
        %2548 = vmatpush1.msra.mxu0 0.0
        %2549 = vmatprep.subr.mxu0 0.0
        %2550 = vmatpush1.msra.mxu0 0.0
        %2551 = vmatprep.subr.mxu0 0.0
        %2552 = vmatpush1.msra.mxu0 0.0
        %2553 = vmatprep.subr.mxu0 0.0
        %2554 = vmatpush1.msra.mxu0 0.0
        %2555 = vmatprep.subr.mxu0 0.0
        %2556 = vmatpush1.msra.mxu0 0.0
        %2557 = vmatprep.subr.mxu0 0.0
        %2558 = vmatpush1.msra.mxu0 0.0
        %2559 = vmatprep.subr.mxu0 0.0
        %2560 = vmatpush1.msra.mxu0 %v2526
        %2561 = vmatprep.subr.mxu0 0.0
        %2562 = vmatpush2.msra.mxu0 0.0
        %2563 = vmatprep.subr.mxu0 0.0
        %2564 = vmatpush2.msra.mxu0 0.0
        %2565 = vmatprep.subr.mxu0 0.0
        %2566 = vmatpush2.msra.mxu0 0.0
        %2567 = vmatprep.subr.mxu0 0.0
        %2568 = vmatpush2.msra.mxu0 0.0
        %2569 = vmatprep.subr.mxu0 0.0
        %2570 = vmatpush2.msra.mxu0 0.0
        %2571 = vmatprep.subr.mxu0 0.0
        %2572 = vmatpush2.msra.mxu0 0.0
        %2573 = vmatprep.subr.mxu0 0.0
        %2574 = vmatpush2.msra.mxu0 0.0
        %2575 = vmatprep.subr.mxu0 0.0
        %2576 = vmatpush2.msra.mxu0 0.0
        %2577 = vmatprep.subr.mxu0 0.0
        %2578 = vmatpush2.msra.mxu0 0.0
        %2579 = vmatprep.subr.mxu0 0.0
        %2580 = vmatpush2.msra.mxu0 0.0
        %2581 = vmatprep.subr.mxu0 0.0
        %2582 = vmatpush2.msra.mxu0 0.0
        %2583 = vmatprep.subr.mxu0 0.0
        %2584 = vmatpush2.msra.mxu0 0.0
        %2585 = vmatprep.subr.mxu0 0.0
        %2586 = vmatpush2.msra.mxu0 0.0
        %2587 = vmatprep.subr.mxu0 0.0
        %2588 = vmatpush2.msra.mxu0 0.0
        %2589 = vmatprep.subr.mxu0 0.0
        %2590 = vmatpush2.msra.mxu0 0.0
        %2591 = vmatprep.subr.mxu0 0.0
        %2592 = vmatpush2.msra.mxu0 0.0
        %2593 = vmatprep.mubr.f32.mxu0 0.0
        %2594 = vmatmul.mubr.f32.gmra.mxu0 %v2227
        %v2595 = vpop.f32.mrf.mxu0
        %v2596 = vadd.f32 0.0, %v2595
        %v2597 = vpop.f32.mrf.mxu0
        %2598 = vdwg.mxu0
        %s2599 = scalar_lea.vmem %s13, 4
        %v2600 = vld [vmem:[%s2599] sm:$0xf]
        %2601 = vmatprep.subr.mxu0 0.0
        %2602 = vmatpush1.msra.mxu0 0.0
        %2603 = vmatprep.subr.mxu0 0.0
        %2604 = vmatpush1.msra.mxu0 0.0
        %2605 = vmatprep.subr.mxu0 0.0
        %2606 = vmatpush1.msra.mxu0 0.0
        %2607 = vmatprep.subr.mxu0 0.0
        %2608 = vmatpush1.msra.mxu0 0.0
        %2609 = vmatprep.subr.mxu0 0.0
        %2610 = vmatpush1.msra.mxu0 0.0
        %2611 = vmatprep.subr.mxu0 0.0
        %2612 = vmatpush1.msra.mxu0 0.0
        %2613 = vmatprep.subr.mxu0 0.0
        %2614 = vmatpush1.msra.mxu0 0.0
        %2615 = vmatprep.subr.mxu0 0.0
        %2616 = vmatpush1.msra.mxu0 0.0
        %2617 = vmatprep.subr.mxu0 0.0
        %2618 = vmatpush1.msra.mxu0 0.0
        %2619 = vmatprep.subr.mxu0 0.0
        %2620 = vmatpush1.msra.mxu0 0.0
        %2621 = vmatprep.subr.mxu0 0.0
        %2622 = vmatpush1.msra.mxu0 0.0
        %2623 = vmatprep.subr.mxu0 0.0
        %2624 = vmatpush1.msra.mxu0 0.0
        %2625 = vmatprep.subr.mxu0 0.0
        %2626 = vmatpush1.msra.mxu0 0.0
        %2627 = vmatprep.subr.mxu0 0.0
        %2628 = vmatpush1.msra.mxu0 0.0
        %2629 = vmatprep.subr.mxu0 0.0
        %2630 = vmatpush1.msra.mxu0 0.0
        %2631 = vmatprep.subr.mxu0 0.0
        %2632 = vmatpush1.msra.mxu0 %v2526
        %2633 = vmatprep.subr.mxu0 0.0
        %2634 = vmatpush2.msra.mxu0 0.0
        %2635 = vmatprep.subr.mxu0 0.0
        %2636 = vmatpush2.msra.mxu0 0.0
        %2637 = vmatprep.subr.mxu0 0.0
        %2638 = vmatpush2.msra.mxu0 0.0
        %2639 = vmatprep.subr.mxu0 0.0
        %2640 = vmatpush2.msra.mxu0 0.0
        %2641 = vmatprep.subr.mxu0 0.0
        %2642 = vmatpush2.msra.mxu0 0.0
        %2643 = vmatprep.subr.mxu0 0.0
        %2644 = vmatpush2.msra.mxu0 0.0
        %2645 = vmatprep.subr.mxu0 0.0
        %2646 = vmatpush2.msra.mxu0 0.0
        %2647 = vmatprep.subr.mxu0 0.0
        %2648 = vmatpush2.msra.mxu0 0.0
        %2649 = vmatprep.subr.mxu0 0.0
        %2650 = vmatpush2.msra.mxu0 0.0
        %2651 = vmatprep.subr.mxu0 0.0
        %2652 = vmatpush2.msra.mxu0 0.0
        %2653 = vmatprep.subr.mxu0 0.0
        %2654 = vmatpush2.msra.mxu0 0.0
        %2655 = vmatprep.subr.mxu0 0.0
        %2656 = vmatpush2.msra.mxu0 0.0
        %2657 = vmatprep.subr.mxu0 0.0
        %2658 = vmatpush2.msra.mxu0 0.0
        %2659 = vmatprep.subr.mxu0 0.0
        %2660 = vmatpush2.msra.mxu0 0.0
        %2661 = vmatprep.subr.mxu0 0.0
        %2662 = vmatpush2.msra.mxu0 0.0
        %2663 = vmatprep.subr.mxu0 0.0
        %2664 = vmatpush2.msra.mxu0 0.0
        %2665 = vmatprep.mubr.f32.mxu0 0.0
        %2666 = vmatmul.mubr.f32.gmra.mxu0 %v2301
        %v2667 = vpop.f32.mrf.mxu0
        %v2668 = vadd.f32 0.0, %v2667
        %v2669 = vpop.f32.mrf.mxu0
        %2670 = vdwg.mxu0
        %v2672 = vsel %vm1910, %v2600, 0
        %v2675 = vsel %vm1914, %v2668, 0
        %2677 = vmatprep.subr.mxu0 0.0
        %2678 = vmatpush1.msra.mxu0 0.0
        %2679 = vmatprep.subr.mxu0 0.0
        %2680 = vmatpush1.msra.mxu0 0.0
        %2681 = vmatprep.subr.mxu0 0.0
        %2682 = vmatpush1.msra.mxu0 0.0
        %2683 = vmatprep.subr.mxu0 0.0
        %2684 = vmatpush1.msra.mxu0 0.0
        %2685 = vmatprep.subr.mxu0 0.0
        %2686 = vmatpush1.msra.mxu0 0.0
        %2687 = vmatprep.subr.mxu0 0.0
        %2688 = vmatpush1.msra.mxu0 0.0
        %2689 = vmatprep.subr.mxu0 0.0
        %2690 = vmatpush1.msra.mxu0 0.0
        %2691 = vmatprep.subr.mxu0 0.0
        %2692 = vmatpush1.msra.mxu0 0.0
        %2693 = vmatprep.subr.mxu0 0.0
        %2694 = vmatpush1.msra.mxu0 0.0
        %2695 = vmatprep.subr.mxu0 0.0
        %2696 = vmatpush1.msra.mxu0 0.0
        %2697 = vmatprep.subr.mxu0 0.0
        %2698 = vmatpush1.msra.mxu0 0.0
        %2699 = vmatprep.subr.mxu0 0.0
        %2700 = vmatpush1.msra.mxu0 0.0
        %2701 = vmatprep.subr.mxu0 0.0
        %2702 = vmatpush1.msra.mxu0 0.0
        %2703 = vmatprep.subr.mxu0 0.0
        %2704 = vmatpush1.msra.mxu0 0.0
        %2705 = vmatprep.subr.mxu0 0.0
        %2706 = vmatpush1.msra.mxu0 0.0
        %2707 = vmatprep.subr.mxu0 0.0
        %2708 = vmatpush1.msra.mxu0 %v2675
        %2709 = vmatprep.subr.mxu0 0.0
        %2710 = vmatpush2.msra.mxu0 0.0
        %2711 = vmatprep.subr.mxu0 0.0
        %2712 = vmatpush2.msra.mxu0 0.0
        %2713 = vmatprep.subr.mxu0 0.0
        %2714 = vmatpush2.msra.mxu0 0.0
        %2715 = vmatprep.subr.mxu0 0.0
        %2716 = vmatpush2.msra.mxu0 0.0
        %2717 = vmatprep.subr.mxu0 0.0
        %2718 = vmatpush2.msra.mxu0 0.0
        %2719 = vmatprep.subr.mxu0 0.0
        %2720 = vmatpush2.msra.mxu0 0.0
        %2721 = vmatprep.subr.mxu0 0.0
        %2722 = vmatpush2.msra.mxu0 0.0
        %2723 = vmatprep.subr.mxu0 0.0
        %2724 = vmatpush2.msra.mxu0 0.0
        %2725 = vmatprep.subr.mxu0 0.0
        %2726 = vmatpush2.msra.mxu0 0.0
        %2727 = vmatprep.subr.mxu0 0.0
        %2728 = vmatpush2.msra.mxu0 0.0
        %2729 = vmatprep.subr.mxu0 0.0
        %2730 = vmatpush2.msra.mxu0 0.0
        %2731 = vmatprep.subr.mxu0 0.0
        %2732 = vmatpush2.msra.mxu0 0.0
        %2733 = vmatprep.subr.mxu0 0.0
        %2734 = vmatpush2.msra.mxu0 0.0
        %2735 = vmatprep.subr.mxu0 0.0
        %2736 = vmatpush2.msra.mxu0 0.0
        %2737 = vmatprep.subr.mxu0 0.0
        %2738 = vmatpush2.msra.mxu0 0.0
        %2739 = vmatprep.subr.mxu0 0.0
        %2740 = vmatpush2.msra.mxu0 0.0
        %2741 = vmatprep.mubr.f32.mxu0 0.0
        %2742 = vmatmul.mubr.f32.gmra.mxu0 %v2672
        %v2743 = vpop.f32.mrf.mxu0
        %v2744 = vadd.f32 0.0, %v2743
        %v2745 = vpop.f32.mrf.mxu0
        %2746 = vdwg.mxu0
        %v2748 = vsel %vm1910, %v2528, 0
        %v2751 = vsel %vm1914, %v2596, 0
        %2753 = vmatprep.subr.mxu0 0.0
        %2754 = vmatpush1.msra.mxu0 0.0
        %2755 = vmatprep.subr.mxu0 0.0
        %2756 = vmatpush1.msra.mxu0 0.0
        %2757 = vmatprep.subr.mxu0 0.0
        %2758 = vmatpush1.msra.mxu0 0.0
        %2759 = vmatprep.subr.mxu0 0.0
        %2760 = vmatpush1.msra.mxu0 0.0
        %2761 = vmatprep.subr.mxu0 0.0
        %2762 = vmatpush1.msra.mxu0 0.0
        %2763 = vmatprep.subr.mxu0 0.0
        %2764 = vmatpush1.msra.mxu0 0.0
        %2765 = vmatprep.subr.mxu0 0.0
        %2766 = vmatpush1.msra.mxu0 0.0
        %2767 = vmatprep.subr.mxu0 0.0
        %2768 = vmatpush1.msra.mxu0 0.0
        %2769 = vmatprep.subr.mxu0 0.0
        %2770 = vmatpush1.msra.mxu0 0.0
        %2771 = vmatprep.subr.mxu0 0.0
        %2772 = vmatpush1.msra.mxu0 0.0
        %2773 = vmatprep.subr.mxu0 0.0
        %2774 = vmatpush1.msra.mxu0 0.0
        %2775 = vmatprep.subr.mxu0 0.0
        %2776 = vmatpush1.msra.mxu0 0.0
        %2777 = vmatprep.subr.mxu0 0.0
        %2778 = vmatpush1.msra.mxu0 0.0
        %2779 = vmatprep.subr.mxu0 0.0
        %2780 = vmatpush1.msra.mxu0 0.0
        %2781 = vmatprep.subr.mxu0 0.0
        %2782 = vmatpush1.msra.mxu0 0.0
        %2783 = vmatprep.subr.mxu0 0.0
        %2784 = vmatpush1.msra.mxu0 %v2751
        %2785 = vmatprep.subr.mxu0 0.0
        %2786 = vmatpush2.msra.mxu0 0.0
        %2787 = vmatprep.subr.mxu0 0.0
        %2788 = vmatpush2.msra.mxu0 0.0
        %2789 = vmatprep.subr.mxu0 0.0
        %2790 = vmatpush2.msra.mxu0 0.0
        %2791 = vmatprep.subr.mxu0 0.0
        %2792 = vmatpush2.msra.mxu0 0.0
        %2793 = vmatprep.subr.mxu0 0.0
        %2794 = vmatpush2.msra.mxu0 0.0
        %2795 = vmatprep.subr.mxu0 0.0
        %2796 = vmatpush2.msra.mxu0 0.0
        %2797 = vmatprep.subr.mxu0 0.0
        %2798 = vmatpush2.msra.mxu0 0.0
        %2799 = vmatprep.subr.mxu0 0.0
        %2800 = vmatpush2.msra.mxu0 0.0
        %2801 = vmatprep.subr.mxu0 0.0
        %2802 = vmatpush2.msra.mxu0 0.0
        %2803 = vmatprep.subr.mxu0 0.0
        %2804 = vmatpush2.msra.mxu0 0.0
        %2805 = vmatprep.subr.mxu0 0.0
        %2806 = vmatpush2.msra.mxu0 0.0
        %2807 = vmatprep.subr.mxu0 0.0
        %2808 = vmatpush2.msra.mxu0 0.0
        %2809 = vmatprep.subr.mxu0 0.0
        %2810 = vmatpush2.msra.mxu0 0.0
        %2811 = vmatprep.subr.mxu0 0.0
        %2812 = vmatpush2.msra.mxu0 0.0
        %2813 = vmatprep.subr.mxu0 0.0
        %2814 = vmatpush2.msra.mxu0 0.0
        %2815 = vmatprep.subr.mxu0 0.0
        %2816 = vmatpush2.msra.mxu0 0.0
        %2817 = vmatprep.mubr.f32.mxu0 0.0
        %2818 = vmatmul.mubr.f32.gmra.mxu0 %v2748
        %v2819 = vpop.f32.mrf.mxu0
        %v2820 = vadd.f32 %v2744, %v2819
        %v2821 = vpop.f32.mrf.mxu0
        %2822 = vdwg.mxu0
        %v2823 = vadd.f32 %v2522, %v2820
        %s2824 = scalar_lea.vmem [#allocation11], 16
        %v2825 = vld [vmem:[%s2824] sm:$0xff]
        %s2826 = scalar_lea.vmem %s12, 8
        %v2827 = vld [vmem:[%s2826] sm:$0xf]
        %2828 = vmatprep.subr.mxu0 0.0
        %2829 = vmatpush1.msra.mxu0 0.0
        %2830 = vmatprep.subr.mxu0 0.0
        %2831 = vmatpush1.msra.mxu0 0.0
        %2832 = vmatprep.subr.mxu0 0.0
        %2833 = vmatpush1.msra.mxu0 0.0
        %2834 = vmatprep.subr.mxu0 0.0
        %2835 = vmatpush1.msra.mxu0 0.0
        %2836 = vmatprep.subr.mxu0 0.0
        %2837 = vmatpush1.msra.mxu0 0.0
        %2838 = vmatprep.subr.mxu0 0.0
        %2839 = vmatpush1.msra.mxu0 0.0
        %2840 = vmatprep.subr.mxu0 0.0
        %2841 = vmatpush1.msra.mxu0 0.0
        %2842 = vmatprep.subr.mxu0 0.0
        %2843 = vmatpush1.msra.mxu0 0.0
        %2844 = vmatprep.subr.mxu0 0.0
        %2845 = vmatpush1.msra.mxu0 0.0
        %2846 = vmatprep.subr.mxu0 0.0
        %2847 = vmatpush1.msra.mxu0 0.0
        %2848 = vmatprep.subr.mxu0 0.0
        %2849 = vmatpush1.msra.mxu0 0.0
        %2850 = vmatprep.subr.mxu0 0.0
        %2851 = vmatpush1.msra.mxu0 0.0
        %2852 = vmatprep.subr.mxu0 0.0
        %2853 = vmatpush1.msra.mxu0 0.0
        %2854 = vmatprep.subr.mxu0 0.0
        %2855 = vmatpush1.msra.mxu0 0.0
        %2856 = vmatprep.subr.mxu0 0.0
        %2857 = vmatpush1.msra.mxu0 0.0
        %2858 = vmatprep.subr.mxu0 0.0
        %2859 = vmatpush1.msra.mxu0 %v2825
        %2860 = vmatprep.subr.mxu0 0.0
        %2861 = vmatpush2.msra.mxu0 0.0
        %2862 = vmatprep.subr.mxu0 0.0
        %2863 = vmatpush2.msra.mxu0 0.0
        %2864 = vmatprep.subr.mxu0 0.0
        %2865 = vmatpush2.msra.mxu0 0.0
        %2866 = vmatprep.subr.mxu0 0.0
        %2867 = vmatpush2.msra.mxu0 0.0
        %2868 = vmatprep.subr.mxu0 0.0
        %2869 = vmatpush2.msra.mxu0 0.0
        %2870 = vmatprep.subr.mxu0 0.0
        %2871 = vmatpush2.msra.mxu0 0.0
        %2872 = vmatprep.subr.mxu0 0.0
        %2873 = vmatpush2.msra.mxu0 0.0
        %2874 = vmatprep.subr.mxu0 0.0
        %2875 = vmatpush2.msra.mxu0 0.0
        %2876 = vmatprep.subr.mxu0 0.0
        %2877 = vmatpush2.msra.mxu0 0.0
        %2878 = vmatprep.subr.mxu0 0.0
        %2879 = vmatpush2.msra.mxu0 0.0
        %2880 = vmatprep.subr.mxu0 0.0
        %2881 = vmatpush2.msra.mxu0 0.0
        %2882 = vmatprep.subr.mxu0 0.0
        %2883 = vmatpush2.msra.mxu0 0.0
        %2884 = vmatprep.subr.mxu0 0.0
        %2885 = vmatpush2.msra.mxu0 0.0
        %2886 = vmatprep.subr.mxu0 0.0
        %2887 = vmatpush2.msra.mxu0 0.0
        %2888 = vmatprep.subr.mxu0 0.0
        %2889 = vmatpush2.msra.mxu0 0.0
        %2890 = vmatprep.subr.mxu0 0.0
        %2891 = vmatpush2.msra.mxu0 0.0
        %2892 = vmatprep.mubr.f32.mxu0 0.0
        %2893 = vmatmul.mubr.f32.gmra.mxu0 %v2227
        %v2894 = vpop.f32.mrf.mxu0
        %v2895 = vadd.f32 0.0, %v2894
        %v2896 = vpop.f32.mrf.mxu0
        %2897 = vdwg.mxu0
        %s2898 = scalar_lea.vmem %s13, 8
        %v2899 = vld [vmem:[%s2898] sm:$0xf]
        %2900 = vmatprep.subr.mxu0 0.0
        %2901 = vmatpush1.msra.mxu0 0.0
        %2902 = vmatprep.subr.mxu0 0.0
        %2903 = vmatpush1.msra.mxu0 0.0
        %2904 = vmatprep.subr.mxu0 0.0
        %2905 = vmatpush1.msra.mxu0 0.0
        %2906 = vmatprep.subr.mxu0 0.0
        %2907 = vmatpush1.msra.mxu0 0.0
        %2908 = vmatprep.subr.mxu0 0.0
        %2909 = vmatpush1.msra.mxu0 0.0
        %2910 = vmatprep.subr.mxu0 0.0
        %2911 = vmatpush1.msra.mxu0 0.0
        %2912 = vmatprep.subr.mxu0 0.0
        %2913 = vmatpush1.msra.mxu0 0.0
        %2914 = vmatprep.subr.mxu0 0.0
        %2915 = vmatpush1.msra.mxu0 0.0
        %2916 = vmatprep.subr.mxu0 0.0
        %2917 = vmatpush1.msra.mxu0 0.0
        %2918 = vmatprep.subr.mxu0 0.0
        %2919 = vmatpush1.msra.mxu0 0.0
        %2920 = vmatprep.subr.mxu0 0.0
        %2921 = vmatpush1.msra.mxu0 0.0
        %2922 = vmatprep.subr.mxu0 0.0
        %2923 = vmatpush1.msra.mxu0 0.0
        %2924 = vmatprep.subr.mxu0 0.0
        %2925 = vmatpush1.msra.mxu0 0.0
        %2926 = vmatprep.subr.mxu0 0.0
        %2927 = vmatpush1.msra.mxu0 0.0
        %2928 = vmatprep.subr.mxu0 0.0
        %2929 = vmatpush1.msra.mxu0 0.0
        %2930 = vmatprep.subr.mxu0 0.0
        %2931 = vmatpush1.msra.mxu0 %v2825
        %2932 = vmatprep.subr.mxu0 0.0
        %2933 = vmatpush2.msra.mxu0 0.0
        %2934 = vmatprep.subr.mxu0 0.0
        %2935 = vmatpush2.msra.mxu0 0.0
        %2936 = vmatprep.subr.mxu0 0.0
        %2937 = vmatpush2.msra.mxu0 0.0
        %2938 = vmatprep.subr.mxu0 0.0
        %2939 = vmatpush2.msra.mxu0 0.0
        %2940 = vmatprep.subr.mxu0 0.0
        %2941 = vmatpush2.msra.mxu0 0.0
        %2942 = vmatprep.subr.mxu0 0.0
        %2943 = vmatpush2.msra.mxu0 0.0
        %2944 = vmatprep.subr.mxu0 0.0
        %2945 = vmatpush2.msra.mxu0 0.0
        %2946 = vmatprep.subr.mxu0 0.0
        %2947 = vmatpush2.msra.mxu0 0.0
        %2948 = vmatprep.subr.mxu0 0.0
        %2949 = vmatpush2.msra.mxu0 0.0
        %2950 = vmatprep.subr.mxu0 0.0
        %2951 = vmatpush2.msra.mxu0 0.0
        %2952 = vmatprep.subr.mxu0 0.0
        %2953 = vmatpush2.msra.mxu0 0.0
        %2954 = vmatprep.subr.mxu0 0.0
        %2955 = vmatpush2.msra.mxu0 0.0
        %2956 = vmatprep.subr.mxu0 0.0
        %2957 = vmatpush2.msra.mxu0 0.0
        %2958 = vmatprep.subr.mxu0 0.0
        %2959 = vmatpush2.msra.mxu0 0.0
        %2960 = vmatprep.subr.mxu0 0.0
        %2961 = vmatpush2.msra.mxu0 0.0
        %2962 = vmatprep.subr.mxu0 0.0
        %2963 = vmatpush2.msra.mxu0 0.0
        %2964 = vmatprep.mubr.f32.mxu0 0.0
        %2965 = vmatmul.mubr.f32.gmra.mxu0 %v2301
        %v2966 = vpop.f32.mrf.mxu0
        %v2967 = vadd.f32 0.0, %v2966
        %v2968 = vpop.f32.mrf.mxu0
        %2969 = vdwg.mxu0
        %v2971 = vsel %vm1910, %v2899, 0
        %v2974 = vsel %vm1914, %v2967, 0
        %2976 = vmatprep.subr.mxu0 0.0
        %2977 = vmatpush1.msra.mxu0 0.0
        %2978 = vmatprep.subr.mxu0 0.0
        %2979 = vmatpush1.msra.mxu0 0.0
        %2980 = vmatprep.subr.mxu0 0.0
        %2981 = vmatpush1.msra.mxu0 0.0
        %2982 = vmatprep.subr.mxu0 0.0
        %2983 = vmatpush1.msra.mxu0 0.0
        %2984 = vmatprep.subr.mxu0 0.0
        %2985 = vmatpush1.msra.mxu0 0.0
        %2986 = vmatprep.subr.mxu0 0.0
        %2987 = vmatpush1.msra.mxu0 0.0
        %2988 = vmatprep.subr.mxu0 0.0
        %2989 = vmatpush1.msra.mxu0 0.0
        %2990 = vmatprep.subr.mxu0 0.0
        %2991 = vmatpush1.msra.mxu0 0.0
        %2992 = vmatprep.subr.mxu0 0.0
        %2993 = vmatpush1.msra.mxu0 0.0
        %2994 = vmatprep.subr.mxu0 0.0
        %2995 = vmatpush1.msra.mxu0 0.0
        %2996 = vmatprep.subr.mxu0 0.0
        %2997 = vmatpush1.msra.mxu0 0.0
        %2998 = vmatprep.subr.mxu0 0.0
        %2999 = vmatpush1.msra.mxu0 0.0
        %3000 = vmatprep.subr.mxu0 0.0
        %3001 = vmatpush1.msra.mxu0 0.0
        %3002 = vmatprep.subr.mxu0 0.0
        %3003 = vmatpush1.msra.mxu0 0.0
        %3004 = vmatprep.subr.mxu0 0.0
        %3005 = vmatpush1.msra.mxu0 0.0
        %3006 = vmatprep.subr.mxu0 0.0
        %3007 = vmatpush1.msra.mxu0 %v2974
        %3008 = vmatprep.subr.mxu0 0.0
        %3009 = vmatpush2.msra.mxu0 0.0
        %3010 = vmatprep.subr.mxu0 0.0
        %3011 = vmatpush2.msra.mxu0 0.0
        %3012 = vmatprep.subr.mxu0 0.0
        %3013 = vmatpush2.msra.mxu0 0.0
        %3014 = vmatprep.subr.mxu0 0.0
        %3015 = vmatpush2.msra.mxu0 0.0
        %3016 = vmatprep.subr.mxu0 0.0
        %3017 = vmatpush2.msra.mxu0 0.0
        %3018 = vmatprep.subr.mxu0 0.0
        %3019 = vmatpush2.msra.mxu0 0.0
        %3020 = vmatprep.subr.mxu0 0.0
        %3021 = vmatpush2.msra.mxu0 0.0
        %3022 = vmatprep.subr.mxu0 0.0
        %3023 = vmatpush2.msra.mxu0 0.0
        %3024 = vmatprep.subr.mxu0 0.0
        %3025 = vmatpush2.msra.mxu0 0.0
        %3026 = vmatprep.subr.mxu0 0.0
        %3027 = vmatpush2.msra.mxu0 0.0
        %3028 = vmatprep.subr.mxu0 0.0
        %3029 = vmatpush2.msra.mxu0 0.0
        %3030 = vmatprep.subr.mxu0 0.0
        %3031 = vmatpush2.msra.mxu0 0.0
        %3032 = vmatprep.subr.mxu0 0.0
        %3033 = vmatpush2.msra.mxu0 0.0
        %3034 = vmatprep.subr.mxu0 0.0
        %3035 = vmatpush2.msra.mxu0 0.0
        %3036 = vmatprep.subr.mxu0 0.0
        %3037 = vmatpush2.msra.mxu0 0.0
        %3038 = vmatprep.subr.mxu0 0.0
        %3039 = vmatpush2.msra.mxu0 0.0
        %3040 = vmatprep.mubr.f32.mxu0 0.0
        %3041 = vmatmul.mubr.f32.gmra.mxu0 %v2971
        %v3042 = vpop.f32.mrf.mxu0
        %v3043 = vadd.f32 0.0, %v3042
        %v3044 = vpop.f32.mrf.mxu0
        %3045 = vdwg.mxu0
        %v3047 = vsel %vm1910, %v2827, 0
        %v3050 = vsel %vm1914, %v2895, 0
        %3052 = vmatprep.subr.mxu0 0.0
        %3053 = vmatpush1.msra.mxu0 0.0
        %3054 = vmatprep.subr.mxu0 0.0
        %3055 = vmatpush1.msra.mxu0 0.0
        %3056 = vmatprep.subr.mxu0 0.0
        %3057 = vmatpush1.msra.mxu0 0.0
        %3058 = vmatprep.subr.mxu0 0.0
        %3059 = vmatpush1.msra.mxu0 0.0
        %3060 = vmatprep.subr.mxu0 0.0
        %3061 = vmatpush1.msra.mxu0 0.0
        %3062 = vmatprep.subr.mxu0 0.0
        %3063 = vmatpush1.msra.mxu0 0.0
        %3064 = vmatprep.subr.mxu0 0.0
        %3065 = vmatpush1.msra.mxu0 0.0
        %3066 = vmatprep.subr.mxu0 0.0
        %3067 = vmatpush1.msra.mxu0 0.0
        %3068 = vmatprep.subr.mxu0 0.0
        %3069 = vmatpush1.msra.mxu0 0.0
        %3070 = vmatprep.subr.mxu0 0.0
        %3071 = vmatpush1.msra.mxu0 0.0
        %3072 = vmatprep.subr.mxu0 0.0
        %3073 = vmatpush1.msra.mxu0 0.0
        %3074 = vmatprep.subr.mxu0 0.0
        %3075 = vmatpush1.msra.mxu0 0.0
        %3076 = vmatprep.subr.mxu0 0.0
        %3077 = vmatpush1.msra.mxu0 0.0
        %3078 = vmatprep.subr.mxu0 0.0
        %3079 = vmatpush1.msra.mxu0 0.0
        %3080 = vmatprep.subr.mxu0 0.0
        %3081 = vmatpush1.msra.mxu0 0.0
        %3082 = vmatprep.subr.mxu0 0.0
        %3083 = vmatpush1.msra.mxu0 %v3050
        %3084 = vmatprep.subr.mxu0 0.0
        %3085 = vmatpush2.msra.mxu0 0.0
        %3086 = vmatprep.subr.mxu0 0.0
        %3087 = vmatpush2.msra.mxu0 0.0
        %3088 = vmatprep.subr.mxu0 0.0
        %3089 = vmatpush2.msra.mxu0 0.0
        %3090 = vmatprep.subr.mxu0 0.0
        %3091 = vmatpush2.msra.mxu0 0.0
        %3092 = vmatprep.subr.mxu0 0.0
        %3093 = vmatpush2.msra.mxu0 0.0
        %3094 = vmatprep.subr.mxu0 0.0
        %3095 = vmatpush2.msra.mxu0 0.0
        %3096 = vmatprep.subr.mxu0 0.0
        %3097 = vmatpush2.msra.mxu0 0.0
        %3098 = vmatprep.subr.mxu0 0.0
        %3099 = vmatpush2.msra.mxu0 0.0
        %3100 = vmatprep.subr.mxu0 0.0
        %3101 = vmatpush2.msra.mxu0 0.0
        %3102 = vmatprep.subr.mxu0 0.0
        %3103 = vmatpush2.msra.mxu0 0.0
        %3104 = vmatprep.subr.mxu0 0.0
        %3105 = vmatpush2.msra.mxu0 0.0
        %3106 = vmatprep.subr.mxu0 0.0
        %3107 = vmatpush2.msra.mxu0 0.0
        %3108 = vmatprep.subr.mxu0 0.0
        %3109 = vmatpush2.msra.mxu0 0.0
        %3110 = vmatprep.subr.mxu0 0.0
        %3111 = vmatpush2.msra.mxu0 0.0
        %3112 = vmatprep.subr.mxu0 0.0
        %3113 = vmatpush2.msra.mxu0 0.0
        %3114 = vmatprep.subr.mxu0 0.0
        %3115 = vmatpush2.msra.mxu0 0.0
        %3116 = vmatprep.mubr.f32.mxu0 0.0
        %3117 = vmatmul.mubr.f32.gmra.mxu0 %v3047
        %v3118 = vpop.f32.mrf.mxu0
        %v3119 = vadd.f32 %v3043, %v3118
        %v3120 = vpop.f32.mrf.mxu0
        %3121 = vdwg.mxu0
        %v3122 = vadd.f32 %v2823, %v3119
        %v3123 = vld [vmem:[#allocation22] sm:$0xf]
        %3125 = vset.pattern.permute.xlu0 0
        %3126 = vperm.xlu0 %3125, %v3123
        %v3127 = vpop.permute.xlu0 %3126
        %v3129 = vadd.f32 %v3122, %v3127
        %v3130 = vmax.f32 %v3129, 0.0
        %v3131 = vld [vmem:[%s16] sm:$0x1]
        %v3132 = vld [vmem:[#allocation23] sm:$0xff]
        %v3134 = vsel %vm1002, %v3130, 0
        %3136 = vmatprep.subr.mxu0 0.0
        %3137 = vmatpush1.msra.mxu0 0.0
        %3138 = vmatprep.subr.mxu0 0.0
        %3139 = vmatpush1.msra.mxu0 0.0
        %3140 = vmatprep.subr.mxu0 0.0
        %3141 = vmatpush1.msra.mxu0 0.0
        %3142 = vmatprep.subr.mxu0 0.0
        %3143 = vmatpush1.msra.mxu0 0.0
        %3144 = vmatprep.subr.mxu0 0.0
        %3145 = vmatpush1.msra.mxu0 0.0
        %3146 = vmatprep.subr.mxu0 0.0
        %3147 = vmatpush1.msra.mxu0 0.0
        %3148 = vmatprep.subr.mxu0 0.0
        %3149 = vmatpush1.msra.mxu0 0.0
        %3150 = vmatprep.subr.mxu0 0.0
        %3151 = vmatpush1.msra.mxu0 0.0
        %3152 = vmatprep.subr.mxu0 0.0
        %3153 = vmatpush1.msra.mxu0 0.0
        %3154 = vmatprep.subr.mxu0 0.0
        %3155 = vmatpush1.msra.mxu0 0.0
        %3156 = vmatprep.subr.mxu0 0.0
        %3157 = vmatpush1.msra.mxu0 0.0
        %3158 = vmatprep.subr.mxu0 0.0
        %3159 = vmatpush1.msra.mxu0 0.0
        %3160 = vmatprep.subr.mxu0 0.0
        %3161 = vmatpush1.msra.mxu0 0.0
        %3162 = vmatprep.subr.mxu0 0.0
        %3163 = vmatpush1.msra.mxu0 0.0
        %3164 = vmatprep.subr.mxu0 0.0
        %3165 = vmatpush1.msra.mxu0 0.0
        %3166 = vmatprep.subr.mxu0 0.0
        %3167 = vmatpush1.msra.mxu0 %v3132
        %3168 = vmatprep.subr.mxu0 0.0
        %3169 = vmatpush2.msra.mxu0 0.0
        %3170 = vmatprep.subr.mxu0 0.0
        %3171 = vmatpush2.msra.mxu0 0.0
        %3172 = vmatprep.subr.mxu0 0.0
        %3173 = vmatpush2.msra.mxu0 0.0
        %3174 = vmatprep.subr.mxu0 0.0
        %3175 = vmatpush2.msra.mxu0 0.0
        %3176 = vmatprep.subr.mxu0 0.0
        %3177 = vmatpush2.msra.mxu0 0.0
        %3178 = vmatprep.subr.mxu0 0.0
        %3179 = vmatpush2.msra.mxu0 0.0
        %3180 = vmatprep.subr.mxu0 0.0
        %3181 = vmatpush2.msra.mxu0 0.0
        %3182 = vmatprep.subr.mxu0 0.0
        %3183 = vmatpush2.msra.mxu0 0.0
        %3184 = vmatprep.subr.mxu0 0.0
        %3185 = vmatpush2.msra.mxu0 0.0
        %3186 = vmatprep.subr.mxu0 0.0
        %3187 = vmatpush2.msra.mxu0 0.0
        %3188 = vmatprep.subr.mxu0 0.0
        %3189 = vmatpush2.msra.mxu0 0.0
        %3190 = vmatprep.subr.mxu0 0.0
        %3191 = vmatpush2.msra.mxu0 0.0
        %3192 = vmatprep.subr.mxu0 0.0
        %3193 = vmatpush2.msra.mxu0 0.0
        %3194 = vmatprep.subr.mxu0 0.0
        %3195 = vmatpush2.msra.mxu0 0.0
        %3196 = vmatprep.subr.mxu0 0.0
        %3197 = vmatpush2.msra.mxu0 0.0
        %3198 = vmatprep.subr.mxu0 0.0
        %3199 = vmatpush2.msra.mxu0 0.0
        %3200 = vmatprep.mubr.f32.mxu0 0.0
        %3201 = vmatmul.mubr.f32.gmra.mxu0 %v3134
        %v3202 = vpop.f32.mrf.mxu0
        %v3203 = vadd.f32 0.0, %v3202
        %v3204 = vpop.f32.mrf.mxu0
        %3205 = vdwg.mxu0
        %v3206 = vadd.f32 %v3131, %v3203
        %s3207 = scalar_lea.vmem [#allocation23], 8
        %v3208 = vld [vmem:[%s3207] sm:$0xff]
        %v3209 = vrot.slane %v3130, 1
        %v3210 = vsel %vm1002, %v3209, 0
        %3212 = vmatprep.subr.mxu0 0.0
        %3213 = vmatpush1.msra.mxu0 0.0
        %3214 = vmatprep.subr.mxu0 0.0
        %3215 = vmatpush1.msra.mxu0 0.0
        %3216 = vmatprep.subr.mxu0 0.0
        %3217 = vmatpush1.msra.mxu0 0.0
        %3218 = vmatprep.subr.mxu0 0.0
        %3219 = vmatpush1.msra.mxu0 0.0
        %3220 = vmatprep.subr.mxu0 0.0
        %3221 = vmatpush1.msra.mxu0 0.0
        %3222 = vmatprep.subr.mxu0 0.0
        %3223 = vmatpush1.msra.mxu0 0.0
        %3224 = vmatprep.subr.mxu0 0.0
        %3225 = vmatpush1.msra.mxu0 0.0
        %3226 = vmatprep.subr.mxu0 0.0
        %3227 = vmatpush1.msra.mxu0 0.0
        %3228 = vmatprep.subr.mxu0 0.0
        %3229 = vmatpush1.msra.mxu0 0.0
        %3230 = vmatprep.subr.mxu0 0.0
        %3231 = vmatpush1.msra.mxu0 0.0
        %3232 = vmatprep.subr.mxu0 0.0
        %3233 = vmatpush1.msra.mxu0 0.0
        %3234 = vmatprep.subr.mxu0 0.0
        %3235 = vmatpush1.msra.mxu0 0.0
        %3236 = vmatprep.subr.mxu0 0.0
        %3237 = vmatpush1.msra.mxu0 0.0
        %3238 = vmatprep.subr.mxu0 0.0
        %3239 = vmatpush1.msra.mxu0 0.0
        %3240 = vmatprep.subr.mxu0 0.0
        %3241 = vmatpush1.msra.mxu0 0.0
        %3242 = vmatprep.subr.mxu0 0.0
        %3243 = vmatpush1.msra.mxu0 %v3208
        %3244 = vmatprep.subr.mxu0 0.0
        %3245 = vmatpush2.msra.mxu0 0.0
        %3246 = vmatprep.subr.mxu0 0.0
        %3247 = vmatpush2.msra.mxu0 0.0
        %3248 = vmatprep.subr.mxu0 0.0
        %3249 = vmatpush2.msra.mxu0 0.0
        %3250 = vmatprep.subr.mxu0 0.0
        %3251 = vmatpush2.msra.mxu0 0.0
        %3252 = vmatprep.subr.mxu0 0.0
        %3253 = vmatpush2.msra.mxu0 0.0
        %3254 = vmatprep.subr.mxu0 0.0
        %3255 = vmatpush2.msra.mxu0 0.0
        %3256 = vmatprep.subr.mxu0 0.0
        %3257 = vmatpush2.msra.mxu0 0.0
        %3258 = vmatprep.subr.mxu0 0.0
        %3259 = vmatpush2.msra.mxu0 0.0
        %3260 = vmatprep.subr.mxu0 0.0
        %3261 = vmatpush2.msra.mxu0 0.0
        %3262 = vmatprep.subr.mxu0 0.0
        %3263 = vmatpush2.msra.mxu0 0.0
        %3264 = vmatprep.subr.mxu0 0.0
        %3265 = vmatpush2.msra.mxu0 0.0
        %3266 = vmatprep.subr.mxu0 0.0
        %3267 = vmatpush2.msra.mxu0 0.0
        %3268 = vmatprep.subr.mxu0 0.0
        %3269 = vmatpush2.msra.mxu0 0.0
        %3270 = vmatprep.subr.mxu0 0.0
        %3271 = vmatpush2.msra.mxu0 0.0
        %3272 = vmatprep.subr.mxu0 0.0
        %3273 = vmatpush2.msra.mxu0 0.0
        %3274 = vmatprep.subr.mxu0 0.0
        %3275 = vmatpush2.msra.mxu0 0.0
        %3276 = vmatprep.mubr.f32.mxu0 0.0
        %3277 = vmatmul.mubr.f32.gmra.mxu0 %v3210
        %v3278 = vpop.f32.mrf.mxu0
        %v3279 = vadd.f32 0.0, %v3278
        %v3280 = vpop.f32.mrf.mxu0
        %3281 = vdwg.mxu0
        %v3282 = vadd.f32 %v3206, %v3279
        %s3283 = scalar_lea.vmem [#allocation23], 16
        %v3284 = vld [vmem:[%s3283] sm:$0xff]
        %v3285 = vrot.slane %v3130, 2
        %v3286 = vsel %vm1002, %v3285, 0
        %3288 = vmatprep.subr.mxu0 0.0
        %3289 = vmatpush1.msra.mxu0 0.0
        %3290 = vmatprep.subr.mxu0 0.0
        %3291 = vmatpush1.msra.mxu0 0.0
        %3292 = vmatprep.subr.mxu0 0.0
        %3293 = vmatpush1.msra.mxu0 0.0
        %3294 = vmatprep.subr.mxu0 0.0
        %3295 = vmatpush1.msra.mxu0 0.0
        %3296 = vmatprep.subr.mxu0 0.0
        %3297 = vmatpush1.msra.mxu0 0.0
        %3298 = vmatprep.subr.mxu0 0.0
        %3299 = vmatpush1.msra.mxu0 0.0
        %3300 = vmatprep.subr.mxu0 0.0
        %3301 = vmatpush1.msra.mxu0 0.0
        %3302 = vmatprep.subr.mxu0 0.0
        %3303 = vmatpush1.msra.mxu0 0.0
        %3304 = vmatprep.subr.mxu0 0.0
        %3305 = vmatpush1.msra.mxu0 0.0
        %3306 = vmatprep.subr.mxu0 0.0
        %3307 = vmatpush1.msra.mxu0 0.0
        %3308 = vmatprep.subr.mxu0 0.0
        %3309 = vmatpush1.msra.mxu0 0.0
        %3310 = vmatprep.subr.mxu0 0.0
        %3311 = vmatpush1.msra.mxu0 0.0
        %3312 = vmatprep.subr.mxu0 0.0
        %3313 = vmatpush1.msra.mxu0 0.0
        %3314 = vmatprep.subr.mxu0 0.0
        %3315 = vmatpush1.msra.mxu0 0.0
        %3316 = vmatprep.subr.mxu0 0.0
        %3317 = vmatpush1.msra.mxu0 0.0
        %3318 = vmatprep.subr.mxu0 0.0
        %3319 = vmatpush1.msra.mxu0 %v3284
        %3320 = vmatprep.subr.mxu0 0.0
        %3321 = vmatpush2.msra.mxu0 0.0
        %3322 = vmatprep.subr.mxu0 0.0
        %3323 = vmatpush2.msra.mxu0 0.0
        %3324 = vmatprep.subr.mxu0 0.0
        %3325 = vmatpush2.msra.mxu0 0.0
        %3326 = vmatprep.subr.mxu0 0.0
        %3327 = vmatpush2.msra.mxu0 0.0
        %3328 = vmatprep.subr.mxu0 0.0
        %3329 = vmatpush2.msra.mxu0 0.0
        %3330 = vmatprep.subr.mxu0 0.0
        %3331 = vmatpush2.msra.mxu0 0.0
        %3332 = vmatprep.subr.mxu0 0.0
        %3333 = vmatpush2.msra.mxu0 0.0
        %3334 = vmatprep.subr.mxu0 0.0
        %3335 = vmatpush2.msra.mxu0 0.0
        %3336 = vmatprep.subr.mxu0 0.0
        %3337 = vmatpush2.msra.mxu0 0.0
        %3338 = vmatprep.subr.mxu0 0.0
        %3339 = vmatpush2.msra.mxu0 0.0
        %3340 = vmatprep.subr.mxu0 0.0
        %3341 = vmatpush2.msra.mxu0 0.0
        %3342 = vmatprep.subr.mxu0 0.0
        %3343 = vmatpush2.msra.mxu0 0.0
        %3344 = vmatprep.subr.mxu0 0.0
        %3345 = vmatpush2.msra.mxu0 0.0
        %3346 = vmatprep.subr.mxu0 0.0
        %3347 = vmatpush2.msra.mxu0 0.0
        %3348 = vmatprep.subr.mxu0 0.0
        %3349 = vmatpush2.msra.mxu0 0.0
        %3350 = vmatprep.subr.mxu0 0.0
        %3351 = vmatpush2.msra.mxu0 0.0
        %3352 = vmatprep.mubr.f32.mxu0 0.0
        %3353 = vmatmul.mubr.f32.gmra.mxu0 %v3286
        %v3354 = vpop.f32.mrf.mxu0
        %v3355 = vadd.f32 0.0, %v3354
        %v3356 = vpop.f32.mrf.mxu0
        %3357 = vdwg.mxu0
        %v3358 = vadd.f32 %v3282, %v3355
        %s3359 = scalar_lea.vmem [#allocation23], 24
        %v3360 = vld [vmem:[%s3359] sm:$0xff]
        %v3361 = vrot.slane %v3130, 3
        %v3362 = vsel %vm1002, %v3361, 0
        %3364 = vmatprep.subr.mxu0 0.0
        %3365 = vmatpush1.msra.mxu0 0.0
        %3366 = vmatprep.subr.mxu0 0.0
        %3367 = vmatpush1.msra.mxu0 0.0
        %3368 = vmatprep.subr.mxu0 0.0
        %3369 = vmatpush1.msra.mxu0 0.0
        %3370 = vmatprep.subr.mxu0 0.0
        %3371 = vmatpush1.msra.mxu0 0.0
        %3372 = vmatprep.subr.mxu0 0.0
        %3373 = vmatpush1.msra.mxu0 0.0
        %3374 = vmatprep.subr.mxu0 0.0
        %3375 = vmatpush1.msra.mxu0 0.0
        %3376 = vmatprep.subr.mxu0 0.0
        %3377 = vmatpush1.msra.mxu0 0.0
        %3378 = vmatprep.subr.mxu0 0.0
        %3379 = vmatpush1.msra.mxu0 0.0
        %3380 = vmatprep.subr.mxu0 0.0
        %3381 = vmatpush1.msra.mxu0 0.0
        %3382 = vmatprep.subr.mxu0 0.0
        %3383 = vmatpush1.msra.mxu0 0.0
        %3384 = vmatprep.subr.mxu0 0.0
        %3385 = vmatpush1.msra.mxu0 0.0
        %3386 = vmatprep.subr.mxu0 0.0
        %3387 = vmatpush1.msra.mxu0 0.0
        %3388 = vmatprep.subr.mxu0 0.0
        %3389 = vmatpush1.msra.mxu0 0.0
        %3390 = vmatprep.subr.mxu0 0.0
        %3391 = vmatpush1.msra.mxu0 0.0
        %3392 = vmatprep.subr.mxu0 0.0
        %3393 = vmatpush1.msra.mxu0 0.0
        %3394 = vmatprep.subr.mxu0 0.0
        %3395 = vmatpush1.msra.mxu0 %v3360
        %3396 = vmatprep.subr.mxu0 0.0
        %3397 = vmatpush2.msra.mxu0 0.0
        %3398 = vmatprep.subr.mxu0 0.0
        %3399 = vmatpush2.msra.mxu0 0.0
        %3400 = vmatprep.subr.mxu0 0.0
        %3401 = vmatpush2.msra.mxu0 0.0
        %3402 = vmatprep.subr.mxu0 0.0
        %3403 = vmatpush2.msra.mxu0 0.0
        %3404 = vmatprep.subr.mxu0 0.0
        %3405 = vmatpush2.msra.mxu0 0.0
        %3406 = vmatprep.subr.mxu0 0.0
        %3407 = vmatpush2.msra.mxu0 0.0
        %3408 = vmatprep.subr.mxu0 0.0
        %3409 = vmatpush2.msra.mxu0 0.0
        %3410 = vmatprep.subr.mxu0 0.0
        %3411 = vmatpush2.msra.mxu0 0.0
        %3412 = vmatprep.subr.mxu0 0.0
        %3413 = vmatpush2.msra.mxu0 0.0
        %3414 = vmatprep.subr.mxu0 0.0
        %3415 = vmatpush2.msra.mxu0 0.0
        %3416 = vmatprep.subr.mxu0 0.0
        %3417 = vmatpush2.msra.mxu0 0.0
        %3418 = vmatprep.subr.mxu0 0.0
        %3419 = vmatpush2.msra.mxu0 0.0
        %3420 = vmatprep.subr.mxu0 0.0
        %3421 = vmatpush2.msra.mxu0 0.0
        %3422 = vmatprep.subr.mxu0 0.0
        %3423 = vmatpush2.msra.mxu0 0.0
        %3424 = vmatprep.subr.mxu0 0.0
        %3425 = vmatpush2.msra.mxu0 0.0
        %3426 = vmatprep.subr.mxu0 0.0
        %3427 = vmatpush2.msra.mxu0 0.0
        %3428 = vmatprep.mubr.f32.mxu0 0.0
        %3429 = vmatmul.mubr.f32.gmra.mxu0 %v3362
        %v3430 = vpop.f32.mrf.mxu0
        %v3431 = vadd.f32 0.0, %v3430
        %v3432 = vpop.f32.mrf.mxu0
        %3433 = vdwg.mxu0
        %v3434 = vadd.f32 %v3358, %v3431
        %v3435 = vmax.f32 %v3434, 0.0
        %v3436 = vld [vmem:[#allocation26] sm:$0xf]
        %v3437 = vld [vmem:[#allocation25] sm:$0xff]
        %v3438 = vld [vmem:[#allocation25 + $0x8] sm:$0xff]
        %v3439 = vld [vmem:[#allocation25 + $0x10] sm:$0xff]
        %v3440 = vld [vmem:[#allocation25 + $0x18] sm:$0xff]
        %v3441 = vld [vmem:[#allocation25 + $0x20] sm:$0xff]
        %v3442 = vld [vmem:[#allocation25 + $0x28] sm:$0xff]
        %v3443 = vld [vmem:[#allocation25 + $0x30] sm:$0xff]
        %v3444 = vld [vmem:[#allocation25 + $0x38] sm:$0xff]
        %v3445 = vld [vmem:[#allocation25 + $0x40] sm:$0xff]
        %v3446 = vld [vmem:[#allocation25 + $0x48] sm:$0xff]
        %v3447 = vld [vmem:[#allocation25 + $0x50] sm:$0xff]
        %v3448 = vld [vmem:[#allocation25 + $0x58] sm:$0xff]
        %v3449 = vld [vmem:[#allocation25 + $0x60] sm:$0xf]
        %vm3450 = vcmask 818176
        %v3452 = vsel %vm3450, %v3435, 0
        %v3455 = vsel %vm1914, %v3449, 0
        %3457 = vmatprep.subr.mxu0 0.0
        %3458 = vmatpush1.msra.mxu0 0.0
        %3459 = vmatprep.subr.mxu0 0.0
        %3460 = vmatpush1.msra.mxu0 0.0
        %3461 = vmatprep.subr.mxu0 0.0
        %3462 = vmatpush1.msra.mxu0 0.0
        %3463 = vmatprep.subr.mxu0 0.0
        %3464 = vmatpush1.msra.mxu0 %v3455
        %3465 = vmatprep.subr.mxu0 0.0
        %3466 = vmatpush1.msra.mxu0 %v3448
        %3467 = vmatprep.subr.mxu0 0.0
        %3468 = vmatpush1.msra.mxu0 %v3447
        %3469 = vmatprep.subr.mxu0 0.0
        %3470 = vmatpush1.msra.mxu0 %v3446
        %3471 = vmatprep.subr.mxu0 0.0
        %3472 = vmatpush1.msra.mxu0 %v3445
        %3473 = vmatprep.subr.mxu0 0.0
        %3474 = vmatpush1.msra.mxu0 %v3444
        %3475 = vmatprep.subr.mxu0 0.0
        %3476 = vmatpush1.msra.mxu0 %v3443
        %3477 = vmatprep.subr.mxu0 0.0
        %3478 = vmatpush1.msra.mxu0 %v3442
        %3479 = vmatprep.subr.mxu0 0.0
        %3480 = vmatpush1.msra.mxu0 %v3441
        %3481 = vmatprep.subr.mxu0 0.0
        %3482 = vmatpush1.msra.mxu0 %v3440
        %3483 = vmatprep.subr.mxu0 0.0
        %3484 = vmatpush1.msra.mxu0 %v3439
        %3485 = vmatprep.subr.mxu0 0.0
        %3486 = vmatpush1.msra.mxu0 %v3438
        %3487 = vmatprep.subr.mxu0 0.0
        %3488 = vmatpush1.msra.mxu0 %v3437
        %3489 = vmatprep.subr.mxu0 0.0
        %3490 = vmatpush2.msra.mxu0 0.0
        %3491 = vmatprep.subr.mxu0 0.0
        %3492 = vmatpush2.msra.mxu0 0.0
        %3493 = vmatprep.subr.mxu0 0.0
        %3494 = vmatpush2.msra.mxu0 0.0
        %3495 = vmatprep.subr.mxu0 0.0
        %3496 = vmatpush2.msra.mxu0 0.0
        %3497 = vmatprep.subr.mxu0 0.0
        %3498 = vmatpush2.msra.mxu0 0.0
        %3499 = vmatprep.subr.mxu0 0.0
        %3500 = vmatpush2.msra.mxu0 0.0
        %3501 = vmatprep.subr.mxu0 0.0
        %3502 = vmatpush2.msra.mxu0 0.0
        %3503 = vmatprep.subr.mxu0 0.0
        %3504 = vmatpush2.msra.mxu0 0.0
        %3505 = vmatprep.subr.mxu0 0.0
        %3506 = vmatpush2.msra.mxu0 0.0
        %3507 = vmatprep.subr.mxu0 0.0
        %3508 = vmatpush2.msra.mxu0 0.0
        %3509 = vmatprep.subr.mxu0 0.0
        %3510 = vmatpush2.msra.mxu0 0.0
        %3511 = vmatprep.subr.mxu0 0.0
        %3512 = vmatpush2.msra.mxu0 0.0
        %3513 = vmatprep.subr.mxu0 0.0
        %3514 = vmatpush2.msra.mxu0 0.0
        %3515 = vmatprep.subr.mxu0 0.0
        %3516 = vmatpush2.msra.mxu0 0.0
        %3517 = vmatprep.subr.mxu0 0.0
        %3518 = vmatpush2.msra.mxu0 0.0
        %3519 = vmatprep.subr.mxu0 0.0
        %3520 = vmatpush2.msra.mxu0 0.0
        %3521 = vmatprep.mubr.f32.mxu0 0.0
        %3522 = vmatmul.mubr.f32.gmra.mxu0 %v3452
        %v3523 = vpop.f32.mrf.mxu0
        %v3524 = vadd.f32 %v3436, %v3523
        %v3525 = vpop.f32.mrf.mxu0
        %3526 = vdwg.mxu0
        %vm3527 = vcmask 57344
        %3528 = vst.msk [vmem:[%s847] sm:$0x1] %vm3527, %v3524
        %s3529 = scalar_lea.vmem [#allocation25], 104
        %v3530 = vld [vmem:[%s3529] sm:$0xff]
        %v3531 = vld [vmem:[%s3529 + $0x8] sm:$0xff]
        %v3532 = vld [vmem:[%s3529 + $0x10] sm:$0xff]
        %v3533 = vld [vmem:[%s3529 + $0x18] sm:$0xff]
        %v3534 = vld [vmem:[%s3529 + $0x20] sm:$0xff]
        %v3535 = vld [vmem:[%s3529 + $0x28] sm:$0xff]
        %v3536 = vld [vmem:[%s3529 + $0x30] sm:$0xff]
        %v3537 = vld [vmem:[%s3529 + $0x38] sm:$0xff]
        %v3538 = vld [vmem:[%s3529 + $0x40] sm:$0xff]
        %v3539 = vld [vmem:[%s3529 + $0x48] sm:$0xff]
        %v3540 = vld [vmem:[%s3529 + $0x50] sm:$0xff]
        %v3541 = vld [vmem:[%s3529 + $0x58] sm:$0xff]
        %v3542 = vld [vmem:[%s3529 + $0x60] sm:$0xf]
        %v3544 = vrot.slane %v3436, 1
        %v3547 = vsel %vm1914, %v3542, 0
        %3549 = vmatprep.subr.mxu0 0.0
        %3550 = vmatpush1.msra.mxu0 0.0
        %3551 = vmatprep.subr.mxu0 0.0
        %3552 = vmatpush1.msra.mxu0 0.0
        %3553 = vmatprep.subr.mxu0 0.0
        %3554 = vmatpush1.msra.mxu0 0.0
        %3555 = vmatprep.subr.mxu0 0.0
        %3556 = vmatpush1.msra.mxu0 %v3547
        %3557 = vmatprep.subr.mxu0 0.0
        %3558 = vmatpush1.msra.mxu0 %v3541
        %3559 = vmatprep.subr.mxu0 0.0
        %3560 = vmatpush1.msra.mxu0 %v3540
        %3561 = vmatprep.subr.mxu0 0.0
        %3562 = vmatpush1.msra.mxu0 %v3539
        %3563 = vmatprep.subr.mxu0 0.0
        %3564 = vmatpush1.msra.mxu0 %v3538
        %3565 = vmatprep.subr.mxu0 0.0
        %3566 = vmatpush1.msra.mxu0 %v3537
        %3567 = vmatprep.subr.mxu0 0.0
        %3568 = vmatpush1.msra.mxu0 %v3536
        %3569 = vmatprep.subr.mxu0 0.0
        %3570 = vmatpush1.msra.mxu0 %v3535
        %3571 = vmatprep.subr.mxu0 0.0
        %3572 = vmatpush1.msra.mxu0 %v3534
        %3573 = vmatprep.subr.mxu0 0.0
        %3574 = vmatpush1.msra.mxu0 %v3533
        %3575 = vmatprep.subr.mxu0 0.0
        %3576 = vmatpush1.msra.mxu0 %v3532
        %3577 = vmatprep.subr.mxu0 0.0
        %3578 = vmatpush1.msra.mxu0 %v3531
        %3579 = vmatprep.subr.mxu0 0.0
        %3580 = vmatpush1.msra.mxu0 %v3530
        %3581 = vmatprep.subr.mxu0 0.0
        %3582 = vmatpush2.msra.mxu0 0.0
        %3583 = vmatprep.subr.mxu0 0.0
        %3584 = vmatpush2.msra.mxu0 0.0
        %3585 = vmatprep.subr.mxu0 0.0
        %3586 = vmatpush2.msra.mxu0 0.0
        %3587 = vmatprep.subr.mxu0 0.0
        %3588 = vmatpush2.msra.mxu0 0.0
        %3589 = vmatprep.subr.mxu0 0.0
        %3590 = vmatpush2.msra.mxu0 0.0
        %3591 = vmatprep.subr.mxu0 0.0
        %3592 = vmatpush2.msra.mxu0 0.0
        %3593 = vmatprep.subr.mxu0 0.0
        %3594 = vmatpush2.msra.mxu0 0.0
        %3595 = vmatprep.subr.mxu0 0.0
        %3596 = vmatpush2.msra.mxu0 0.0
        %3597 = vmatprep.subr.mxu0 0.0
        %3598 = vmatpush2.msra.mxu0 0.0
        %3599 = vmatprep.subr.mxu0 0.0
        %3600 = vmatpush2.msra.mxu0 0.0
        %3601 = vmatprep.subr.mxu0 0.0
        %3602 = vmatpush2.msra.mxu0 0.0
        %3603 = vmatprep.subr.mxu0 0.0
        %3604 = vmatpush2.msra.mxu0 0.0
        %3605 = vmatprep.subr.mxu0 0.0
        %3606 = vmatpush2.msra.mxu0 0.0
        %3607 = vmatprep.subr.mxu0 0.0
        %3608 = vmatpush2.msra.mxu0 0.0
        %3609 = vmatprep.subr.mxu0 0.0
        %3610 = vmatpush2.msra.mxu0 0.0
        %3611 = vmatprep.subr.mxu0 0.0
        %3612 = vmatpush2.msra.mxu0 0.0
        %3613 = vmatprep.mubr.f32.mxu0 0.0
        %3614 = vmatmul.mubr.f32.gmra.mxu0 %v3452
        %v3615 = vpop.f32.mrf.mxu0
        %v3616 = vadd.f32 %v3544, %v3615
        %v3617 = vpop.f32.mrf.mxu0
        %3618 = vdwg.mxu0
        %3619 = vst.msk [vmem:[%s847 + $0x1] sm:$0x1] %vm3527, %v3616
        %s3620 = scalar_lea.vmem [#allocation25], 208
        %v3621 = vld [vmem:[%s3620] sm:$0xff]
        %v3622 = vld [vmem:[%s3620 + $0x8] sm:$0xff]
        %v3623 = vld [vmem:[%s3620 + $0x10] sm:$0xff]
        %v3624 = vld [vmem:[%s3620 + $0x18] sm:$0xff]
        %v3625 = vld [vmem:[%s3620 + $0x20] sm:$0xff]
        %v3626 = vld [vmem:[%s3620 + $0x28] sm:$0xff]
        %v3627 = vld [vmem:[%s3620 + $0x30] sm:$0xff]
        %v3628 = vld [vmem:[%s3620 + $0x38] sm:$0xff]
        %v3629 = vld [vmem:[%s3620 + $0x40] sm:$0xff]
        %v3630 = vld [vmem:[%s3620 + $0x48] sm:$0xff]
        %v3631 = vld [vmem:[%s3620 + $0x50] sm:$0xff]
        %v3632 = vld [vmem:[%s3620 + $0x58] sm:$0xff]
        %v3633 = vld [vmem:[%s3620 + $0x60] sm:$0xf]
        %v3634 = vrot.slane %v3436, 2
        %v3637 = vsel %vm1914, %v3633, 0
        %3639 = vmatprep.subr.mxu0 0.0
        %3640 = vmatpush1.msra.mxu0 0.0
        %3641 = vmatprep.subr.mxu0 0.0
        %3642 = vmatpush1.msra.mxu0 0.0
        %3643 = vmatprep.subr.mxu0 0.0
        %3644 = vmatpush1.msra.mxu0 0.0
        %3645 = vmatprep.subr.mxu0 0.0
        %3646 = vmatpush1.msra.mxu0 %v3637
        %3647 = vmatprep.subr.mxu0 0.0
        %3648 = vmatpush1.msra.mxu0 %v3632
        %3649 = vmatprep.subr.mxu0 0.0
        %3650 = vmatpush1.msra.mxu0 %v3631
        %3651 = vmatprep.subr.mxu0 0.0
        %3652 = vmatpush1.msra.mxu0 %v3630
        %3653 = vmatprep.subr.mxu0 0.0
        %3654 = vmatpush1.msra.mxu0 %v3629
        %3655 = vmatprep.subr.mxu0 0.0
        %3656 = vmatpush1.msra.mxu0 %v3628
        %3657 = vmatprep.subr.mxu0 0.0
        %3658 = vmatpush1.msra.mxu0 %v3627
        %3659 = vmatprep.subr.mxu0 0.0
        %3660 = vmatpush1.msra.mxu0 %v3626
        %3661 = vmatprep.subr.mxu0 0.0
        %3662 = vmatpush1.msra.mxu0 %v3625
        %3663 = vmatprep.subr.mxu0 0.0
        %3664 = vmatpush1.msra.mxu0 %v3624
        %3665 = vmatprep.subr.mxu0 0.0
        %3666 = vmatpush1.msra.mxu0 %v3623
        %3667 = vmatprep.subr.mxu0 0.0
        %3668 = vmatpush1.msra.mxu0 %v3622
        %3669 = vmatprep.subr.mxu0 0.0
        %3670 = vmatpush1.msra.mxu0 %v3621
        %3671 = vmatprep.subr.mxu0 0.0
        %3672 = vmatpush2.msra.mxu0 0.0
        %3673 = vmatprep.subr.mxu0 0.0
        %3674 = vmatpush2.msra.mxu0 0.0
        %3675 = vmatprep.subr.mxu0 0.0
        %3676 = vmatpush2.msra.mxu0 0.0
        %3677 = vmatprep.subr.mxu0 0.0
        %3678 = vmatpush2.msra.mxu0 0.0
        %3679 = vmatprep.subr.mxu0 0.0
        %3680 = vmatpush2.msra.mxu0 0.0
        %3681 = vmatprep.subr.mxu0 0.0
        %3682 = vmatpush2.msra.mxu0 0.0
        %3683 = vmatprep.subr.mxu0 0.0
        %3684 = vmatpush2.msra.mxu0 0.0
        %3685 = vmatprep.subr.mxu0 0.0
        %3686 = vmatpush2.msra.mxu0 0.0
        %3687 = vmatprep.subr.mxu0 0.0
        %3688 = vmatpush2.msra.mxu0 0.0
        %3689 = vmatprep.subr.mxu0 0.0
        %3690 = vmatpush2.msra.mxu0 0.0
        %3691 = vmatprep.subr.mxu0 0.0
        %3692 = vmatpush2.msra.mxu0 0.0
        %3693 = vmatprep.subr.mxu0 0.0
        %3694 = vmatpush2.msra.mxu0 0.0
        %3695 = vmatprep.subr.mxu0 0.0
        %3696 = vmatpush2.msra.mxu0 0.0
        %3697 = vmatprep.subr.mxu0 0.0
        %3698 = vmatpush2.msra.mxu0 0.0
        %3699 = vmatprep.subr.mxu0 0.0
        %3700 = vmatpush2.msra.mxu0 0.0
        %3701 = vmatprep.subr.mxu0 0.0
        %3702 = vmatpush2.msra.mxu0 0.0
        %3703 = vmatprep.mubr.f32.mxu0 0.0
        %3704 = vmatmul.mubr.f32.gmra.mxu0 %v3452
        %v3705 = vpop.f32.mrf.mxu0
        %v3706 = vadd.f32 %v3634, %v3705
        %v3707 = vpop.f32.mrf.mxu0
        %3708 = vdwg.mxu0
        %3709 = vst.msk [vmem:[%s847 + $0x2] sm:$0x1] %vm3527, %v3706
        %s3710 = scalar_lea.vmem [#allocation25], 312
        %v3711 = vld [vmem:[%s3710] sm:$0xff]
        %v3712 = vld [vmem:[%s3710 + $0x8] sm:$0xff]
        %v3713 = vld [vmem:[%s3710 + $0x10] sm:$0xff]
        %v3714 = vld [vmem:[%s3710 + $0x18] sm:$0xff]
        %v3715 = vld [vmem:[%s3710 + $0x20] sm:$0xff]
        %v3716 = vld [vmem:[%s3710 + $0x28] sm:$0xff]
        %v3717 = vld [vmem:[%s3710 + $0x30] sm:$0xff]
        %v3718 = vld [vmem:[%s3710 + $0x38] sm:$0xff]
        %v3719 = vld [vmem:[%s3710 + $0x40] sm:$0xff]
        %v3720 = vld [vmem:[%s3710 + $0x48] sm:$0xff]
        %v3721 = vld [vmem:[%s3710 + $0x50] sm:$0xff]
        %v3722 = vld [vmem:[%s3710 + $0x58] sm:$0xff]
        %v3723 = vld [vmem:[%s3710 + $0x60] sm:$0xf]
        %v3724 = vrot.slane %v3436, 3
        %v3727 = vsel %vm1914, %v3723, 0
        %3729 = vmatprep.subr.mxu0 0.0
        %3730 = vmatpush1.msra.mxu0 0.0
        %3731 = vmatprep.subr.mxu0 0.0
        %3732 = vmatpush1.msra.mxu0 0.0
        %3733 = vmatprep.subr.mxu0 0.0
        %3734 = vmatpush1.msra.mxu0 0.0
        %3735 = vmatprep.subr.mxu0 0.0
        %3736 = vmatpush1.msra.mxu0 %v3727
        %3737 = vmatprep.subr.mxu0 0.0
        %3738 = vmatpush1.msra.mxu0 %v3722
        %3739 = vmatprep.subr.mxu0 0.0
        %3740 = vmatpush1.msra.mxu0 %v3721
        %3741 = vmatprep.subr.mxu0 0.0
        %3742 = vmatpush1.msra.mxu0 %v3720
        %3743 = vmatprep.subr.mxu0 0.0
        %3744 = vmatpush1.msra.mxu0 %v3719
        %3745 = vmatprep.subr.mxu0 0.0
        %3746 = vmatpush1.msra.mxu0 %v3718
        %3747 = vmatprep.subr.mxu0 0.0
        %3748 = vmatpush1.msra.mxu0 %v3717
        %3749 = vmatprep.subr.mxu0 0.0
        %3750 = vmatpush1.msra.mxu0 %v3716
        %3751 = vmatprep.subr.mxu0 0.0
        %3752 = vmatpush1.msra.mxu0 %v3715
        %3753 = vmatprep.subr.mxu0 0.0
        %3754 = vmatpush1.msra.mxu0 %v3714
        %3755 = vmatprep.subr.mxu0 0.0
        %3756 = vmatpush1.msra.mxu0 %v3713
        %3757 = vmatprep.subr.mxu0 0.0
        %3758 = vmatpush1.msra.mxu0 %v3712
        %3759 = vmatprep.subr.mxu0 0.0
        %3760 = vmatpush1.msra.mxu0 %v3711
        %3761 = vmatprep.subr.mxu0 0.0
        %3762 = vmatpush2.msra.mxu0 0.0
        %3763 = vmatprep.subr.mxu0 0.0
        %3764 = vmatpush2.msra.mxu0 0.0
        %3765 = vmatprep.subr.mxu0 0.0
        %3766 = vmatpush2.msra.mxu0 0.0
        %3767 = vmatprep.subr.mxu0 0.0
        %3768 = vmatpush2.msra.mxu0 0.0
        %3769 = vmatprep.subr.mxu0 0.0
        %3770 = vmatpush2.msra.mxu0 0.0
        %3771 = vmatprep.subr.mxu0 0.0
        %3772 = vmatpush2.msra.mxu0 0.0
        %3773 = vmatprep.subr.mxu0 0.0
        %3774 = vmatpush2.msra.mxu0 0.0
        %3775 = vmatprep.subr.mxu0 0.0
        %3776 = vmatpush2.msra.mxu0 0.0
        %3777 = vmatprep.subr.mxu0 0.0
        %3778 = vmatpush2.msra.mxu0 0.0
        %3779 = vmatprep.subr.mxu0 0.0
        %3780 = vmatpush2.msra.mxu0 0.0
        %3781 = vmatprep.subr.mxu0 0.0
        %3782 = vmatpush2.msra.mxu0 0.0
        %3783 = vmatprep.subr.mxu0 0.0
        %3784 = vmatpush2.msra.mxu0 0.0
        %3785 = vmatprep.subr.mxu0 0.0
        %3786 = vmatpush2.msra.mxu0 0.0
        %3787 = vmatprep.subr.mxu0 0.0
        %3788 = vmatpush2.msra.mxu0 0.0
        %3789 = vmatprep.subr.mxu0 0.0
        %3790 = vmatpush2.msra.mxu0 0.0
        %3791 = vmatprep.subr.mxu0 0.0
        %3792 = vmatpush2.msra.mxu0 0.0
        %3793 = vmatprep.mubr.f32.mxu0 0.0
        %3794 = vmatmul.mubr.f32.gmra.mxu0 %v3452
        %v3795 = vpop.f32.mrf.mxu0
        %v3796 = vadd.f32 %v3724, %v3795
        %v3797 = vpop.f32.mrf.mxu0
        %3798 = vdwg.mxu0
        %3799 = vst.msk [vmem:[%s847 + $0x3] sm:$0x1] %vm3527, %v3796
        %s3800 = sand.u32 %s463, 1
        %s3801 = scalar_lea.sflag [#allocation4], %s3800
        %s3802 = sand.u32 %s463, 1
        %s3803 = smul.addr %s3802, 4
        %s3804 = scalar_lea.vmem [#allocation28], %s3803
        // Predicated region
        $region161: #{_lambda_.1} parent=95 // pred_check
          %p3805 = pneg %p473
        $region162: #{_lambda_.1} parent=95 // pred_check_branch
          %3807 = sbr.rel (%p3805) target = $region164
        $region163: #{_lambda_.1} parent=95 // pred_region
          %s3809 = ssub.s32 64, 64
          %3810 = vsyncadd %s3801, %s3809
          %s3811 = smul.addr %s46, 64
          %s3812 = scalar_lea.hbm %s19, %s3811
          %s3814 = sshll.u32 %s3804, 4
          %s3815 = int_to_ptr.vmem [resolvable:$true] %s3814
          %3817 = dma.vmem_to_hbm [thread:$0]  %s3815, 64, %s3812, %s3801
        $region164: #{_lambda_.1} parent=95 // pred_fallthru
          _
      $region96: #{_lambda_.1} parent=5 // pred_fallthru
        _
      %p3818 = scmp.le.s32.totalorder 2, %s41
      // Predicated region
      $region165: #{_lambda_.1} parent=5 // pred_check
        %p3819 = pneg %p3818
      $region166: #{_lambda_.1} parent=5 // pred_check_branch
        %3821 = sbr.rel (%p3819) target = $region168
      $region167: #{_lambda_.1} parent=5 // pred_region
        %s3822 = ssub.s32 %s41, 2
        // Predicated region
        $region169: #{_lambda_.1} parent=167 // pred_check
          %p3823 = pneg %p479
        $region170: #{_lambda_.1} parent=167 // pred_check_branch
          %3825 = sbr.rel (%p3823) target = $region172
        $region171: #{_lambda_.1} parent=167 // pred_region
          %s3826 = sand.u32 %s464, 1
          %s3827 = scalar_lea.sflag [#allocation4], %s3826
          %s3828 = sand.u32 %s464, 1
          %s3829 = smul.addr %s3828, 4
          %s3830 = scalar_lea.vmem [#allocation28], %s3829
          %3831 = dma.done %s3827, 64
        $region172: #{_lambda_.1} parent=167 // pred_fallthru
          _
      $region168: #{_lambda_.1} parent=5 // pred_fallthru
        _
    $region6: #{_lambda_.1} parent=1 // loop_footer
      %s45 = sadd.s32 1, %s41
    $region7: #{_lambda_.1} parent=1 // loop_footer_branch
      %40 = sbr.rel target = $region3
    $region8: #{_lambda_.1} parent=1 // loop_exit
      _
    %3832 = vsyncpa [#allocation3], 1
    %s3833 = scalar_lea.sflag [#allocation3], 1
    %3834 = vsyncpa %s3833, 1
    %3835 = vsyncpa [#allocation6], 1
    %s3836 = scalar_lea.sflag [#allocation6], 1
    %3837 = vsyncpa %s3836, 1
    %3838 = vsyncpa [#allocation9], 1
    %3839 = vsyncpa [#allocation12], 1
    %3840 = vsyncpa [#allocation15], 1
    %3841 = vsyncpa [#allocation18], 1
    %3842 = vsyncpa [#allocation21], 1
    %3843 = vsyncpa [#allocation24], 1
    %3844 = vsyncpa [#allocation27], 1
    %3845 = vsyncpa [#allocation4], 1
    %s3846 = scalar_lea.sflag [#allocation4], 1
    %3847 = vsyncpa %s3846, 1

</llo_original>
